<compile_context>
chip_gen: v7x
topology: tpu7x:2x2x1
jax: 0.10.0
libtpu: 0.0.40
codegen_flags: <defaults>
</compile_context>

<pallas_src>
import functools

import jax
import jax.numpy as jnp
from jax.experimental import pallas as pl
from jax.experimental.pallas import tpu as pltpu


def _cdiv(a, b):
    return -(-a // b)


def _round_up(x, m):
    return ((x + m - 1) // m) * m


def _transform_kernel(x_ref, w0_ref, sh0_ref, w1_ref, sh1_ref, w2_ref, sh2_ref,
                      wf1_ref, shf1_ref, wf2_ref, shf2_ref, fw_ref, fb_ref,
                      out_ref, max_sc, *, out_chunk):
    n = pl.program_id(1)
    tn = x_ref.shape[1]
    c2 = w2_ref.shape[1]

    @pl.when(n == 0)
    def _():
        max_sc[...] = jnp.full_like(max_sc, -jnp.inf)

    x = x_ref[0]                                            # (TN, D0) bf16

    # conv0: Conv2d(in_size, 64, kernel=[1, channels]); BN scale folded into w0
    h = jnp.dot(x, w0_ref[...], preferred_element_type=jnp.float32)
    h = jnp.maximum(h + sh0_ref[...], 0.0)                  # (TN, 64)

    # SharedMLP layer 64 -> 128 (1x1 conv == matmul)
    h = jnp.dot(h.astype(jnp.bfloat16), w1_ref[...],
                preferred_element_type=jnp.float32)
    h = jnp.maximum(h + sh1_ref[...], 0.0)                  # (TN, 128)
    hb = h.astype(jnp.bfloat16)

    # SharedMLP layer 128 -> 1024, chunked over output channels.  Shift+ReLU are
    # hoisted past the max (per-channel monotone), so only the raw running max
    # is accumulated; the per-step reduce is purely elementwise (VPU) over
    # sublane groups of 8 rows.
    for c0 in range(0, c2, out_chunk):
        h3 = jnp.dot(hb, w2_ref[:, c0:c0 + out_chunk],
                     preferred_element_type=jnp.float32)     # (TN, CH) f32
        part = h3[0:8, :]
        for g in range(1, tn // 8):
            part = jnp.maximum(part, h3[g * 8:(g + 1) * 8, :])
        max_sc[:, c0:c0 + out_chunk] = jnp.maximum(
            max_sc[:, c0:c0 + out_chunk], part)

    @pl.when(n == pl.num_programs(1) - 1)
    def _():
        # single cross-sublane 8 -> 1 reduce, then the hoisted BN shift + ReLU
        g = jnp.max(max_sc[...], axis=0, keepdims=True)      # (1, C2)
        g = jnp.maximum(g + sh2_ref[...], 0.0)
        # fused FC head (per batch element); broadcast to 8 rows (MXU granularity)
        f = jnp.broadcast_to(g, (8, c2)).astype(jnp.bfloat16)
        f = jnp.dot(f, wf1_ref[...], preferred_element_type=jnp.float32)
        f = jnp.maximum(f + shf1_ref[...], 0.0)              # (8, 512)
        f = jnp.dot(f.astype(jnp.bfloat16), wf2_ref[...],
                    preferred_element_type=jnp.float32)
        f = jnp.maximum(f + shf2_ref[...], 0.0)              # (8, 256)
        o = jnp.dot(f.astype(jnp.bfloat16), fw_ref[...],
                    preferred_element_type=jnp.float32)      # (8, OUT_PAD)
        out_ref[0] = o[0:1, :] + fb_ref[...]                 # (1, OUT_PAD)


def _fold_params(params, out_pad):
    """Fold eval-mode BN scales into bf16 weights; keep f32 shifts; pad final proj."""
    (w0, ss0, w1, ss1, w2, ss2, wf1, ssf1, wf2, ssf2, fw, fb) = params

    def fold(w, ss):
        wb = (w.astype(jnp.float32) * ss[0][None, :]).astype(jnp.bfloat16)
        sh = ss[1].reshape(1, -1).astype(jnp.float32)
        return wb, sh

    w0b, sh0 = fold(w0, ss0)
    w1b, sh1 = fold(w1, ss1)
    w2b, sh2 = fold(w2, ss2)
    wf1b, shf1 = fold(wf1, ssf1)
    wf2b, shf2 = fold(wf2, ssf2)

    outsize = fw.shape[1]
    fw_pad = (jnp.zeros((fw.shape[0], out_pad), jnp.bfloat16)
              .at[:, :outsize].set(fw.astype(jnp.bfloat16)))
    fb_pad = (jnp.zeros((1, out_pad), jnp.float32)
              .at[:, :outsize].set(fb.reshape(1, outsize).astype(jnp.float32)))
    return (w0b, sh0, w1b, sh1, w2b, sh2, wf1b, shf1, wf2b, shf2, fw_pad, fb_pad)


def transform_net_forward(x_nchw, params, K, scale=False, tile_n=None):
    """x_nchw: (B, in_size, num_points, channels) float32 (PyTorch NCHW)."""
    B, c_in, N, c_w = x_nchw.shape
    D0 = c_in * c_w
    x_flat = (jnp.transpose(x_nchw, (0, 2, 1, 3))
              .reshape(B, N, D0).astype(jnp.bfloat16))       # bf16 matmul LHS

    outsize = params[10].shape[1]
    C2 = params[4].shape[1]                                  # 1024
    out_pad = max(128, _round_up(outsize, 128))              # lane-dense output
    folded = _fold_params(params, out_pad)

    # points tile: multiple of 16 (bf16 sublane packing); <=1024 by default.
    if tile_n is None:
        steps = _cdiv(N, 1024)
        tn = _round_up(_cdiv(N, steps), 16)
    else:
        tn = _round_up(tile_n, 16)
    n_steps = _cdiv(N, tn)
    n_pad = tn * n_steps
    if n_pad != N:
        # edge-replicate the last point: duplicates never change the max
        x_flat = jnp.concatenate(
            [x_flat, jnp.broadcast_to(x_flat[:, N - 1:N, :], (B, n_pad - N, D0))],
            axis=1)

    out_chunk = 256 if C2 % 256 == 0 else C2

    def full_spec(a):
        return pl.BlockSpec(a.shape, lambda b, n: (0, 0))

    kernel = functools.partial(_transform_kernel, out_chunk=out_chunk)

    out3 = pl.pallas_call(
        kernel,
        out_shape=jax.ShapeDtypeStruct((B, 1, out_pad), jnp.float32),
        grid_spec=pltpu.PrefetchScalarGridSpec(
            num_scalar_prefetch=0,
            grid=(B, n_steps),                               # reduction axis last
            in_specs=[pl.BlockSpec((1, tn, D0), lambda b, n: (b, n, 0))]
                     + [full_spec(a) for a in folded],
            out_specs=pl.BlockSpec((1, 1, out_pad), lambda b, n: (b, 0, 0)),
            scratch_shapes=[pltpu.VMEM((8, C2), jnp.float32)],
        ),
        compiler_params=pltpu.CompilerParams(
            dimension_semantics=("parallel", "arbitrary"),
            vmem_limit_bytes=48 * 1024 * 1024),
    )(x_flat, *folded)

    out = out3.reshape(B, out_pad)[:, :outsize]
    KK = K * K
    rotation = out[:, :KK].reshape(B, K, K)
    if scale:
        return rotation, out[:, -1]
    return rotation, None


def init_params(key, in_size, channels, K, scale=False):
    """Deterministic synthetic init mirroring TransformNet.__init__/init_weights.

    BatchNorm layers are represented as folded eval-mode (scale, shift) pairs.
    """
    D0 = in_size * channels
    outsize = K * K + (1 if scale else 0)
    keys = jax.random.split(key, 12)

    def w(k, shape):
        return 0.1 * jax.random.normal(k, shape, jnp.float32)

    def ss(k, c):
        gamma = 1.0 + 0.05 * jax.random.normal(k, (c,), jnp.float32)
        beta = 0.05 * jax.random.normal(jax.random.fold_in(k, 1), (c,), jnp.float32)
        return jnp.stack([gamma, beta], axis=0)

    w0 = w(keys[0], (D0, 64));      ss0 = ss(keys[1], 64)
    w1 = w(keys[2], (64, 128));     ss1 = ss(keys[3], 128)
    w2 = w(keys[4], (128, 1024));   ss2 = ss(keys[5], 1024)
    wf1 = w(keys[6], (1024, 512));  ssf1 = ss(keys[7], 512)
    wf2 = w(keys[8], (512, 256));   ssf2 = ss(keys[9], 256)

    # init_weights(): final_W = 0, final_b[:K*K] = (eye(K) + 0.1*randn).view(-1)
    fw = jnp.zeros((256, outsize), jnp.float32)
    eye_noise = (jnp.eye(K, dtype=jnp.float32)
                 + 0.1 * jax.random.normal(keys[10], (K, K), jnp.float32)).reshape(-1)
    fb = jnp.zeros((outsize,), jnp.float32).at[:K * K].set(eye_noise)
    if scale:
        fb = fb.at[-1].set(1.0)
    fb = fb.reshape(1, outsize)

    return (w0, ss0, w1, ss1, w2, ss2, wf1, ssf1, wf2, ssf2, fw, fb)


def ref_forward(x_nchw, params, K, scale=False):
    """Pure-JAX reference using the SAME folded bf16 weights / f32 accumulation,
    in module-faithful order (ReLU before the max-pool)."""
    B, c_in, N, c_w = x_nchw.shape
    D0 = c_in * c_w
    outsize = params[10].shape[1]
    out_pad = max(128, _round_up(outsize, 128))
    (w0b, sh0, w1b, sh1, w2b, sh2,
     wf1b, shf1, wf2b, shf2, fw_pad, fb_pad) = _fold_params(params, out_pad)

    x = (jnp.transpose(x_nchw, (0, 2, 1, 3))
         .reshape(B, N, D0).astype(jnp.bfloat16))

    def mm(a, wb):
        return jnp.dot(a.astype(jnp.bfloat16), wb,
                       preferred_element_type=jnp.float32)

    h = jnp.maximum(mm(x, w0b) + sh0, 0.0)
    h = jnp.maximum(mm(h, w1b) + sh1, 0.0)
    h = jnp.maximum(mm(h, w2b) + sh2, 0.0)
    g = h.max(axis=1)                                        # (B, 1024)
    f = jnp.maximum(mm(g, wf1b) + shf1, 0.0)
    f = jnp.maximum(mm(f, wf2b) + shf2, 0.0)
    out = (mm(f, fw_pad) + fb_pad)[:, :outsize]
    rot = out[:, :K * K].reshape(B, K, K)
    if scale:
        return rot, out[:, -1]
    return rot, None


if __name__ == "__main__":
    B, in_size, num_points, channels, K = 2, 4, 48, 3, 3
    key = jax.random.PRNGKey(0)
    kx, kp = jax.random.split(key)

    x = jax.random.normal(kx, (B, in_size, num_points, channels), jnp.float32)
    params = init_params(kp, in_size, channels, K, scale=False)

    # module-faithful run (final_W == 0 per init_weights); tile_n=16 gives a
    # 3-step running-max reduction over the points axis.
    rotation, _ = transform_net_forward(x, params, K, scale=False, tile_n=16)
    rotation = jax.block_until_ready(rotation)
    assert rotation.shape == (B, K, K)
    rot_ref0, _ = ref_forward(x, params, K, scale=False)
    assert jnp.allclose(rotation, rot_ref0, atol=1e-5, rtol=1e-5)

    # numerics check with a non-zero final_W so the fused FC head path is used;
    # tile_n=32 over N=48 also exercises the edge-replication padding path.
    chk = list(params)
    chk[10] = 0.1 * jax.random.normal(jax.random.PRNGKey(1), params[10].shape,
                                      jnp.float32)
    chk = tuple(chk)
    rot_k, _ = transform_net_forward(x, chk, K, scale=False, tile_n=32)
    rot_r, _ = ref_forward(x, chk, K, scale=False)
    rot_k = jax.block_until_ready(rot_k)
    assert jnp.allclose(rot_k, rot_r, atol=1e-3, rtol=1e-3), "kernel mismatch"

    # default (single-tile) points tiling path
    rot_k2, _ = transform_net_forward(x, chk, K, scale=False)
    rot_k2 = jax.block_until_ready(rot_k2)
    assert jnp.allclose(rot_k2, rot_r, atol=1e-3, rtol=1e-3), "kernel mismatch"

    # scale=True branch
    params_s = init_params(kp, in_size, channels, K, scale=True)
    chk_s = list(params_s)
    chk_s[10] = 0.1 * jax.random.normal(jax.random.PRNGKey(2),
                                        params_s[10].shape, jnp.float32)
    chk_s = tuple(chk_s)
    rot_s, scl_s = transform_net_forward(x, chk_s, K, scale=True, tile_n=16)
    rot_sr, scl_sr = ref_forward(x, chk_s, K, scale=True)
    rot_s = jax.block_until_ready(rot_s)
    assert jnp.allclose(rot_s, rot_sr, atol=1e-3, rtol=1e-3), "kernel mismatch"
    assert jnp.allclose(scl_s, scl_sr, atol=1e-3, rtol=1e-3), "scale mismatch"

    print("KERNEL_OK")
</pallas_src>

<mosaic_0001>
module attributes {stable_mosaic.version = 11 : i64} {
  func.func @_transform_kernel(%arg0: i32, %arg1: i32, %arg2: memref<1x16x12xbf16, #tpu.memory_space<vmem>>, %arg3: memref<12x64xbf16, #tpu.memory_space<vmem>>, %arg4: memref<1x64xf32, #tpu.memory_space<vmem>>, %arg5: memref<64x128xbf16, #tpu.memory_space<vmem>>, %arg6: memref<1x128xf32, #tpu.memory_space<vmem>>, %arg7: memref<128x1024xbf16, #tpu.memory_space<vmem>>, %arg8: memref<1x1024xf32, #tpu.memory_space<vmem>>, %arg9: memref<1024x512xbf16, #tpu.memory_space<vmem>>, %arg10: memref<1x512xf32, #tpu.memory_space<vmem>>, %arg11: memref<512x256xbf16, #tpu.memory_space<vmem>>, %arg12: memref<1x256xf32, #tpu.memory_space<vmem>>, %arg13: memref<256x128xbf16, #tpu.memory_space<vmem>>, %arg14: memref<1x128xf32, #tpu.memory_space<vmem>>, %arg15: memref<1x1x128xf32, #tpu.memory_space<vmem>>, %arg16: memref<8x1024xf32, #tpu.memory_space<vmem>>) attributes {dimension_semantics = [#tpu.dimension_semantics<parallel>, #tpu.dimension_semantics<arbitrary>], iteration_bounds = array<i64: 2, 3>, scalar_prefetch = 0 : i64, scratch_operands = 1 : i64, tpu.core_type = #tpu.core_type<tc>, window_params = [{transform_indices = @transform_0, window_bounds = array<i64: 1, 16, 12>}, {pipeline_mode = #tpu.pipeline_mode<synchronous>, transform_indices = @transform_1, window_bounds = array<i64: 12, 64>}, {pipeline_mode = #tpu.pipeline_mode<synchronous>, transform_indices = @transform_2, window_bounds = array<i64: 1, 64>}, {pipeline_mode = #tpu.pipeline_mode<synchronous>, transform_indices = @transform_3, window_bounds = array<i64: 64, 128>}, {pipeline_mode = #tpu.pipeline_mode<synchronous>, transform_indices = @transform_4, window_bounds = array<i64: 1, 128>}, {pipeline_mode = #tpu.pipeline_mode<synchronous>, transform_indices = @transform_5, window_bounds = array<i64: 128, 1024>}, {pipeline_mode = #tpu.pipeline_mode<synchronous>, transform_indices = @transform_6, window_bounds = array<i64: 1, 1024>}, {pipeline_mode = #tpu.pipeline_mode<synchronous>, transform_indices = @transform_7, window_bounds = array<i64: 1024, 512>}, {pipeline_mode = #tpu.pipeline_mode<synchronous>, transform_indices = @transform_8, window_bounds = array<i64: 1, 512>}, {pipeline_mode = #tpu.pipeline_mode<synchronous>, transform_indices = @transform_9, window_bounds = array<i64: 512, 256>}, {pipeline_mode = #tpu.pipeline_mode<synchronous>, transform_indices = @transform_10, window_bounds = array<i64: 1, 256>}, {pipeline_mode = #tpu.pipeline_mode<synchronous>, transform_indices = @transform_11, window_bounds = array<i64: 256, 128>}, {pipeline_mode = #tpu.pipeline_mode<synchronous>, transform_indices = @transform_12, window_bounds = array<i64: 1, 128>}, {transform_indices = @transform_13, window_bounds = array<i64: 1, 1, 128>}]} {
    %c0_i32 = arith.constant 0 : i32
    %0 = arith.cmpi eq, %arg1, %c0_i32 : i32
    %1 = arith.extui %0 : i1 to i32
    %c0_i32_0 = arith.constant 0 : i32
    %2 = arith.cmpi ne, %1, %c0_i32_0 : i32
    scf.if %2 {
      %cst_40 = arith.constant 0xFF800000 : f32
      %56 = vector.broadcast %cst_40 : f32 to vector<8x1024xf32>
      %c0_41 = arith.constant 0 : index
      %c0_42 = arith.constant 0 : index
      %57 = vector.load %arg16[%c0_41, %c0_42] : memref<8x1024xf32, #tpu.memory_space<vmem>>, vector<8x1024xf32>
      tpu.vector_store %arg16[%c0_41, %c0_42], %56 {strides = array<i32>} : memref<8x1024xf32, #tpu.memory_space<vmem>>, vector<8x1024xf32>,
    } else {
    }
    %c0 = arith.constant 0 : index
    %c0_1 = arith.constant 0 : index
    %c0_2 = arith.constant 0 : index
    %3 = vector.load %arg2[%c0, %c0_1, %c0_2] : memref<1x16x12xbf16, #tpu.memory_space<vmem>>, vector<1x16x12xbf16>
    %4 = vector.shape_cast %3 : vector<1x16x12xbf16> to vector<16x12xbf16>
    %c0_3 = arith.constant 0 : index
    %c0_4 = arith.constant 0 : index
    %5 = vector.load %arg3[%c0_3, %c0_4] : memref<12x64xbf16, #tpu.memory_space<vmem>>, vector<12x64xbf16>
    %cst = arith.constant dense<0.000000e+00> : vector<16x64xf32>
    %6 = tpu.matmul %4, %5, %cst {dimension_numbers = #tpu.dot_dimension_numbers<[1], [0], [0], [1], [0, 0, 1, 1], [], []>} : vector<16x12xbf16>, vector<12x64xbf16>, vector<16x64xf32> -> vector<16x64xf32>
    %c0_5 = arith.constant 0 : index
    %c0_6 = arith.constant 0 : index
    %7 = vector.load %arg4[%c0_5, %c0_6] : memref<1x64xf32, #tpu.memory_space<vmem>>, vector<1x64xf32>
    %8 = vector.broadcast %7 : vector<1x64xf32> to vector<16x64xf32>
    %9 = arith.addf %6, %8 : vector<16x64xf32>
    %cst_7 = arith.constant 0.000000e+00 : f32
    %10 = vector.broadcast %cst_7 : f32 to vector<16x64xf32>
    %11 = arith.maximumf %9, %10 : vector<16x64xf32>
    %12 = arith.truncf %11 : vector<16x64xf32> to vector<16x64xbf16>
    %c0_8 = arith.constant 0 : index
    %c0_9 = arith.constant 0 : index
    %13 = vector.load %arg5[%c0_8, %c0_9] : memref<64x128xbf16, #tpu.memory_space<vmem>>, vector<64x128xbf16>
    %cst_10 = arith.constant dense<0.000000e+00> : vector<16x128xf32>
    %14 = tpu.matmul %12, %13, %cst_10 {dimension_numbers = #tpu.dot_dimension_numbers<[1], [0], [0], [1], [0, 0, 1, 1], [], []>} : vector<16x64xbf16>, vector<64x128xbf16>, vector<16x128xf32> -> vector<16x128xf32>
    %c0_11 = arith.constant 0 : index
    %c0_12 = arith.constant 0 : index
    %15 = vector.load %arg6[%c0_11, %c0_12] : memref<1x128xf32, #tpu.memory_space<vmem>>, vector<1x128xf32>
    %16 = vector.broadcast %15 : vector<1x128xf32> to vector<16x128xf32>
    %17 = arith.addf %14, %16 : vector<16x128xf32>
    %cst_13 = arith.constant 0.000000e+00 : f32
    %18 = vector.broadcast %cst_13 : f32 to vector<16x128xf32>
    %19 = arith.maximumf %17, %18 : vector<16x128xf32>
    %20 = arith.truncf %19 : vector<16x128xf32> to vector<16x128xbf16>
    %c0_14 = arith.constant 0 : index
    %c0_15 = arith.constant 0 : index
    %21 = vector.load %arg7[%c0_14, %c0_15] : memref<128x1024xbf16, #tpu.memory_space<vmem>>, vector<128x256xbf16>
    %cst_16 = arith.constant dense<0.000000e+00> : vector<16x256xf32>
    %22 = tpu.matmul %20, %21, %cst_16 {dimension_numbers = #tpu.dot_dimension_numbers<[1], [0], [0], [1], [0, 0, 1, 1], [], []>} : vector<16x128xbf16>, vector<128x256xbf16>, vector<16x256xf32> -> vector<16x256xf32>
    %23 = vector.extract_strided_slice %22 {offsets = [0, 0], sizes = [8, 256], strides = [1, 1]} : vector<16x256xf32> to vector<8x256xf32>
    %24 = vector.extract_strided_slice %22 {offsets = [8, 0], sizes = [8, 256], strides = [1, 1]} : vector<16x256xf32> to vector<8x256xf32>
    %25 = arith.maximumf %23, %24 : vector<8x256xf32>
    %c0_17 = arith.constant 0 : index
    %c0_18 = arith.constant 0 : index
    %26 = vector.load %arg16[%c0_17, %c0_18] : memref<8x1024xf32, #tpu.memory_space<vmem>>, vector<8x256xf32>
    %27 = arith.maximumf %26, %25 : vector<8x256xf32>
    %c0_19 = arith.constant 0 : index
    %c0_20 = arith.constant 0 : index
    %28 = vector.load %arg16[%c0_19, %c0_20] : memref<8x1024xf32, #tpu.memory_space<vmem>>, vector<8x256xf32>
    tpu.vector_store %arg16[%c0_19, %c0_20], %27 {strides = array<i32>} : memref<8x1024xf32, #tpu.memory_space<vmem>>, vector<8x256xf32>,
    %c0_21 = arith.constant 0 : index
    %c256 = arith.constant 256 : index
    %29 = vector.load %arg7[%c0_21, %c256] : memref<128x1024xbf16, #tpu.memory_space<vmem>>, vector<128x256xbf16>
    %cst_22 = arith.constant dense<0.000000e+00> : vector<16x256xf32>
    %30 = tpu.matmul %20, %29, %cst_22 {dimension_numbers = #tpu.dot_dimension_numbers<[1], [0], [0], [1], [0, 0, 1, 1], [], []>} : vector<16x128xbf16>, vector<128x256xbf16>, vector<16x256xf32> -> vector<16x256xf32>
    %31 = vector.extract_strided_slice %30 {offsets = [0, 0], sizes = [8, 256], strides = [1, 1]} : vector<16x256xf32> to vector<8x256xf32>
    %32 = vector.extract_strided_slice %30 {offsets = [8, 0], sizes = [8, 256], strides = [1, 1]} : vector<16x256xf32> to vector<8x256xf32>
    %33 = arith.maximumf %31, %32 : vector<8x256xf32>
    %c0_23 = arith.constant 0 : index
    %c256_24 = arith.constant 256 : index
    %34 = vector.load %arg16[%c0_23, %c256_24] : memref<8x1024xf32, #tpu.memory_space<vmem>>, vector<8x256xf32>
    %35 = arith.maximumf %34, %33 : vector<8x256xf32>
    %c0_25 = arith.constant 0 : index
    %c256_26 = arith.constant 256 : index
    %36 = vector.load %arg16[%c0_25, %c256_26] : memref<8x1024xf32, #tpu.memory_space<vmem>>, vector<8x256xf32>
    tpu.vector_store %arg16[%c0_25, %c256_26], %35 {strides = array<i32>} : memref<8x1024xf32, #tpu.memory_space<vmem>>, vector<8x256xf32>,
    %c0_27 = arith.constant 0 : index
    %c512 = arith.constant 512 : index
    %37 = vector.load %arg7[%c0_27, %c512] : memref<128x1024xbf16, #tpu.memory_space<vmem>>, vector<128x256xbf16>
    %cst_28 = arith.constant dense<0.000000e+00> : vector<16x256xf32>
    %38 = tpu.matmul %20, %37, %cst_28 {dimension_numbers = #tpu.dot_dimension_numbers<[1], [0], [0], [1], [0, 0, 1, 1], [], []>} : vector<16x128xbf16>, vector<128x256xbf16>, vector<16x256xf32> -> vector<16x256xf32>
    %39 = vector.extract_strided_slice %38 {offsets = [0, 0], sizes = [8, 256], strides = [1, 1]} : vector<16x256xf32> to vector<8x256xf32>
    %40 = vector.extract_strided_slice %38 {offsets = [8, 0], sizes = [8, 256], strides = [1, 1]} : vector<16x256xf32> to vector<8x256xf32>
    %41 = arith.maximumf %39, %40 : vector<8x256xf32>
    %c0_29 = arith.constant 0 : index
    %c512_30 = arith.constant 512 : index
    %42 = vector.load %arg16[%c0_29, %c512_30] : memref<8x1024xf32, #tpu.memory_space<vmem>>, vector<8x256xf32>
    %43 = arith.maximumf %42, %41 : vector<8x256xf32>
    %c0_31 = arith.constant 0 : index
    %c512_32 = arith.constant 512 : index
    %44 = vector.load %arg16[%c0_31, %c512_32] : memref<8x1024xf32, #tpu.memory_space<vmem>>, vector<8x256xf32>
    tpu.vector_store %arg16[%c0_31, %c512_32], %43 {strides = array<i32>} : memref<8x1024xf32, #tpu.memory_space<vmem>>, vector<8x256xf32>,
    %c0_33 = arith.constant 0 : index
    %c768 = arith.constant 768 : index
    %45 = vector.load %arg7[%c0_33, %c768] : memref<128x1024xbf16, #tpu.memory_space<vmem>>, vector<128x256xbf16>
    %cst_34 = arith.constant dense<0.000000e+00> : vector<16x256xf32>
    %46 = tpu.matmul %20, %45, %cst_34 {dimension_numbers = #tpu.dot_dimension_numbers<[1], [0], [0], [1], [0, 0, 1, 1], [], []>} : vector<16x128xbf16>, vector<128x256xbf16>, vector<16x256xf32> -> vector<16x256xf32>
    %47 = vector.extract_strided_slice %46 {offsets = [0, 0], sizes = [8, 256], strides = [1, 1]} : vector<16x256xf32> to vector<8x256xf32>
    %48 = vector.extract_strided_slice %46 {offsets = [8, 0], sizes = [8, 256], strides = [1, 1]} : vector<16x256xf32> to vector<8x256xf32>
    %49 = arith.maximumf %47, %48 : vector<8x256xf32>
    %c0_35 = arith.constant 0 : index
    %c768_36 = arith.constant 768 : index
    %50 = vector.load %arg16[%c0_35, %c768_36] : memref<8x1024xf32, #tpu.memory_space<vmem>>, vector<8x256xf32>
    %51 = arith.maximumf %50, %49 : vector<8x256xf32>
    %c0_37 = arith.constant 0 : index
    %c768_38 = arith.constant 768 : index
    %52 = vector.load %arg16[%c0_37, %c768_38] : memref<8x1024xf32, #tpu.memory_space<vmem>>, vector<8x256xf32>
    tpu.vector_store %arg16[%c0_37, %c768_38], %51 {strides = array<i32>} : memref<8x1024xf32, #tpu.memory_space<vmem>>, vector<8x256xf32>,
    %c2_i32 = arith.constant 2 : i32
    %53 = arith.cmpi eq, %arg1, %c2_i32 : i32
    %54 = arith.extui %53 : i1 to i32
    %c0_i32_39 = arith.constant 0 : i32
    %55 = arith.cmpi ne, %54, %c0_i32_39 : i32
    scf.if %55 {
      %c0_40 = arith.constant 0 : index
      %c0_41 = arith.constant 0 : index
      %56 = vector.load %arg16[%c0_40, %c0_41] : memref<8x1024xf32, #tpu.memory_space<vmem>>, vector<8x1024xf32>
      %cst_42 = arith.constant dense<0xFF800000> : vector<1024xf32>
      %57 = vector.multi_reduction <maximumf>, %56, %cst_42 [0] : vector<8x1024xf32> to vector<1024xf32>
      %58 = vector.shape_cast %57 : vector<1024xf32> to vector<1x1024xf32>
      %c0_43 = arith.constant 0 : index
      %c0_44 = arith.constant 0 : index
      %59 = vector.load %arg8[%c0_43, %c0_44] : memref<1x1024xf32, #tpu.memory_space<vmem>>, vector<1x1024xf32>
      %60 = arith.addf %58, %59 : vector<1x1024xf32>
      %cst_45 = arith.constant 0.000000e+00 : f32
      %61 = vector.broadcast %cst_45 : f32 to vector<1x1024xf32>
      %62 = arith.maximumf %60, %61 : vector<1x1024xf32>
      %63 = vector.shape_cast %62 : vector<1x1024xf32> to vector<1x1024xf32>
      %64 = vector.broadcast %63 : vector<1x1024xf32> to vector<8x1024xf32>
      %65 = arith.truncf %64 : vector<8x1024xf32> to vector<8x1024xbf16>
      %c0_46 = arith.constant 0 : index
      %c0_47 = arith.constant 0 : index
      %66 = vector.load %arg9[%c0_46, %c0_47] : memref<1024x512xbf16, #tpu.memory_space<vmem>>, vector<1024x512xbf16>
      %cst_48 = arith.constant dense<0.000000e+00> : vector<8x512xf32>
      %67 = tpu.matmul %65, %66, %cst_48 {dimension_numbers = #tpu.dot_dimension_numbers<[1], [0], [0], [1], [0, 0, 1, 1], [], []>} : vector<8x1024xbf16>, vector<1024x512xbf16>, vector<8x512xf32> -> vector<8x512xf32>
      %c0_49 = arith.constant 0 : index
      %c0_50 = arith.constant 0 : index
      %68 = vector.load %arg10[%c0_49, %c0_50] : memref<1x512xf32, #tpu.memory_space<vmem>>, vector<1x512xf32>
      %69 = vector.broadcast %68 : vector<1x512xf32> to vector<8x512xf32>
      %70 = arith.addf %67, %69 : vector<8x512xf32>
      %cst_51 = arith.constant 0.000000e+00 : f32
      %71 = vector.broadcast %cst_51 : f32 to vector<8x512xf32>
      %72 = arith.maximumf %70, %71 : vector<8x512xf32>
      %73 = arith.truncf %72 : vector<8x512xf32> to vector<8x512xbf16>
      %c0_52 = arith.constant 0 : index
      %c0_53 = arith.constant 0 : index
      %74 = vector.load %arg11[%c0_52, %c0_53] : memref<512x256xbf16, #tpu.memory_space<vmem>>, vector<512x256xbf16>
      %cst_54 = arith.constant dense<0.000000e+00> : vector<8x256xf32>
      %75 = tpu.matmul %73, %74, %cst_54 {dimension_numbers = #tpu.dot_dimension_numbers<[1], [0], [0], [1], [0, 0, 1, 1], [], []>} : vector<8x512xbf16>, vector<512x256xbf16>, vector<8x256xf32> -> vector<8x256xf32>
      %c0_55 = arith.constant 0 : index
      %c0_56 = arith.constant 0 : index
      %76 = vector.load %arg12[%c0_55, %c0_56] : memref<1x256xf32, #tpu.memory_space<vmem>>, vector<1x256xf32>
      %77 = vector.broadcast %76 : vector<1x256xf32> to vector<8x256xf32>
      %78 = arith.addf %75, %77 : vector<8x256xf32>
      %cst_57 = arith.constant 0.000000e+00 : f32
      %79 = vector.broadcast %cst_57 : f32 to vector<8x256xf32>
      %80 = arith.maximumf %78, %79 : vector<8x256xf32>
      %81 = arith.truncf %80 : vector<8x256xf32> to vector<8x256xbf16>
      %c0_58 = arith.constant 0 : index
      %c0_59 = arith.constant 0 : index
      %82 = vector.load %arg13[%c0_58, %c0_59] : memref<256x128xbf16, #tpu.memory_space<vmem>>, vector<256x128xbf16>
      %cst_60 = arith.constant dense<0.000000e+00> : vector<8x128xf32>
      %83 = tpu.matmul %81, %82, %cst_60 {dimension_numbers = #tpu.dot_dimension_numbers<[1], [0], [0], [1], [0, 0, 1, 1], [], []>} : vector<8x256xbf16>, vector<256x128xbf16>, vector<8x128xf32> -> vector<8x128xf32>
      %84 = vector.extract_strided_slice %83 {offsets = [0, 0], sizes = [1, 128], strides = [1, 1]} : vector<8x128xf32> to vector<1x128xf32>
      %c0_61 = arith.constant 0 : index
      %c0_62 = arith.constant 0 : index
      %85 = vector.load %arg14[%c0_61, %c0_62] : memref<1x128xf32, #tpu.memory_space<vmem>>, vector<1x128xf32>
      %86 = arith.addf %84, %85 : vector<1x128xf32>
      %c0_63 = arith.constant 0 : index
      %c0_64 = arith.constant 0 : index
      %c0_65 = arith.constant 0 : index
      %87 = vector.load %arg15[%c0_63, %c0_64, %c0_65] : memref<1x1x128xf32, #tpu.memory_space<vmem>>, vector<1x1x128xf32>
      %88 = vector.shape_cast %87 : vector<1x1x128xf32> to vector<1x128xf32>
      %89 = vector.shape_cast %86 : vector<1x128xf32> to vector<1x1x128xf32>
      tpu.vector_store %arg15[%c0_63, %c0_64, %c0_65], %89 {strides = array<i32>} : memref<1x1x128xf32, #tpu.memory_space<vmem>>, vector<1x1x128xf32>,
    } else {
    }
    return
  }
  func.func @transform_0(%arg0: i32, %arg1: i32) -> (i32, i32, i32) {
    %c0_i32 = arith.constant 0 : i32
    %c0_i32_0 = arith.constant 0 : i32
    return %arg0, %arg1, %c0_i32 : i32, i32, i32
  }
  func.func @transform_1(%arg0: i32, %arg1: i32) -> (i32, i32) {
    %c0_i32 = arith.constant 0 : i32
    %c0_i32_0 = arith.constant 0 : i32
    %c0_i32_1 = arith.constant 0 : i32
    return %c0_i32, %c0_i32_0 : i32, i32
  }
  func.func @transform_2(%arg0: i32, %arg1: i32) -> (i32, i32) {
    %c0_i32 = arith.constant 0 : i32
    %c0_i32_0 = arith.constant 0 : i32
    %c0_i32_1 = arith.constant 0 : i32
    return %c0_i32, %c0_i32_0 : i32, i32
  }
  func.func @transform_3(%arg0: i32, %arg1: i32) -> (i32, i32) {
    %c0_i32 = arith.constant 0 : i32
    %c0_i32_0 = arith.constant 0 : i32
    %c0_i32_1 = arith.constant 0 : i32
    return %c0_i32, %c0_i32_0 : i32, i32
  }
  func.func @transform_4(%arg0: i32, %arg1: i32) -> (i32, i32) {
    %c0_i32 = arith.constant 0 : i32
    %c0_i32_0 = arith.constant 0 : i32
    %c0_i32_1 = arith.constant 0 : i32
    return %c0_i32, %c0_i32_0 : i32, i32
  }
  func.func @transform_5(%arg0: i32, %arg1: i32) -> (i32, i32) {
    %c0_i32 = arith.constant 0 : i32
    %c0_i32_0 = arith.constant 0 : i32
    %c0_i32_1 = arith.constant 0 : i32
    return %c0_i32, %c0_i32_0 : i32, i32
  }
  func.func @transform_6(%arg0: i32, %arg1: i32) -> (i32, i32) {
    %c0_i32 = arith.constant 0 : i32
    %c0_i32_0 = arith.constant 0 : i32
    %c0_i32_1 = arith.constant 0 : i32
    return %c0_i32, %c0_i32_0 : i32, i32
  }
  func.func @transform_7(%arg0: i32, %arg1: i32) -> (i32, i32) {
    %c0_i32 = arith.constant 0 : i32
    %c0_i32_0 = arith.constant 0 : i32
    %c0_i32_1 = arith.constant 0 : i32
    return %c0_i32, %c0_i32_0 : i32, i32
  }
  func.func @transform_8(%arg0: i32, %arg1: i32) -> (i32, i32) {
    %c0_i32 = arith.constant 0 : i32
    %c0_i32_0 = arith.constant 0 : i32
    %c0_i32_1 = arith.constant 0 : i32
    return %c0_i32, %c0_i32_0 : i32, i32
  }
  func.func @transform_9(%arg0: i32, %arg1: i32) -> (i32, i32) {
    %c0_i32 = arith.constant 0 : i32
    %c0_i32_0 = arith.constant 0 : i32
    %c0_i32_1 = arith.constant 0 : i32
    return %c0_i32, %c0_i32_0 : i32, i32
  }
  func.func @transform_10(%arg0: i32, %arg1: i32) -> (i32, i32) {
    %c0_i32 = arith.constant 0 : i32
    %c0_i32_0 = arith.constant 0 : i32
    %c0_i32_1 = arith.constant 0 : i32
    return %c0_i32, %c0_i32_0 : i32, i32
  }
  func.func @transform_11(%arg0: i32, %arg1: i32) -> (i32, i32) {
    %c0_i32 = arith.constant 0 : i32
    %c0_i32_0 = arith.constant 0 : i32
    %c0_i32_1 = arith.constant 0 : i32
    return %c0_i32, %c0_i32_0 : i32, i32
  }
  func.func @transform_12(%arg0: i32, %arg1: i32) -> (i32, i32) {
    %c0_i32 = arith.constant 0 : i32
    %c0_i32_0 = arith.constant 0 : i32
    %c0_i32_1 = arith.constant 0 : i32
    return %c0_i32, %c0_i32_0 : i32, i32
  }
  func.func @transform_13(%arg0: i32, %arg1: i32) -> (i32, i32, i32) {
    %c0_i32 = arith.constant 0 : i32
    %c0_i32_0 = arith.constant 0 : i32
    %c0_i32_1 = arith.constant 0 : i32
    return %arg0, %c0_i32, %c0_i32_0 : i32, i32, i32
  }
}

</mosaic_0001>

<llo_original>
// kernel: tpu_custom_call.1
$region0: #{tpu_custom_call.1}
  #allocation0 [shape = 'u32[]', space=smem, size = 0x4, offset = 0x4, fixed_abs, tag = 'smem constant byte address 0x4 - core index']
  #allocation1 [shape = 'u32[144,128]{1,0:T(1,128)}', space=vmem, size = 0x12000, scoped, tag = 'internal scratch']
  #allocation2 [shape = 'f32[8,1024]{1,0:T(8,128)}', space=vmem, size = 0x8000, scoped, tag = 'scratch operand']
  %s0 = inlined_call_operand.vmem [shape: bf16[2,48,12], index: 0, kind: input, shape index: {}]
  %s1 = inlined_call_operand.vmem [shape: bf16[12,64], index: 1, kind: input, shape index: {}]
  %s2 = inlined_call_operand.vmem [shape: f32[1,64], index: 2, kind: input, shape index: {}]
  %s3 = inlined_call_operand.vmem [shape: bf16[64,128], index: 3, kind: input, shape index: {}]
  %s4 = inlined_call_operand.vmem [shape: f32[1,128], index: 4, kind: input, shape index: {}]
  %s5 = inlined_call_operand.hbm [shape: bf16[128,1024], index: 5, kind: input, shape index: {}]
  %s6 = inlined_call_operand.vmem [shape: f32[1,1024], index: 6, kind: input, shape index: {}]
  %s7 = inlined_call_operand.hbm [shape: bf16[1024,512], index: 7, kind: input, shape index: {}]
  %s8 = inlined_call_operand.vmem [shape: f32[1,512], index: 8, kind: input, shape index: {}]
  %s9 = inlined_call_operand.hbm [shape: bf16[512,256], index: 9, kind: input, shape index: {}]
  %s10 = inlined_call_operand.vmem [shape: f32[1,256], index: 10, kind: input, shape index: {}]
  %s11 = inlined_call_operand.hbm [shape: bf16[256,128], index: 11, kind: input, shape index: {}]
  %s12 = inlined_call_operand.vmem [shape: f32[1,128], index: 12, kind: input, shape index: {}]
  %s13 = inlined_call_operand.hbm [shape: f32[2,1,128], index: 13, kind: output, shape index: {}]
  %s14 = sld [smem:[#allocation0]]
  $region109: #{tpu_custom_call.1} parent=0
    _
  %s16 = ssub.s32 1, %s14
  %s17 = scalar_select 0, %s16, %s14
  $region1: #{tpu_custom_call.1} parent=0
    #allocation3 [shape = 'u8[262144]{0}', space=vmem, size = 0x40000, scoped, tag = 'input window, operand 5, single buffered']
    #allocation4 [shape = 's32[2]{0}', space=sflag, size = 0x8, scoped, tag = 'scoped memory for tpu_custom_call.1']
    #allocation5 [shape = 's32[2]{0}', space=sflag, size = 0x8, scoped, tag = 'scoped memory for tpu_custom_call.1']
    #allocation6 [shape = 'u8[1048576]{0}', space=vmem, size = 0x100000, scoped, tag = 'input window, operand 7, single buffered']
    #allocation7 [shape = 's32[1]{0}', space=sflag, size = 0x4, scoped, tag = 'scoped memory for tpu_custom_call.1']
    #allocation8 [shape = 'u8[262144]{0}', space=vmem, size = 0x40000, scoped, tag = 'input window, operand 9, single buffered']
    #allocation9 [shape = 'u8[65536]{0}', space=vmem, size = 0x10000, scoped, tag = 'input window, operand 11, single buffered']
    #allocation10 [shape = 's32[1]{0}', space=sflag, size = 0x4, scoped, tag = 'scoped memory for tpu_custom_call.1']
    #allocation11 [shape = 'u8[1024]{0}', space=vmem, size = 0x400, scoped, tag = 'output window, operand 0']
    %18 = vsyncpa [#allocation4], 0
    %19 = vsyncpa [#allocation7], 0
    %20 = vsyncpa [#allocation10], 0
    %21 = vsyncpa [#allocation5], 0
    %s22 = scalar_lea.sflag [#allocation5], 1
    %23 = vsyncpa %s22, 0
    loop: start=0, step=1, limit=8
    $region2: #{tpu_custom_call.1} parent=1 // loop_pre_header
      _
    $region3: #{tpu_custom_call.1} parent=1 // loop_header
      %s25 = sphi 0, %s29
      %p26 = scmp.ge.s32.totalorder %s25, 8
      %s32 = sphi 0, %s44
      %s33 = sphi 0, %s40
      %s34 = sphi 0, %s32
      %s35 = sphi 0, %s33
      %s36 = sphi 0, %s34
      %s37 = sphi 0, %s35
      %s49 = sphi 0, %s51
      %s52 = sphi 0, %s49
      %s53 = sphi 0, %s52
      %s69 = sphi 0, %s53
      %s73 = sphi 0, %s73
      %s75 = sphi 0, %s73
      %s76 = sphi 0, %s75
      %s90 = sphi 0, %s76
      %s94 = sphi 0, %s94
      %s96 = sphi 0, %s94
      %s97 = sphi 0, %s96
      %s111 = sphi 0, %s97
      %s115 = sphi 0, %s115
      %s117 = sphi 0, %s115
      %s118 = sphi 0, %s117
      %s132 = sphi 0, %s118
      %s136 = sphi 0, %s136
      %s138 = sphi 0, %s136
      %s139 = sphi 0, %s138
      %s153 = sphi 0, %s139
      %s157 = sphi 0, %s157
      %s159 = sphi 0, %s157
      %s160 = sphi 0, %s159
      %s174 = sphi 0, %s160
      %s178 = sphi 0, %s178
      %s180 = sphi 0, %s178
      %s181 = sphi 0, %s180
      %s195 = sphi 0, %s181
      %s199 = sphi 0, %s199
      %s201 = sphi 0, %s199
      %s202 = sphi 0, %s201
      %s216 = sphi 0, %s202
      %s220 = sphi 0, %s220
      %s222 = sphi 0, %s220
      %s223 = sphi 0, %s222
      %s237 = sphi 0, %s223
      %s241 = sphi 0, %s241
      %s243 = sphi 0, %s241
      %s244 = sphi 0, %s243
      %s258 = sphi 0, %s244
      %s262 = sphi 0, %s262
      %s264 = sphi 0, %s262
      %s265 = sphi 0, %s264
      %s279 = sphi 0, %s265
      %s283 = sphi 0, %s283
      %s285 = sphi 0, %s283
      %s286 = sphi 0, %s285
      %s300 = sphi 0, %s286
      %s304 = sphi 0, %s304
      %s306 = sphi 0, %s304
      %s307 = sphi 0, %s306
      %s321 = sphi 0, %s307
      %s327 = sphi 0, %s329
      %s330 = sphi 0, %s327
      %s331 = sphi 0, %s330
      %s347 = sphi 0, %s331
    $region4: #{tpu_custom_call.1} parent=1 // loop_header_branch
      %28 = sbr.rel (%p26) target = $region8
    $region5: #{tpu_custom_call.1} parent=1 // loop_body
      %s30 = ssub.s32 %s25, 1
      %s31 = ssub.s32 %s25, 2
      %s38 = sadd.s32 1, %s33
      %p39 = scmp.ge.s32.totalorder %s38, 3
      %s40 = scalar_select %p39, 0, %s38
      %s41 = sadd.s32 1, %s32
      %s42 = scalar_select %p39, %s41, %s32
      %p43 = scmp.ge.s32.totalorder %s42, 2
      %s44 = scalar_select %p43, 0, %s42
      %s45 = ssub.s32 %s32, %s44
      %s46 = ssub.s32 %s33, %s40
      %s47 = sor.u32 %s45, %s46
      %p48 = scmp.eq.s32.totalorder %s47, 0
      %s50 = sadd.s32 %s49, 1
      %s51 = scalar_select %p48, %s49, %s50
      %p54 = pneg %p48
      %p55 = scmp.eq.s32.totalorder %s25, 5
      %p56 = por %p54, %p55
      %p57 = scmp.ne.s32.totalorder %s49, %s52
      %p58 = scmp.eq.s32.totalorder %s25, 0
      %p59 = por %p57, %p58
      %p60 = scmp.ne.s32.totalorder %s49, %s52
      %p61 = scmp.eq.s32.totalorder %s30, 5
      %p62 = por %p60, %p61
      %p63 = scmp.ne.s32.totalorder %s52, %s53
      %p64 = scmp.eq.s32.totalorder %s30, 0
      %p65 = por %p63, %p64
      %p66 = scmp.ne.s32.totalorder %s52, %s53
      %p67 = scmp.eq.s32.totalorder %s31, 5
      %p68 = por %p66, %p67
      %p70 = scmp.ne.s32.totalorder %s53, %s69
      %p71 = scmp.eq.s32.totalorder %s31, 0
      %p72 = por %p70, %p71
      %s74 = sadd.s32 %s73, 1
      %p77 = scmp.eq.s32.totalorder %s25, 5
      %p78 = scmp.ne.s32.totalorder %s73, %s75
      %p79 = scmp.eq.s32.totalorder %s25, 0
      %p80 = por %p78, %p79
      %p81 = scmp.ne.s32.totalorder %s73, %s75
      %p82 = scmp.eq.s32.totalorder %s30, 5
      %p83 = por %p81, %p82
      %p84 = scmp.ne.s32.totalorder %s75, %s76
      %p85 = scmp.eq.s32.totalorder %s30, 0
      %p86 = por %p84, %p85
      %p87 = scmp.ne.s32.totalorder %s75, %s76
      %p88 = scmp.eq.s32.totalorder %s31, 5
      %p89 = por %p87, %p88
      %p91 = scmp.ne.s32.totalorder %s76, %s90
      %p92 = scmp.eq.s32.totalorder %s31, 0
      %p93 = por %p91, %p92
      %s95 = sadd.s32 %s94, 1
      %p98 = scmp.eq.s32.totalorder %s25, 5
      %p99 = scmp.ne.s32.totalorder %s94, %s96
      %p100 = scmp.eq.s32.totalorder %s25, 0
      %p101 = por %p99, %p100
      %p102 = scmp.ne.s32.totalorder %s94, %s96
      %p103 = scmp.eq.s32.totalorder %s30, 5
      %p104 = por %p102, %p103
      %p105 = scmp.ne.s32.totalorder %s96, %s97
      %p106 = scmp.eq.s32.totalorder %s30, 0
      %p107 = por %p105, %p106
      %p108 = scmp.ne.s32.totalorder %s96, %s97
      %p109 = scmp.eq.s32.totalorder %s31, 5
      %p110 = por %p108, %p109
      %p112 = scmp.ne.s32.totalorder %s97, %s111
      %p113 = scmp.eq.s32.totalorder %s31, 0
      %p114 = por %p112, %p113
      %s116 = sadd.s32 %s115, 1
      %p119 = scmp.eq.s32.totalorder %s25, 5
      %p120 = scmp.ne.s32.totalorder %s115, %s117
      %p121 = scmp.eq.s32.totalorder %s25, 0
      %p122 = por %p120, %p121
      %p123 = scmp.ne.s32.totalorder %s115, %s117
      %p124 = scmp.eq.s32.totalorder %s30, 5
      %p125 = por %p123, %p124
      %p126 = scmp.ne.s32.totalorder %s117, %s118
      %p127 = scmp.eq.s32.totalorder %s30, 0
      %p128 = por %p126, %p127
      %p129 = scmp.ne.s32.totalorder %s117, %s118
      %p130 = scmp.eq.s32.totalorder %s31, 5
      %p131 = por %p129, %p130
      %p133 = scmp.ne.s32.totalorder %s118, %s132
      %p134 = scmp.eq.s32.totalorder %s31, 0
      %p135 = por %p133, %p134
      %s137 = sadd.s32 %s136, 1
      %p140 = scmp.eq.s32.totalorder %s25, 5
      %p141 = scmp.ne.s32.totalorder %s136, %s138
      %p142 = scmp.eq.s32.totalorder %s25, 0
      %p143 = por %p141, %p142
      %p144 = scmp.ne.s32.totalorder %s136, %s138
      %p145 = scmp.eq.s32.totalorder %s30, 5
      %p146 = por %p144, %p145
      %p147 = scmp.ne.s32.totalorder %s138, %s139
      %p148 = scmp.eq.s32.totalorder %s30, 0
      %p149 = por %p147, %p148
      %p150 = scmp.ne.s32.totalorder %s138, %s139
      %p151 = scmp.eq.s32.totalorder %s31, 5
      %p152 = por %p150, %p151
      %p154 = scmp.ne.s32.totalorder %s139, %s153
      %p155 = scmp.eq.s32.totalorder %s31, 0
      %p156 = por %p154, %p155
      %s158 = sadd.s32 %s157, 1
      %p161 = scmp.eq.s32.totalorder %s25, 5
      %p162 = scmp.ne.s32.totalorder %s157, %s159
      %p163 = scmp.eq.s32.totalorder %s25, 0
      %p164 = por %p162, %p163
      %p165 = scmp.ne.s32.totalorder %s157, %s159
      %p166 = scmp.eq.s32.totalorder %s30, 5
      %p167 = por %p165, %p166
      %p168 = scmp.ne.s32.totalorder %s159, %s160
      %p169 = scmp.eq.s32.totalorder %s30, 0
      %p170 = por %p168, %p169
      %p171 = scmp.ne.s32.totalorder %s159, %s160
      %p172 = scmp.eq.s32.totalorder %s31, 5
      %p173 = por %p171, %p172
      %p175 = scmp.ne.s32.totalorder %s160, %s174
      %p176 = scmp.eq.s32.totalorder %s31, 0
      %p177 = por %p175, %p176
      %s179 = sadd.s32 %s178, 1
      %p182 = scmp.eq.s32.totalorder %s25, 5
      %p183 = scmp.ne.s32.totalorder %s178, %s180
      %p184 = scmp.eq.s32.totalorder %s25, 0
      %p185 = por %p183, %p184
      %p186 = scmp.ne.s32.totalorder %s178, %s180
      %p187 = scmp.eq.s32.totalorder %s30, 5
      %p188 = por %p186, %p187
      %p189 = scmp.ne.s32.totalorder %s180, %s181
      %p190 = scmp.eq.s32.totalorder %s30, 0
      %p191 = por %p189, %p190
      %p192 = scmp.ne.s32.totalorder %s180, %s181
      %p193 = scmp.eq.s32.totalorder %s31, 5
      %p194 = por %p192, %p193
      %p196 = scmp.ne.s32.totalorder %s181, %s195
      %p197 = scmp.eq.s32.totalorder %s31, 0
      %p198 = por %p196, %p197
      %s200 = sadd.s32 %s199, 1
      %p203 = scmp.eq.s32.totalorder %s25, 5
      %p204 = scmp.ne.s32.totalorder %s199, %s201
      %p205 = scmp.eq.s32.totalorder %s25, 0
      %p206 = por %p204, %p205
      %p207 = scmp.ne.s32.totalorder %s199, %s201
      %p208 = scmp.eq.s32.totalorder %s30, 5
      %p209 = por %p207, %p208
      %p210 = scmp.ne.s32.totalorder %s201, %s202
      %p211 = scmp.eq.s32.totalorder %s30, 0
      %p212 = por %p210, %p211
      %p213 = scmp.ne.s32.totalorder %s201, %s202
      %p214 = scmp.eq.s32.totalorder %s31, 5
      %p215 = por %p213, %p214
      %p217 = scmp.ne.s32.totalorder %s202, %s216
      %p218 = scmp.eq.s32.totalorder %s31, 0
      %p219 = por %p217, %p218
      %s221 = sadd.s32 %s220, 1
      %p224 = scmp.eq.s32.totalorder %s25, 5
      %p225 = scmp.ne.s32.totalorder %s220, %s222
      %p226 = scmp.eq.s32.totalorder %s25, 0
      %p227 = por %p225, %p226
      %p228 = scmp.ne.s32.totalorder %s220, %s222
      %p229 = scmp.eq.s32.totalorder %s30, 5
      %p230 = por %p228, %p229
      %p231 = scmp.ne.s32.totalorder %s222, %s223
      %p232 = scmp.eq.s32.totalorder %s30, 0
      %p233 = por %p231, %p232
      %p234 = scmp.ne.s32.totalorder %s222, %s223
      %p235 = scmp.eq.s32.totalorder %s31, 5
      %p236 = por %p234, %p235
      %p238 = scmp.ne.s32.totalorder %s223, %s237
      %p239 = scmp.eq.s32.totalorder %s31, 0
      %p240 = por %p238, %p239
      %s242 = sadd.s32 %s241, 1
      %p245 = scmp.eq.s32.totalorder %s25, 5
      %p246 = scmp.ne.s32.totalorder %s241, %s243
      %p247 = scmp.eq.s32.totalorder %s25, 0
      %p248 = por %p246, %p247
      %p249 = scmp.ne.s32.totalorder %s241, %s243
      %p250 = scmp.eq.s32.totalorder %s30, 5
      %p251 = por %p249, %p250
      %p252 = scmp.ne.s32.totalorder %s243, %s244
      %p253 = scmp.eq.s32.totalorder %s30, 0
      %p254 = por %p252, %p253
      %p255 = scmp.ne.s32.totalorder %s243, %s244
      %p256 = scmp.eq.s32.totalorder %s31, 5
      %p257 = por %p255, %p256
      %p259 = scmp.ne.s32.totalorder %s244, %s258
      %p260 = scmp.eq.s32.totalorder %s31, 0
      %p261 = por %p259, %p260
      %s263 = sadd.s32 %s262, 1
      %p266 = scmp.eq.s32.totalorder %s25, 5
      %p267 = scmp.ne.s32.totalorder %s262, %s264
      %p268 = scmp.eq.s32.totalorder %s25, 0
      %p269 = por %p267, %p268
      %p270 = scmp.ne.s32.totalorder %s262, %s264
      %p271 = scmp.eq.s32.totalorder %s30, 5
      %p272 = por %p270, %p271
      %p273 = scmp.ne.s32.totalorder %s264, %s265
      %p274 = scmp.eq.s32.totalorder %s30, 0
      %p275 = por %p273, %p274
      %p276 = scmp.ne.s32.totalorder %s264, %s265
      %p277 = scmp.eq.s32.totalorder %s31, 5
      %p278 = por %p276, %p277
      %p280 = scmp.ne.s32.totalorder %s265, %s279
      %p281 = scmp.eq.s32.totalorder %s31, 0
      %p282 = por %p280, %p281
      %s284 = sadd.s32 %s283, 1
      %p287 = scmp.eq.s32.totalorder %s25, 5
      %p288 = scmp.ne.s32.totalorder %s283, %s285
      %p289 = scmp.eq.s32.totalorder %s25, 0
      %p290 = por %p288, %p289
      %p291 = scmp.ne.s32.totalorder %s283, %s285
      %p292 = scmp.eq.s32.totalorder %s30, 5
      %p293 = por %p291, %p292
      %p294 = scmp.ne.s32.totalorder %s285, %s286
      %p295 = scmp.eq.s32.totalorder %s30, 0
      %p296 = por %p294, %p295
      %p297 = scmp.ne.s32.totalorder %s285, %s286
      %p298 = scmp.eq.s32.totalorder %s31, 5
      %p299 = por %p297, %p298
      %p301 = scmp.ne.s32.totalorder %s286, %s300
      %p302 = scmp.eq.s32.totalorder %s31, 0
      %p303 = por %p301, %p302
      %s305 = sadd.s32 %s304, 1
      %p308 = scmp.eq.s32.totalorder %s25, 5
      %p309 = scmp.ne.s32.totalorder %s304, %s306
      %p310 = scmp.eq.s32.totalorder %s25, 0
      %p311 = por %p309, %p310
      %p312 = scmp.ne.s32.totalorder %s304, %s306
      %p313 = scmp.eq.s32.totalorder %s30, 5
      %p314 = por %p312, %p313
      %p315 = scmp.ne.s32.totalorder %s306, %s307
      %p316 = scmp.eq.s32.totalorder %s30, 0
      %p317 = por %p315, %p316
      %p318 = scmp.ne.s32.totalorder %s306, %s307
      %p319 = scmp.eq.s32.totalorder %s31, 5
      %p320 = por %p318, %p319
      %p322 = scmp.ne.s32.totalorder %s307, %s321
      %p323 = scmp.eq.s32.totalorder %s31, 0
      %p324 = por %p322, %p323
      %s325 = ssub.s32 %s32, %s44
      %p326 = scmp.eq.s32.totalorder %s325, 0
      %s328 = sadd.s32 %s327, 1
      %s329 = scalar_select %p326, %s327, %s328
      %p332 = pneg %p326
      %p333 = scmp.eq.s32.totalorder %s25, 5
      %p334 = por %p332, %p333
      %p335 = scmp.ne.s32.totalorder %s327, %s330
      %p336 = scmp.eq.s32.totalorder %s25, 0
      %p337 = por %p335, %p336
      %p338 = scmp.ne.s32.totalorder %s327, %s330
      %p339 = scmp.eq.s32.totalorder %s30, 5
      %p340 = por %p338, %p339
      %p341 = scmp.ne.s32.totalorder %s330, %s331
      %p342 = scmp.eq.s32.totalorder %s30, 0
      %p343 = por %p341, %p342
      %p344 = scmp.ne.s32.totalorder %s330, %s331
      %p345 = scmp.eq.s32.totalorder %s31, 5
      %p346 = por %p344, %p345
      %p348 = scmp.ne.s32.totalorder %s331, %s347
      %p349 = scmp.eq.s32.totalorder %s31, 0
      %p350 = por %p348, %p349
      %p351 = scmp.le.s32.totalorder 1, %s25
      %p352 = scmp.lt.s32.totalorder %s25, 7
      %p353 = pnand %p351, %p352
      %p354 = pneg %p353
      // Predicated region
      $region9: #{tpu_custom_call.1} parent=5 // pred_check
        _
      $region10: #{tpu_custom_call.1} parent=5 // pred_check_branch
        %356 = sbr.rel (%p353) target = $region12
      $region11: #{tpu_custom_call.1} parent=5 // pred_region
        %s357 = ssub.s32 %s25, 1
        // Predicated region
        $region13: #{tpu_custom_call.1} parent=11 // pred_check
          %p358 = pneg %p86
        $region14: #{tpu_custom_call.1} parent=11 // pred_check_branch
          %360 = sbr.rel (%p358) target = $region16
        $region15: #{tpu_custom_call.1} parent=11 // pred_region
          _
        $region16: #{tpu_custom_call.1} parent=11 // pred_fallthru
          _
        // Predicated region
        $region17: #{tpu_custom_call.1} parent=11 // pred_check
          %p361 = pneg %p107
        $region18: #{tpu_custom_call.1} parent=11 // pred_check_branch
          %363 = sbr.rel (%p361) target = $region20
        $region19: #{tpu_custom_call.1} parent=11 // pred_region
          _
        $region20: #{tpu_custom_call.1} parent=11 // pred_fallthru
          _
        // Predicated region
        $region21: #{tpu_custom_call.1} parent=11 // pred_check
          %p364 = pneg %p128
        $region22: #{tpu_custom_call.1} parent=11 // pred_check_branch
          %366 = sbr.rel (%p364) target = $region24
        $region23: #{tpu_custom_call.1} parent=11 // pred_region
          _
        $region24: #{tpu_custom_call.1} parent=11 // pred_fallthru
          _
        // Predicated region
        $region25: #{tpu_custom_call.1} parent=11 // pred_check
          %p367 = pneg %p149
        $region26: #{tpu_custom_call.1} parent=11 // pred_check_branch
          %369 = sbr.rel (%p367) target = $region28
        $region27: #{tpu_custom_call.1} parent=11 // pred_region
          _
        $region28: #{tpu_custom_call.1} parent=11 // pred_fallthru
          _
        // Predicated region
        $region29: #{tpu_custom_call.1} parent=11 // pred_check
          %p370 = pneg %p170
        $region30: #{tpu_custom_call.1} parent=11 // pred_check_branch
          %372 = sbr.rel (%p370) target = $region32
        $region31: #{tpu_custom_call.1} parent=11 // pred_region
          %s374 = ssub.s32 8192, 8192
          %375 = vsyncadd [#allocation4], %s374
          %s376 = sshll.u32 [#allocation3], 4
          %s377 = int_to_ptr.vmem [resolvable:$true] %s376
          %382 = dma.hbm_to_vmem [thread:$0]  %s5, 8192, %s377, [#allocation4], 512, 512, 32
        $region32: #{tpu_custom_call.1} parent=11 // pred_fallthru
          _
        // Predicated region
        $region33: #{tpu_custom_call.1} parent=11 // pred_check
          %p383 = pneg %p191
        $region34: #{tpu_custom_call.1} parent=11 // pred_check_branch
          %385 = sbr.rel (%p383) target = $region36
        $region35: #{tpu_custom_call.1} parent=11 // pred_region
          _
        $region36: #{tpu_custom_call.1} parent=11 // pred_fallthru
          _
        // Predicated region
        $region37: #{tpu_custom_call.1} parent=11 // pred_check
          %p386 = pneg %p212
        $region38: #{tpu_custom_call.1} parent=11 // pred_check_branch
          %388 = sbr.rel (%p386) target = $region40
        $region39: #{tpu_custom_call.1} parent=11 // pred_region
          %s390 = ssub.s32 32768, 32768
          %391 = vsyncadd [#allocation7], %s390
          %s392 = sshll.u32 [#allocation6], 4
          %s393 = int_to_ptr.vmem [resolvable:$true] %s392
          %398 = dma.hbm_to_vmem [thread:$0]  %s7, 32768, %s393, [#allocation7], 256, 256, 16
        $region40: #{tpu_custom_call.1} parent=11 // pred_fallthru
          _
        // Predicated region
        $region41: #{tpu_custom_call.1} parent=11 // pred_check
          %p399 = pneg %p233
        $region42: #{tpu_custom_call.1} parent=11 // pred_check_branch
          %401 = sbr.rel (%p399) target = $region44
        $region43: #{tpu_custom_call.1} parent=11 // pred_region
          _
        $region44: #{tpu_custom_call.1} parent=11 // pred_fallthru
          _
        // Predicated region
        $region45: #{tpu_custom_call.1} parent=11 // pred_check
          %p402 = pneg %p254
        $region46: #{tpu_custom_call.1} parent=11 // pred_check_branch
          %404 = sbr.rel (%p402) target = $region48
        $region47: #{tpu_custom_call.1} parent=11 // pred_region
          %s406 = ssub.s32 8192, 8192
          %407 = vsyncadd [#allocation7], %s406
          %s408 = sshll.u32 [#allocation8], 4
          %s409 = int_to_ptr.vmem [resolvable:$true] %s408
          %414 = dma.hbm_to_vmem [thread:$0]  %s9, 8192, %s409, [#allocation7], 128, 128, 8
        $region48: #{tpu_custom_call.1} parent=11 // pred_fallthru
          _
        // Predicated region
        $region49: #{tpu_custom_call.1} parent=11 // pred_check
          %p415 = pneg %p275
        $region50: #{tpu_custom_call.1} parent=11 // pred_check_branch
          %417 = sbr.rel (%p415) target = $region52
        $region51: #{tpu_custom_call.1} parent=11 // pred_region
          _
        $region52: #{tpu_custom_call.1} parent=11 // pred_fallthru
          _
        // Predicated region
        $region53: #{tpu_custom_call.1} parent=11 // pred_check
          %p418 = pneg %p296
        $region54: #{tpu_custom_call.1} parent=11 // pred_check_branch
          %420 = sbr.rel (%p418) target = $region56
        $region55: #{tpu_custom_call.1} parent=11 // pred_region
          %s422 = ssub.s32 2048, 2048
          %423 = vsyncadd [#allocation10], %s422
          %s424 = sshll.u32 [#allocation9], 4
          %s425 = int_to_ptr.vmem [resolvable:$true] %s424
          %430 = dma.hbm_to_vmem [thread:$0]  %s11, 2048, %s425, [#allocation10], 64, 64, 4
        $region56: #{tpu_custom_call.1} parent=11 // pred_fallthru
          _
        // Predicated region
        $region57: #{tpu_custom_call.1} parent=11 // pred_check
          %p431 = pneg %p317
        $region58: #{tpu_custom_call.1} parent=11 // pred_check_branch
          %433 = sbr.rel (%p431) target = $region60
        $region59: #{tpu_custom_call.1} parent=11 // pred_region
          _
        $region60: #{tpu_custom_call.1} parent=11 // pred_fallthru
          _
      $region12: #{tpu_custom_call.1} parent=5 // pred_fallthru
        _
      %p434 = scmp.lt.s32.totalorder %s25, 6
      // Predicated region
      $region61: #{tpu_custom_call.1} parent=5 // pred_check
        %p435 = pneg %p434
      $region62: #{tpu_custom_call.1} parent=5 // pred_check_branch
        %437 = sbr.rel (%p435) target = $region64
      $region63: #{tpu_custom_call.1} parent=5 // pred_region
        // Predicated region
        $region65: #{tpu_custom_call.1} parent=63 // pred_check
          %p438 = pneg %p59
        $region66: #{tpu_custom_call.1} parent=63 // pred_check_branch
          %440 = sbr.rel (%p438) target = $region68
        $region67: #{tpu_custom_call.1} parent=63 // pred_region
          %s441 = smul.u32 2, %s33
          %p442 = scmp.lt.s32.totalorder %s32, 1
          %s443 = scalar_select %p442, %s32, 1
          %p444 = scmp.lt.s32.totalorder %s441, 5
          %s445 = scalar_select %p444, %s441, 5
          %s446 = smul.addr %s443, 6
          %s447 = sadd.s32 %s445, %s446
          %s448 = smul.addr %s447, 4
          %s449 = scalar_lea.vmem %s0, %s448
          %s450 = smul.u32 2, %s33
        $region68: #{tpu_custom_call.1} parent=63 // pred_fallthru
          _
      $region64: #{tpu_custom_call.1} parent=5 // pred_fallthru
        _
      %p451 = scmp.le.s32.totalorder 1, %s25
      %p452 = scmp.lt.s32.totalorder %s25, 7
      %p453 = pnand %p451, %p452
      %p454 = pneg %p453
      // Predicated region
      $region69: #{tpu_custom_call.1} parent=5 // pred_check
        _
      $region70: #{tpu_custom_call.1} parent=5 // pred_check_branch
        %456 = sbr.rel (%p453) target = $region72
      $region71: #{tpu_custom_call.1} parent=5 // pred_region
        %s457 = ssub.s32 %s25, 1
        // Predicated region
        $region73: #{tpu_custom_call.1} parent=71 // pred_check
          %p458 = pneg %p170
        $region74: #{tpu_custom_call.1} parent=71 // pred_check_branch
          %460 = sbr.rel (%p458) target = $region76
        $region75: #{tpu_custom_call.1} parent=71 // pred_region
          %461 = dma.done [#allocation4], 8192
        $region76: #{tpu_custom_call.1} parent=71 // pred_fallthru
          _
        // Predicated region
        $region77: #{tpu_custom_call.1} parent=71 // pred_check
          %p462 = pneg %p212
        $region78: #{tpu_custom_call.1} parent=71 // pred_check_branch
          %464 = sbr.rel (%p462) target = $region80
        $region79: #{tpu_custom_call.1} parent=71 // pred_region
          %465 = dma.done [#allocation7], 32768
        $region80: #{tpu_custom_call.1} parent=71 // pred_fallthru
          _
        // Predicated region
        $region81: #{tpu_custom_call.1} parent=71 // pred_check
          %p466 = pneg %p254
        $region82: #{tpu_custom_call.1} parent=71 // pred_check_branch
          %468 = sbr.rel (%p466) target = $region84
        $region83: #{tpu_custom_call.1} parent=71 // pred_region
          %469 = dma.done [#allocation7], 8192
        $region84: #{tpu_custom_call.1} parent=71 // pred_fallthru
          _
        // Predicated region
        $region85: #{tpu_custom_call.1} parent=71 // pred_check
          %p470 = pneg %p296
        $region86: #{tpu_custom_call.1} parent=71 // pred_check_branch
          %472 = sbr.rel (%p470) target = $region88
        $region87: #{tpu_custom_call.1} parent=71 // pred_region
          %473 = dma.done [#allocation10], 2048
        $region88: #{tpu_custom_call.1} parent=71 // pred_fallthru
          _
        %s474 = smul.u32 2, %s35
        %p475 = scmp.lt.s32.totalorder %s34, 1
        %s476 = scalar_select %p475, %s34, 1
        %p477 = scmp.lt.s32.totalorder %s474, 5
        %s478 = scalar_select %p477, %s474, 5
        %s479 = smul.addr %s476, 6
        %s480 = sadd.s32 %s478, %s479
        %s481 = smul.addr %s480, 4
        %s482 = scalar_lea.vmem %s0, %s481
        %p483 = pneg %p65
        %p484 = pneg %p62
        %p485 = pneg %p86
        %p486 = pneg %p83
        %p487 = pneg %p107
        %p488 = pneg %p104
        %p489 = pneg %p128
        %p490 = pneg %p125
        %p491 = pneg %p149
        %p492 = pneg %p146
        %p493 = pneg %p170
        %p494 = pneg %p167
        %p495 = pneg %p191
        %p496 = pneg %p188
        %p497 = pneg %p212
        %p498 = pneg %p209
        %p499 = pneg %p233
        %p500 = pneg %p230
        %p501 = pneg %p254
        %p502 = pneg %p251
        %p503 = pneg %p275
        %p504 = pneg %p272
        %p505 = pneg %p296
        %p506 = pneg %p293
        %p507 = pneg %p317
        %p508 = pneg %p314
        %p509 = pneg %p343
        %p510 = pneg %p340
        %s511 = sand.u32 %s330, 1
        %s512 = scalar_lea.sflag [#allocation5], %s511
        %s513 = sand.u32 %s330, 1
        %s514 = scalar_lea.vmem [#allocation11], %s513
        %s515 = smul.u32 2, %s35
        %p516 = scmp.lt.s32.totalorder %s34, 1
        %s517 = scalar_select %p516, %s34, 1
        %p518 = scmp.lt.s32.totalorder %s515, 5
        %s519 = scalar_select %p518, %s515, 5
        %s520 = smul.addr %s517, 6
        %s521 = sadd.s32 %s519, %s520
        %s522 = smul.addr %s521, 4
        %s523 = scalar_lea.vmem %s0, %s522
        %s524 = smul.u32 2, %s35
        %p526 = scmp.eq.s32.totalorder %s35, 0
        // Predicated region
        $region89: #{tpu_custom_call.1} parent=71 // pred_check
          %p527 = pneg %p526
        $region90: #{tpu_custom_call.1} parent=71 // pred_check_branch
          %529 = sbr.rel (%p527) target = $region92
        $region91: #{tpu_custom_call.1} parent=71 // pred_region
          %530 = vst [vmem:[#allocation2] sm:$0xff] -inf
          %531 = vst [vmem:[#allocation2 + $0x8] sm:$0xff] -inf
          %532 = vst [vmem:[#allocation2 + $0x10] sm:$0xff] -inf
          %533 = vst [vmem:[#allocation2 + $0x18] sm:$0xff] -inf
          %534 = vst [vmem:[#allocation2 + $0x20] sm:$0xff] -inf
          %535 = vst [vmem:[#allocation2 + $0x28] sm:$0xff] -inf
          %536 = vst [vmem:[#allocation2 + $0x30] sm:$0xff] -inf
          %537 = vst [vmem:[#allocation2 + $0x38] sm:$0xff] -inf
        $region92: #{tpu_custom_call.1} parent=71 // pred_fallthru
          _
        %v538 = vld [vmem:[%s523] sm:$0xf]
        %v539 = vld [vmem:[%s523 + $0x4] sm:$0xf]
        %v540 = vld [vmem:[%s1] sm:$0xf]
        %v541 = vld [vmem:[%s1 + $0x4] sm:$0x3]
        %v542 = vld [vmem:[%s2] sm:$0x1]
        %v544 = vlaneseq
        %v545 = vshrl.u32 %v544, 7
        %v546 = vsub.s32 0, %v545
        %v547 = vrot.slane %v542, %v546
        %v551 = vunpack.c.l.b16 %v538
        %v552 = vunpack.c.l.b16 %v539
        %v553 = vpack.c.b16 %v552, %v551
        %v556 = vunpack.c.l.b16 %v540
        %v557 = vunpack.c.l.b16 %v541
        %v558 = vpack.c.b16 %v557, %v556
        %vm559 = vcmask 97280
        %v561 = vsel %vm559, %v553, 0
        %vm563 = vcmask 1045504
        %v565 = vsel %vm563, %v558, 0
        %567 = vmatprep.subr.bf16.mxu0 0
        %568 = vmatpush1.bf16.msra.mxu0 %v565
        %569 = vmatprep.subr.bf16.mxu0 0
        %570 = vmatpush1.bf16.msra.mxu0 0
        %571 = vmatprep.subr.bf16.mxu0 0
        %572 = vmatpush1.bf16.msra.mxu0 0
        %573 = vmatprep.subr.bf16.mxu0 0
        %574 = vmatpush1.bf16.msra.mxu0 0
        %575 = vmatprep.subr.bf16.mxu0 0
        %576 = vmatpush1.bf16.msra.mxu0 0
        %577 = vmatprep.subr.bf16.mxu0 0
        %578 = vmatpush1.bf16.msra.mxu0 0
        %579 = vmatprep.subr.bf16.mxu0 0
        %580 = vmatpush1.bf16.msra.mxu0 0
        %581 = vmatprep.subr.bf16.mxu0 0
        %582 = vmatpush1.bf16.msra.mxu0 0
        %583 = vmatprep.subr.bf16.mxu0 0
        %584 = vmatpush1.bf16.msra.mxu0 0
        %585 = vmatprep.subr.bf16.mxu0 0
        %586 = vmatpush1.bf16.msra.mxu0 0
        %587 = vmatprep.subr.bf16.mxu0 0
        %588 = vmatpush1.bf16.msra.mxu0 0
        %589 = vmatprep.subr.bf16.mxu0 0
        %590 = vmatpush1.bf16.msra.mxu0 0
        %591 = vmatprep.subr.bf16.mxu0 0
        %592 = vmatpush1.bf16.msra.mxu0 0
        %593 = vmatprep.subr.bf16.mxu0 0
        %594 = vmatpush1.bf16.msra.mxu0 0
        %595 = vmatprep.subr.bf16.mxu0 0
        %596 = vmatpush1.bf16.msra.mxu0 0
        %597 = vmatprep.subr.bf16.mxu0 0
        %598 = vmatpush1.bf16.msra.mxu0 0
        %599 = vmatprep.mubr.bf16.mxu0 0
        %600 = vmatmul.mubr.bf16.gmra.mrb[0].mxu0 %v561
        %v601 = vpop.f32.mrb[0].mxu0
        %v602 = vadd.f32 %v547, %v601
        %v603 = vpop.f32.mrb[0].mxu0
        %v604 = vpop.f32.mrb[0].mxu0
        %v605 = vadd.f32 %v547, %v604
        %v606 = vpop.f32.mrb[0].mxu0
        %607 = vdwg.mxu0
        %v608 = vmax.f32 %v602, 0.0
        %v609 = vmax.f32 %v605, 0.0
        %v610 = vpack.c.bf16 %v609, %v608
        %v611 = vld [vmem:[%s3] sm:$0xf]
        %v612 = vld [vmem:[%s3 + $0x4] sm:$0xf]
        %v613 = vld [vmem:[%s3 + $0x8] sm:$0xf]
        %v614 = vld [vmem:[%s3 + $0xc] sm:$0xf]
        %v615 = vld [vmem:[%s3 + $0x10] sm:$0xf]
        %v616 = vld [vmem:[%s3 + $0x14] sm:$0xf]
        %v617 = vld [vmem:[%s3 + $0x18] sm:$0xf]
        %v618 = vld [vmem:[%s3 + $0x1c] sm:$0xf]
        %v619 = vld [vmem:[%s4] sm:$0x1]
        %v621 = vlaneseq
        %v622 = vshrl.u32 %v621, 7
        %v623 = vsub.s32 0, %v622
        %v624 = vrot.slane %v619, %v623
        %v634 = vunpack.c.l.b16 %v611
        %v635 = vunpack.c.l.b16 %v612
        %v636 = vunpack.c.l.b16 %v613
        %v637 = vunpack.c.l.b16 %v614
        %v638 = vunpack.c.l.b16 %v615
        %v639 = vunpack.c.l.b16 %v616
        %v640 = vunpack.c.l.b16 %v617
        %v641 = vunpack.c.l.b16 %v618
        %v642 = vpack.c.b16 %v635, %v634
        %v643 = vpack.c.b16 %v637, %v636
        %v644 = vpack.c.b16 %v639, %v638
        %v645 = vpack.c.b16 %v641, %v640
        %vm650 = vcmask 523264
        %v652 = vsel %vm650, %v610, 0
        %654 = vmatprep.subr.bf16.mxu0 0
        %655 = vmatpush1.bf16.msra.mxu0 %v642
        %656 = vmatprep.subr.bf16.mxu0 0
        %657 = vmatpush1.bf16.msra.mxu0 %v643
        %658 = vmatprep.subr.bf16.mxu0 0
        %659 = vmatpush1.bf16.msra.mxu0 %v644
        %660 = vmatprep.subr.bf16.mxu0 0
        %661 = vmatpush1.bf16.msra.mxu0 %v645
        %662 = vmatprep.subr.bf16.mxu0 0
        %663 = vmatpush1.bf16.msra.mxu0 0
        %664 = vmatprep.subr.bf16.mxu0 0
        %665 = vmatpush1.bf16.msra.mxu0 0
        %666 = vmatprep.subr.bf16.mxu0 0
        %667 = vmatpush1.bf16.msra.mxu0 0
        %668 = vmatprep.subr.bf16.mxu0 0
        %669 = vmatpush1.bf16.msra.mxu0 0
        %670 = vmatprep.subr.bf16.mxu0 0
        %671 = vmatpush1.bf16.msra.mxu0 0
        %672 = vmatprep.subr.bf16.mxu0 0
        %673 = vmatpush1.bf16.msra.mxu0 0
        %674 = vmatprep.subr.bf16.mxu0 0
        %675 = vmatpush1.bf16.msra.mxu0 0
        %676 = vmatprep.subr.bf16.mxu0 0
        %677 = vmatpush1.bf16.msra.mxu0 0
        %678 = vmatprep.subr.bf16.mxu0 0
        %679 = vmatpush1.bf16.msra.mxu0 0
        %680 = vmatprep.subr.bf16.mxu0 0
        %681 = vmatpush1.bf16.msra.mxu0 0
        %682 = vmatprep.subr.bf16.mxu0 0
        %683 = vmatpush1.bf16.msra.mxu0 0
        %684 = vmatprep.subr.bf16.mxu0 0
        %685 = vmatpush1.bf16.msra.mxu0 0
        %686 = vmatprep.mubr.bf16.mxu0 0
        %687 = vmatmul.mubr.bf16.gmra.mrb[0].mxu0 %v652
        %v688 = vpop.f32.mrb[0].mxu0
        %v689 = vadd.f32 %v624, %v688
        %v690 = vpop.f32.mrb[0].mxu0
        %v691 = vpop.f32.mrb[0].mxu0
        %v692 = vadd.f32 %v624, %v691
        %v693 = vpop.f32.mrb[0].mxu0
        %694 = vdwg.mxu0
        %v695 = vmax.f32 %v689, 0.0
        %v696 = vmax.f32 %v692, 0.0
        %v697 = vpack.c.bf16 %v696, %v695
        %v698 = vld [vmem:[#allocation3] sm:$0xff]
        %v699 = vld [vmem:[#allocation3 + $0x20] sm:$0xff]
        %v700 = vld [vmem:[#allocation3 + $0x40] sm:$0xff]
        %v701 = vld [vmem:[#allocation3 + $0x60] sm:$0xff]
        %v702 = vld [vmem:[#allocation3 + $0x80] sm:$0xff]
        %v703 = vld [vmem:[#allocation3 + $0xa0] sm:$0xff]
        %v704 = vld [vmem:[#allocation3 + $0xc0] sm:$0xff]
        %v705 = vld [vmem:[#allocation3 + $0xe0] sm:$0xff]
        %v706 = vld [vmem:[#allocation3 + $0x100] sm:$0xff]
        %v707 = vld [vmem:[#allocation3 + $0x120] sm:$0xff]
        %v708 = vld [vmem:[#allocation3 + $0x140] sm:$0xff]
        %v709 = vld [vmem:[#allocation3 + $0x160] sm:$0xff]
        %v710 = vld [vmem:[#allocation3 + $0x180] sm:$0xff]
        %v711 = vld [vmem:[#allocation3 + $0x1a0] sm:$0xff]
        %v712 = vld [vmem:[#allocation3 + $0x1c0] sm:$0xff]
        %v713 = vld [vmem:[#allocation3 + $0x1e0] sm:$0xff]
        %v730 = vunpack.c.l.b16 %v698
        %v731 = vunpack.c.h.b16 %v698
        %v732 = vunpack.c.l.b16 %v699
        %v733 = vunpack.c.h.b16 %v699
        %v734 = vunpack.c.l.b16 %v700
        %v735 = vunpack.c.h.b16 %v700
        %v736 = vunpack.c.l.b16 %v701
        %v737 = vunpack.c.h.b16 %v701
        %v738 = vunpack.c.l.b16 %v702
        %v739 = vunpack.c.h.b16 %v702
        %v740 = vunpack.c.l.b16 %v703
        %v741 = vunpack.c.h.b16 %v703
        %v742 = vunpack.c.l.b16 %v704
        %v743 = vunpack.c.h.b16 %v704
        %v744 = vunpack.c.l.b16 %v705
        %v745 = vunpack.c.h.b16 %v705
        %v746 = vunpack.c.l.b16 %v706
        %v747 = vunpack.c.h.b16 %v706
        %v748 = vunpack.c.l.b16 %v707
        %v749 = vunpack.c.h.b16 %v707
        %v750 = vunpack.c.l.b16 %v708
        %v751 = vunpack.c.h.b16 %v708
        %v752 = vunpack.c.l.b16 %v709
        %v753 = vunpack.c.h.b16 %v709
        %v754 = vunpack.c.l.b16 %v710
        %v755 = vunpack.c.h.b16 %v710
        %v756 = vunpack.c.l.b16 %v711
        %v757 = vunpack.c.h.b16 %v711
        %v758 = vunpack.c.l.b16 %v712
        %v759 = vunpack.c.h.b16 %v712
        %v760 = vunpack.c.l.b16 %v713
        %v761 = vunpack.c.h.b16 %v713
        %v762 = vpack.c.b16 %v732, %v730
        %v763 = vpack.c.b16 %v733, %v731
        %v764 = vpack.c.b16 %v736, %v734
        %v765 = vpack.c.b16 %v737, %v735
        %v766 = vpack.c.b16 %v740, %v738
        %v767 = vpack.c.b16 %v741, %v739
        %v768 = vpack.c.b16 %v744, %v742
        %v769 = vpack.c.b16 %v745, %v743
        %v770 = vpack.c.b16 %v748, %v746
        %v771 = vpack.c.b16 %v749, %v747
        %v772 = vpack.c.b16 %v752, %v750
        %v773 = vpack.c.b16 %v753, %v751
        %v774 = vpack.c.b16 %v756, %v754
        %v775 = vpack.c.b16 %v757, %v755
        %v776 = vpack.c.b16 %v760, %v758
        %v777 = vpack.c.b16 %v761, %v759
        %794 = vmatprep.subr.bf16.mxu0 %v763
        %795 = vmatpush1.bf16.msra.mxu0 %v762
        %796 = vmatprep.subr.bf16.mxu0 %v765
        %797 = vmatpush1.bf16.msra.mxu0 %v764
        %798 = vmatprep.subr.bf16.mxu0 %v767
        %799 = vmatpush1.bf16.msra.mxu0 %v766
        %800 = vmatprep.subr.bf16.mxu0 %v769
        %801 = vmatpush1.bf16.msra.mxu0 %v768
        %802 = vmatprep.subr.bf16.mxu0 %v771
        %803 = vmatpush1.bf16.msra.mxu0 %v770
        %804 = vmatprep.subr.bf16.mxu0 %v773
        %805 = vmatpush1.bf16.msra.mxu0 %v772
        %806 = vmatprep.subr.bf16.mxu0 %v775
        %807 = vmatpush1.bf16.msra.mxu0 %v774
        %808 = vmatprep.subr.bf16.mxu0 %v777
        %809 = vmatpush1.bf16.msra.mxu0 %v776
        %810 = vmatprep.subr.bf16.mxu0 0
        %811 = vmatpush1.bf16.msra.mxu0 0
        %812 = vmatprep.subr.bf16.mxu0 0
        %813 = vmatpush1.bf16.msra.mxu0 0
        %814 = vmatprep.subr.bf16.mxu0 0
        %815 = vmatpush1.bf16.msra.mxu0 0
        %816 = vmatprep.subr.bf16.mxu0 0
        %817 = vmatpush1.bf16.msra.mxu0 0
        %818 = vmatprep.subr.bf16.mxu0 0
        %819 = vmatpush1.bf16.msra.mxu0 0
        %820 = vmatprep.subr.bf16.mxu0 0
        %821 = vmatpush1.bf16.msra.mxu0 0
        %822 = vmatprep.subr.bf16.mxu0 0
        %823 = vmatpush1.bf16.msra.mxu0 0
        %824 = vmatprep.subr.bf16.mxu0 0
        %825 = vmatpush1.bf16.msra.mxu0 0
        %826 = vmatprep.mubr.bf16.mxu0 0
        %827 = vmatmul.mubr.bf16.gmra.mrb[0].mxu0 %v697
        %v828 = vpop.f32.mrb[0].mxu0
        %v829 = vadd.f32 0.0, %v828
        %v830 = vpop.f32.mrb[0].mxu0
        %v831 = vadd.f32 0.0, %v830
        %v832 = vpop.f32.mrb[0].mxu0
        %v833 = vadd.f32 0.0, %v832
        %v834 = vpop.f32.mrb[0].mxu0
        %v835 = vadd.f32 0.0, %v834
        %836 = vdwg.mxu0
        %v837 = vmax.f32 %v829, %v833
        %v838 = vmax.f32 %v831, %v835
        %v839 = vld [vmem:[#allocation2] sm:$0xff]
        %v840 = vld [vmem:[#allocation2 + $0x8] sm:$0xff]
        %v841 = vmax.f32 %v839, %v837
        %v842 = vmax.f32 %v840, %v838
        %843 = vst [vmem:[#allocation2] sm:$0xff] %v841
        %844 = vst [vmem:[#allocation2 + $0x8] sm:$0xff] %v842
        %v845 = vld [vmem:[#allocation3 + $0x8] sm:$0xff]
        %v846 = vld [vmem:[#allocation3 + $0x28] sm:$0xff]
        %v847 = vld [vmem:[#allocation3 + $0x48] sm:$0xff]
        %v848 = vld [vmem:[#allocation3 + $0x68] sm:$0xff]
        %v849 = vld [vmem:[#allocation3 + $0x88] sm:$0xff]
        %v850 = vld [vmem:[#allocation3 + $0xa8] sm:$0xff]
        %v851 = vld [vmem:[#allocation3 + $0xc8] sm:$0xff]
        %v852 = vld [vmem:[#allocation3 + $0xe8] sm:$0xff]
        %v853 = vld [vmem:[#allocation3 + $0x108] sm:$0xff]
        %v854 = vld [vmem:[#allocation3 + $0x128] sm:$0xff]
        %v855 = vld [vmem:[#allocation3 + $0x148] sm:$0xff]
        %v856 = vld [vmem:[#allocation3 + $0x168] sm:$0xff]
        %v857 = vld [vmem:[#allocation3 + $0x188] sm:$0xff]
        %v858 = vld [vmem:[#allocation3 + $0x1a8] sm:$0xff]
        %v859 = vld [vmem:[#allocation3 + $0x1c8] sm:$0xff]
        %v860 = vld [vmem:[#allocation3 + $0x1e8] sm:$0xff]
        %v877 = vunpack.c.l.b16 %v845
        %v878 = vunpack.c.h.b16 %v845
        %v879 = vunpack.c.l.b16 %v846
        %v880 = vunpack.c.h.b16 %v846
        %v881 = vunpack.c.l.b16 %v847
        %v882 = vunpack.c.h.b16 %v847
        %v883 = vunpack.c.l.b16 %v848
        %v884 = vunpack.c.h.b16 %v848
        %v885 = vunpack.c.l.b16 %v849
        %v886 = vunpack.c.h.b16 %v849
        %v887 = vunpack.c.l.b16 %v850
        %v888 = vunpack.c.h.b16 %v850
        %v889 = vunpack.c.l.b16 %v851
        %v890 = vunpack.c.h.b16 %v851
        %v891 = vunpack.c.l.b16 %v852
        %v892 = vunpack.c.h.b16 %v852
        %v893 = vunpack.c.l.b16 %v853
        %v894 = vunpack.c.h.b16 %v853
        %v895 = vunpack.c.l.b16 %v854
        %v896 = vunpack.c.h.b16 %v854
        %v897 = vunpack.c.l.b16 %v855
        %v898 = vunpack.c.h.b16 %v855
        %v899 = vunpack.c.l.b16 %v856
        %v900 = vunpack.c.h.b16 %v856
        %v901 = vunpack.c.l.b16 %v857
        %v902 = vunpack.c.h.b16 %v857
        %v903 = vunpack.c.l.b16 %v858
        %v904 = vunpack.c.h.b16 %v858
        %v905 = vunpack.c.l.b16 %v859
        %v906 = vunpack.c.h.b16 %v859
        %v907 = vunpack.c.l.b16 %v860
        %v908 = vunpack.c.h.b16 %v860
        %v909 = vpack.c.b16 %v879, %v877
        %v910 = vpack.c.b16 %v880, %v878
        %v911 = vpack.c.b16 %v883, %v881
        %v912 = vpack.c.b16 %v884, %v882
        %v913 = vpack.c.b16 %v887, %v885
        %v914 = vpack.c.b16 %v888, %v886
        %v915 = vpack.c.b16 %v891, %v889
        %v916 = vpack.c.b16 %v892, %v890
        %v917 = vpack.c.b16 %v895, %v893
        %v918 = vpack.c.b16 %v896, %v894
        %v919 = vpack.c.b16 %v899, %v897
        %v920 = vpack.c.b16 %v900, %v898
        %v921 = vpack.c.b16 %v903, %v901
        %v922 = vpack.c.b16 %v904, %v902
        %v923 = vpack.c.b16 %v907, %v905
        %v924 = vpack.c.b16 %v908, %v906
        %941 = vmatprep.subr.bf16.mxu0 %v910
        %942 = vmatpush1.bf16.msra.mxu0 %v909
        %943 = vmatprep.subr.bf16.mxu0 %v912
        %944 = vmatpush1.bf16.msra.mxu0 %v911
        %945 = vmatprep.subr.bf16.mxu0 %v914
        %946 = vmatpush1.bf16.msra.mxu0 %v913
        %947 = vmatprep.subr.bf16.mxu0 %v916
        %948 = vmatpush1.bf16.msra.mxu0 %v915
        %949 = vmatprep.subr.bf16.mxu0 %v918
        %950 = vmatpush1.bf16.msra.mxu0 %v917
        %951 = vmatprep.subr.bf16.mxu0 %v920
        %952 = vmatpush1.bf16.msra.mxu0 %v919
        %953 = vmatprep.subr.bf16.mxu0 %v922
        %954 = vmatpush1.bf16.msra.mxu0 %v921
        %955 = vmatprep.subr.bf16.mxu0 %v924
        %956 = vmatpush1.bf16.msra.mxu0 %v923
        %957 = vmatprep.subr.bf16.mxu0 0
        %958 = vmatpush1.bf16.msra.mxu0 0
        %959 = vmatprep.subr.bf16.mxu0 0
        %960 = vmatpush1.bf16.msra.mxu0 0
        %961 = vmatprep.subr.bf16.mxu0 0
        %962 = vmatpush1.bf16.msra.mxu0 0
        %963 = vmatprep.subr.bf16.mxu0 0
        %964 = vmatpush1.bf16.msra.mxu0 0
        %965 = vmatprep.subr.bf16.mxu0 0
        %966 = vmatpush1.bf16.msra.mxu0 0
        %967 = vmatprep.subr.bf16.mxu0 0
        %968 = vmatpush1.bf16.msra.mxu0 0
        %969 = vmatprep.subr.bf16.mxu0 0
        %970 = vmatpush1.bf16.msra.mxu0 0
        %971 = vmatprep.subr.bf16.mxu0 0
        %972 = vmatpush1.bf16.msra.mxu0 0
        %973 = vmatprep.mubr.bf16.mxu0 0
        %974 = vmatmul.mubr.bf16.gmra.mrb[0].mxu0 %v697
        %v975 = vpop.f32.mrb[0].mxu0
        %v976 = vadd.f32 0.0, %v975
        %v977 = vpop.f32.mrb[0].mxu0
        %v978 = vadd.f32 0.0, %v977
        %v979 = vpop.f32.mrb[0].mxu0
        %v980 = vadd.f32 0.0, %v979
        %v981 = vpop.f32.mrb[0].mxu0
        %v982 = vadd.f32 0.0, %v981
        %983 = vdwg.mxu0
        %v984 = vmax.f32 %v976, %v980
        %v985 = vmax.f32 %v978, %v982
        %v986 = vld [vmem:[#allocation2 + $0x10] sm:$0xff]
        %v987 = vld [vmem:[#allocation2 + $0x18] sm:$0xff]
        %v988 = vmax.f32 %v986, %v984
        %v989 = vmax.f32 %v987, %v985
        %990 = vst [vmem:[#allocation2 + $0x10] sm:$0xff] %v988
        %991 = vst [vmem:[#allocation2 + $0x18] sm:$0xff] %v989
        %v992 = vld [vmem:[#allocation3 + $0x10] sm:$0xff]
        %v993 = vld [vmem:[#allocation3 + $0x30] sm:$0xff]
        %v994 = vld [vmem:[#allocation3 + $0x50] sm:$0xff]
        %v995 = vld [vmem:[#allocation3 + $0x70] sm:$0xff]
        %v996 = vld [vmem:[#allocation3 + $0x90] sm:$0xff]
        %v997 = vld [vmem:[#allocation3 + $0xb0] sm:$0xff]
        %v998 = vld [vmem:[#allocation3 + $0xd0] sm:$0xff]
        %v999 = vld [vmem:[#allocation3 + $0xf0] sm:$0xff]
        %v1000 = vld [vmem:[#allocation3 + $0x110] sm:$0xff]
        %v1001 = vld [vmem:[#allocation3 + $0x130] sm:$0xff]
        %v1002 = vld [vmem:[#allocation3 + $0x150] sm:$0xff]
        %v1003 = vld [vmem:[#allocation3 + $0x170] sm:$0xff]
        %v1004 = vld [vmem:[#allocation3 + $0x190] sm:$0xff]
        %v1005 = vld [vmem:[#allocation3 + $0x1b0] sm:$0xff]
        %v1006 = vld [vmem:[#allocation3 + $0x1d0] sm:$0xff]
        %v1007 = vld [vmem:[#allocation3 + $0x1f0] sm:$0xff]
        %v1024 = vunpack.c.l.b16 %v992
        %v1025 = vunpack.c.h.b16 %v992
        %v1026 = vunpack.c.l.b16 %v993
        %v1027 = vunpack.c.h.b16 %v993
        %v1028 = vunpack.c.l.b16 %v994
        %v1029 = vunpack.c.h.b16 %v994
        %v1030 = vunpack.c.l.b16 %v995
        %v1031 = vunpack.c.h.b16 %v995
        %v1032 = vunpack.c.l.b16 %v996
        %v1033 = vunpack.c.h.b16 %v996
        %v1034 = vunpack.c.l.b16 %v997
        %v1035 = vunpack.c.h.b16 %v997
        %v1036 = vunpack.c.l.b16 %v998
        %v1037 = vunpack.c.h.b16 %v998
        %v1038 = vunpack.c.l.b16 %v999
        %v1039 = vunpack.c.h.b16 %v999
        %v1040 = vunpack.c.l.b16 %v1000
        %v1041 = vunpack.c.h.b16 %v1000
        %v1042 = vunpack.c.l.b16 %v1001
        %v1043 = vunpack.c.h.b16 %v1001
        %v1044 = vunpack.c.l.b16 %v1002
        %v1045 = vunpack.c.h.b16 %v1002
        %v1046 = vunpack.c.l.b16 %v1003
        %v1047 = vunpack.c.h.b16 %v1003
        %v1048 = vunpack.c.l.b16 %v1004
        %v1049 = vunpack.c.h.b16 %v1004
        %v1050 = vunpack.c.l.b16 %v1005
        %v1051 = vunpack.c.h.b16 %v1005
        %v1052 = vunpack.c.l.b16 %v1006
        %v1053 = vunpack.c.h.b16 %v1006
        %v1054 = vunpack.c.l.b16 %v1007
        %v1055 = vunpack.c.h.b16 %v1007
        %v1056 = vpack.c.b16 %v1026, %v1024
        %v1057 = vpack.c.b16 %v1027, %v1025
        %v1058 = vpack.c.b16 %v1030, %v1028
        %v1059 = vpack.c.b16 %v1031, %v1029
        %v1060 = vpack.c.b16 %v1034, %v1032
        %v1061 = vpack.c.b16 %v1035, %v1033
        %v1062 = vpack.c.b16 %v1038, %v1036
        %v1063 = vpack.c.b16 %v1039, %v1037
        %v1064 = vpack.c.b16 %v1042, %v1040
        %v1065 = vpack.c.b16 %v1043, %v1041
        %v1066 = vpack.c.b16 %v1046, %v1044
        %v1067 = vpack.c.b16 %v1047, %v1045
        %v1068 = vpack.c.b16 %v1050, %v1048
        %v1069 = vpack.c.b16 %v1051, %v1049
        %v1070 = vpack.c.b16 %v1054, %v1052
        %v1071 = vpack.c.b16 %v1055, %v1053
        %1088 = vmatprep.subr.bf16.mxu0 %v1057
        %1089 = vmatpush1.bf16.msra.mxu0 %v1056
        %1090 = vmatprep.subr.bf16.mxu0 %v1059
        %1091 = vmatpush1.bf16.msra.mxu0 %v1058
        %1092 = vmatprep.subr.bf16.mxu0 %v1061
        %1093 = vmatpush1.bf16.msra.mxu0 %v1060
        %1094 = vmatprep.subr.bf16.mxu0 %v1063
        %1095 = vmatpush1.bf16.msra.mxu0 %v1062
        %1096 = vmatprep.subr.bf16.mxu0 %v1065
        %1097 = vmatpush1.bf16.msra.mxu0 %v1064
        %1098 = vmatprep.subr.bf16.mxu0 %v1067
        %1099 = vmatpush1.bf16.msra.mxu0 %v1066
        %1100 = vmatprep.subr.bf16.mxu0 %v1069
        %1101 = vmatpush1.bf16.msra.mxu0 %v1068
        %1102 = vmatprep.subr.bf16.mxu0 %v1071
        %1103 = vmatpush1.bf16.msra.mxu0 %v1070
        %1104 = vmatprep.subr.bf16.mxu0 0
        %1105 = vmatpush1.bf16.msra.mxu0 0
        %1106 = vmatprep.subr.bf16.mxu0 0
        %1107 = vmatpush1.bf16.msra.mxu0 0
        %1108 = vmatprep.subr.bf16.mxu0 0
        %1109 = vmatpush1.bf16.msra.mxu0 0
        %1110 = vmatprep.subr.bf16.mxu0 0
        %1111 = vmatpush1.bf16.msra.mxu0 0
        %1112 = vmatprep.subr.bf16.mxu0 0
        %1113 = vmatpush1.bf16.msra.mxu0 0
        %1114 = vmatprep.subr.bf16.mxu0 0
        %1115 = vmatpush1.bf16.msra.mxu0 0
        %1116 = vmatprep.subr.bf16.mxu0 0
        %1117 = vmatpush1.bf16.msra.mxu0 0
        %1118 = vmatprep.subr.bf16.mxu0 0
        %1119 = vmatpush1.bf16.msra.mxu0 0
        %1120 = vmatprep.mubr.bf16.mxu0 0
        %1121 = vmatmul.mubr.bf16.gmra.mrb[0].mxu0 %v697
        %v1122 = vpop.f32.mrb[0].mxu0
        %v1123 = vadd.f32 0.0, %v1122
        %v1124 = vpop.f32.mrb[0].mxu0
        %v1125 = vadd.f32 0.0, %v1124
        %v1126 = vpop.f32.mrb[0].mxu0
        %v1127 = vadd.f32 0.0, %v1126
        %v1128 = vpop.f32.mrb[0].mxu0
        %v1129 = vadd.f32 0.0, %v1128
        %1130 = vdwg.mxu0
        %v1131 = vmax.f32 %v1123, %v1127
        %v1132 = vmax.f32 %v1125, %v1129
        %v1133 = vld [vmem:[#allocation2 + $0x20] sm:$0xff]
        %v1134 = vld [vmem:[#allocation2 + $0x28] sm:$0xff]
        %v1135 = vmax.f32 %v1133, %v1131
        %v1136 = vmax.f32 %v1134, %v1132
        %1137 = vst [vmem:[#allocation2 + $0x20] sm:$0xff] %v1135
        %1138 = vst [vmem:[#allocation2 + $0x28] sm:$0xff] %v1136
        %v1139 = vld [vmem:[#allocation3 + $0x18] sm:$0xff]
        %v1140 = vld [vmem:[#allocation3 + $0x38] sm:$0xff]
        %v1141 = vld [vmem:[#allocation3 + $0x58] sm:$0xff]
        %v1142 = vld [vmem:[#allocation3 + $0x78] sm:$0xff]
        %v1143 = vld [vmem:[#allocation3 + $0x98] sm:$0xff]
        %v1144 = vld [vmem:[#allocation3 + $0xb8] sm:$0xff]
        %v1145 = vld [vmem:[#allocation3 + $0xd8] sm:$0xff]
        %v1146 = vld [vmem:[#allocation3 + $0xf8] sm:$0xff]
        %v1147 = vld [vmem:[#allocation3 + $0x118] sm:$0xff]
        %v1148 = vld [vmem:[#allocation3 + $0x138] sm:$0xff]
        %v1149 = vld [vmem:[#allocation3 + $0x158] sm:$0xff]
        %v1150 = vld [vmem:[#allocation3 + $0x178] sm:$0xff]
        %v1151 = vld [vmem:[#allocation3 + $0x198] sm:$0xff]
        %v1152 = vld [vmem:[#allocation3 + $0x1b8] sm:$0xff]
        %v1153 = vld [vmem:[#allocation3 + $0x1d8] sm:$0xff]
        %v1154 = vld [vmem:[#allocation3 + $0x1f8] sm:$0xff]
        %v1171 = vunpack.c.l.b16 %v1139
        %v1172 = vunpack.c.h.b16 %v1139
        %v1173 = vunpack.c.l.b16 %v1140
        %v1174 = vunpack.c.h.b16 %v1140
        %v1175 = vunpack.c.l.b16 %v1141
        %v1176 = vunpack.c.h.b16 %v1141
        %v1177 = vunpack.c.l.b16 %v1142
        %v1178 = vunpack.c.h.b16 %v1142
        %v1179 = vunpack.c.l.b16 %v1143
        %v1180 = vunpack.c.h.b16 %v1143
        %v1181 = vunpack.c.l.b16 %v1144
        %v1182 = vunpack.c.h.b16 %v1144
        %v1183 = vunpack.c.l.b16 %v1145
        %v1184 = vunpack.c.h.b16 %v1145
        %v1185 = vunpack.c.l.b16 %v1146
        %v1186 = vunpack.c.h.b16 %v1146
        %v1187 = vunpack.c.l.b16 %v1147
        %v1188 = vunpack.c.h.b16 %v1147
        %v1189 = vunpack.c.l.b16 %v1148
        %v1190 = vunpack.c.h.b16 %v1148
        %v1191 = vunpack.c.l.b16 %v1149
        %v1192 = vunpack.c.h.b16 %v1149
        %v1193 = vunpack.c.l.b16 %v1150
        %v1194 = vunpack.c.h.b16 %v1150
        %v1195 = vunpack.c.l.b16 %v1151
        %v1196 = vunpack.c.h.b16 %v1151
        %v1197 = vunpack.c.l.b16 %v1152
        %v1198 = vunpack.c.h.b16 %v1152
        %v1199 = vunpack.c.l.b16 %v1153
        %v1200 = vunpack.c.h.b16 %v1153
        %v1201 = vunpack.c.l.b16 %v1154
        %v1202 = vunpack.c.h.b16 %v1154
        %v1203 = vpack.c.b16 %v1173, %v1171
        %v1204 = vpack.c.b16 %v1174, %v1172
        %v1205 = vpack.c.b16 %v1177, %v1175
        %v1206 = vpack.c.b16 %v1178, %v1176
        %v1207 = vpack.c.b16 %v1181, %v1179
        %v1208 = vpack.c.b16 %v1182, %v1180
        %v1209 = vpack.c.b16 %v1185, %v1183
        %v1210 = vpack.c.b16 %v1186, %v1184
        %v1211 = vpack.c.b16 %v1189, %v1187
        %v1212 = vpack.c.b16 %v1190, %v1188
        %v1213 = vpack.c.b16 %v1193, %v1191
        %v1214 = vpack.c.b16 %v1194, %v1192
        %v1215 = vpack.c.b16 %v1197, %v1195
        %v1216 = vpack.c.b16 %v1198, %v1196
        %v1217 = vpack.c.b16 %v1201, %v1199
        %v1218 = vpack.c.b16 %v1202, %v1200
        %1235 = vmatprep.subr.bf16.mxu0 %v1204
        %1236 = vmatpush1.bf16.msra.mxu0 %v1203
        %1237 = vmatprep.subr.bf16.mxu0 %v1206
        %1238 = vmatpush1.bf16.msra.mxu0 %v1205
        %1239 = vmatprep.subr.bf16.mxu0 %v1208
        %1240 = vmatpush1.bf16.msra.mxu0 %v1207
        %1241 = vmatprep.subr.bf16.mxu0 %v1210
        %1242 = vmatpush1.bf16.msra.mxu0 %v1209
        %1243 = vmatprep.subr.bf16.mxu0 %v1212
        %1244 = vmatpush1.bf16.msra.mxu0 %v1211
        %1245 = vmatprep.subr.bf16.mxu0 %v1214
        %1246 = vmatpush1.bf16.msra.mxu0 %v1213
        %1247 = vmatprep.subr.bf16.mxu0 %v1216
        %1248 = vmatpush1.bf16.msra.mxu0 %v1215
        %1249 = vmatprep.subr.bf16.mxu0 %v1218
        %1250 = vmatpush1.bf16.msra.mxu0 %v1217
        %1251 = vmatprep.subr.bf16.mxu0 0
        %1252 = vmatpush1.bf16.msra.mxu0 0
        %1253 = vmatprep.subr.bf16.mxu0 0
        %1254 = vmatpush1.bf16.msra.mxu0 0
        %1255 = vmatprep.subr.bf16.mxu0 0
        %1256 = vmatpush1.bf16.msra.mxu0 0
        %1257 = vmatprep.subr.bf16.mxu0 0
        %1258 = vmatpush1.bf16.msra.mxu0 0
        %1259 = vmatprep.subr.bf16.mxu0 0
        %1260 = vmatpush1.bf16.msra.mxu0 0
        %1261 = vmatprep.subr.bf16.mxu0 0
        %1262 = vmatpush1.bf16.msra.mxu0 0
        %1263 = vmatprep.subr.bf16.mxu0 0
        %1264 = vmatpush1.bf16.msra.mxu0 0
        %1265 = vmatprep.subr.bf16.mxu0 0
        %1266 = vmatpush1.bf16.msra.mxu0 0
        %1267 = vmatprep.mubr.bf16.mxu0 0
        %1268 = vmatmul.mubr.bf16.gmra.mrb[0].mxu0 %v697
        %v1269 = vpop.f32.mrb[0].mxu0
        %v1270 = vadd.f32 0.0, %v1269
        %v1271 = vpop.f32.mrb[0].mxu0
        %v1272 = vadd.f32 0.0, %v1271
        %v1273 = vpop.f32.mrb[0].mxu0
        %v1274 = vadd.f32 0.0, %v1273
        %v1275 = vpop.f32.mrb[0].mxu0
        %v1276 = vadd.f32 0.0, %v1275
        %1277 = vdwg.mxu0
        %v1278 = vmax.f32 %v1270, %v1274
        %v1279 = vmax.f32 %v1272, %v1276
        %v1280 = vld [vmem:[#allocation2 + $0x30] sm:$0xff]
        %v1281 = vld [vmem:[#allocation2 + $0x38] sm:$0xff]
        %v1282 = vmax.f32 %v1280, %v1278
        %v1283 = vmax.f32 %v1281, %v1279
        %1284 = vst [vmem:[#allocation2 + $0x30] sm:$0xff] %v1282
        %1285 = vst [vmem:[#allocation2 + $0x38] sm:$0xff] %v1283
        %p1286 = scmp.eq.s32.totalorder %s35, 2
        // Predicated region
        $region93: #{tpu_custom_call.1} parent=71 // pred_check
          %p1287 = pneg %p1286
        $region94: #{tpu_custom_call.1} parent=71 // pred_check_branch
          %1289 = sbr.rel (%p1287) target = $region96
        $region95: #{tpu_custom_call.1} parent=71 // pred_region
          %v1290 = vld [vmem:[#allocation2] sm:$0xff]
          %v1291 = vld [vmem:[#allocation2 + $0x8] sm:$0xff]
          %v1292 = vld [vmem:[#allocation2 + $0x10] sm:$0xff]
          %v1293 = vld [vmem:[#allocation2 + $0x18] sm:$0xff]
          %v1294 = vld [vmem:[#allocation2 + $0x20] sm:$0xff]
          %v1295 = vld [vmem:[#allocation2 + $0x28] sm:$0xff]
          %v1296 = vld [vmem:[#allocation2 + $0x30] sm:$0xff]
          %v1297 = vld [vmem:[#allocation2 + $0x38] sm:$0xff]
          %v1298 = vrot.slane %v1290, 4
          %v1299 = vmax.f32 %v1290, %v1298
          %v1300 = vrot.slane %v1299, 2
          %v1301 = vmax.f32 %v1299, %v1300
          %v1302 = vrot.slane %v1301, 1
          %v1303 = vmax.f32 %v1301, %v1302
          %v1304 = vrot.slane %v1291, 4
          %v1305 = vmax.f32 %v1291, %v1304
          %v1306 = vrot.slane %v1305, 2
          %v1307 = vmax.f32 %v1305, %v1306
          %v1308 = vrot.slane %v1307, 1
          %v1309 = vmax.f32 %v1307, %v1308
          %v1310 = vrot.slane %v1292, 4
          %v1311 = vmax.f32 %v1292, %v1310
          %v1312 = vrot.slane %v1311, 2
          %v1313 = vmax.f32 %v1311, %v1312
          %v1314 = vrot.slane %v1313, 1
          %v1315 = vmax.f32 %v1313, %v1314
          %v1316 = vrot.slane %v1293, 4
          %v1317 = vmax.f32 %v1293, %v1316
          %v1318 = vrot.slane %v1317, 2
          %v1319 = vmax.f32 %v1317, %v1318
          %v1320 = vrot.slane %v1319, 1
          %v1321 = vmax.f32 %v1319, %v1320
          %v1322 = vrot.slane %v1294, 4
          %v1323 = vmax.f32 %v1294, %v1322
          %v1324 = vrot.slane %v1323, 2
          %v1325 = vmax.f32 %v1323, %v1324
          %v1326 = vrot.slane %v1325, 1
          %v1327 = vmax.f32 %v1325, %v1326
          %v1328 = vrot.slane %v1295, 4
          %v1329 = vmax.f32 %v1295, %v1328
          %v1330 = vrot.slane %v1329, 2
          %v1331 = vmax.f32 %v1329, %v1330
          %v1332 = vrot.slane %v1331, 1
          %v1333 = vmax.f32 %v1331, %v1332
          %v1334 = vrot.slane %v1296, 4
          %v1335 = vmax.f32 %v1296, %v1334
          %v1336 = vrot.slane %v1335, 2
          %v1337 = vmax.f32 %v1335, %v1336
          %v1338 = vrot.slane %v1337, 1
          %v1339 = vmax.f32 %v1337, %v1338
          %v1340 = vrot.slane %v1297, 4
          %v1341 = vmax.f32 %v1297, %v1340
          %v1342 = vrot.slane %v1341, 2
          %v1343 = vmax.f32 %v1341, %v1342
          %v1344 = vrot.slane %v1343, 1
          %v1345 = vmax.f32 %v1343, %v1344
          %v1346 = vld [vmem:[%s6] sm:$0xff]
          %v1348 = vlaneseq
          %v1349 = vshrl.u32 %v1348, 7
          %v1350 = vsub.s32 0, %v1349
          %v1351 = vrot.slane %v1346, %v1350
          %v1352 = vlaneseq
          %v1353 = vshrl.u32 %v1352, 7
          %v1354 = vsub.s32 1, %v1353
          %v1355 = vrot.slane %v1346, %v1354
          %v1356 = vlaneseq
          %v1357 = vshrl.u32 %v1356, 7
          %v1358 = vsub.s32 2, %v1357
          %v1359 = vrot.slane %v1346, %v1358
          %v1360 = vlaneseq
          %v1361 = vshrl.u32 %v1360, 7
          %v1362 = vsub.s32 3, %v1361
          %v1363 = vrot.slane %v1346, %v1362
          %v1364 = vlaneseq
          %v1365 = vshrl.u32 %v1364, 7
          %v1366 = vsub.s32 4, %v1365
          %v1367 = vrot.slane %v1346, %v1366
          %v1368 = vlaneseq
          %v1369 = vshrl.u32 %v1368, 7
          %v1370 = vsub.s32 5, %v1369
          %v1371 = vrot.slane %v1346, %v1370
          %v1372 = vlaneseq
          %v1373 = vshrl.u32 %v1372, 7
          %v1374 = vsub.s32 6, %v1373
          %v1375 = vrot.slane %v1346, %v1374
          %v1376 = vlaneseq
          %v1377 = vshrl.u32 %v1376, 7
          %v1378 = vsub.s32 7, %v1377
          %v1379 = vrot.slane %v1346, %v1378
          %v1388 = vadd.f32 %v1303, %v1351
          %v1389 = vadd.f32 %v1309, %v1355
          %v1390 = vadd.f32 %v1315, %v1359
          %v1391 = vadd.f32 %v1321, %v1363
          %v1392 = vadd.f32 %v1327, %v1367
          %v1393 = vadd.f32 %v1333, %v1371
          %v1394 = vadd.f32 %v1339, %v1375
          %v1395 = vadd.f32 %v1345, %v1379
          %v1396 = vmax.f32 %v1388, 0.0
          %v1397 = vmax.f32 %v1389, 0.0
          %v1398 = vmax.f32 %v1390, 0.0
          %v1399 = vmax.f32 %v1391, 0.0
          %v1400 = vmax.f32 %v1392, 0.0
          %v1401 = vmax.f32 %v1393, 0.0
          %v1402 = vmax.f32 %v1394, 0.0
          %v1403 = vmax.f32 %v1395, 0.0
          %v1404 = vlaneseq
          %v1405 = vshrl.u32 %v1404, 7
          %v1406 = vsub.s32 0, %v1405
          %v1407 = vrot.slane %v1396, %v1406
          %v1408 = vlaneseq
          %v1409 = vshrl.u32 %v1408, 7
          %v1410 = vsub.s32 0, %v1409
          %v1411 = vrot.slane %v1397, %v1410
          %v1412 = vlaneseq
          %v1413 = vshrl.u32 %v1412, 7
          %v1414 = vsub.s32 0, %v1413
          %v1415 = vrot.slane %v1398, %v1414
          %v1416 = vlaneseq
          %v1417 = vshrl.u32 %v1416, 7
          %v1418 = vsub.s32 0, %v1417
          %v1419 = vrot.slane %v1399, %v1418
          %v1420 = vlaneseq
          %v1421 = vshrl.u32 %v1420, 7
          %v1422 = vsub.s32 0, %v1421
          %v1423 = vrot.slane %v1400, %v1422
          %v1424 = vlaneseq
          %v1425 = vshrl.u32 %v1424, 7
          %v1426 = vsub.s32 0, %v1425
          %v1427 = vrot.slane %v1401, %v1426
          %v1428 = vlaneseq
          %v1429 = vshrl.u32 %v1428, 7
          %v1430 = vsub.s32 0, %v1429
          %v1431 = vrot.slane %v1402, %v1430
          %v1432 = vlaneseq
          %v1433 = vshrl.u32 %v1432, 7
          %v1434 = vsub.s32 0, %v1433
          %v1435 = vrot.slane %v1403, %v1434
          %v1436 = vpack.c.bf16 %v1407, %v1407
          %v1437 = vpack.c.bf16 %v1411, %v1411
          %v1438 = vpack.c.bf16 %v1415, %v1415
          %v1439 = vpack.c.bf16 %v1419, %v1419
          %v1440 = vpack.c.bf16 %v1423, %v1423
          %v1441 = vpack.c.bf16 %v1427, %v1427
          %v1442 = vpack.c.bf16 %v1431, %v1431
          %v1443 = vpack.c.bf16 %v1435, %v1435
          %v1444 = vld [vmem:[#allocation6] sm:$0xff]
          %v1445 = vld [vmem:[#allocation6 + $0x8] sm:$0xff]
          %v1446 = vld [vmem:[#allocation6 + $0x10] sm:$0xff]
          %v1447 = vld [vmem:[#allocation6 + $0x18] sm:$0xff]
          %v1448 = vld [vmem:[#allocation6 + $0x20] sm:$0xff]
          %v1449 = vld [vmem:[#allocation6 + $0x28] sm:$0xff]
          %v1450 = vld [vmem:[#allocation6 + $0x30] sm:$0xff]
          %v1451 = vld [vmem:[#allocation6 + $0x38] sm:$0xff]
          %v1452 = vld [vmem:[#allocation6 + $0x40] sm:$0xff]
          %v1453 = vld [vmem:[#allocation6 + $0x48] sm:$0xff]
          %v1454 = vld [vmem:[#allocation6 + $0x50] sm:$0xff]
          %v1455 = vld [vmem:[#allocation6 + $0x58] sm:$0xff]
          %v1456 = vld [vmem:[#allocation6 + $0x60] sm:$0xff]
          %v1457 = vld [vmem:[#allocation6 + $0x68] sm:$0xff]
          %v1458 = vld [vmem:[#allocation6 + $0x70] sm:$0xff]
          %v1459 = vld [vmem:[#allocation6 + $0x78] sm:$0xff]
          %v1460 = vld [vmem:[#allocation6 + $0x80] sm:$0xff]
          %v1461 = vld [vmem:[#allocation6 + $0x88] sm:$0xff]
          %v1462 = vld [vmem:[#allocation6 + $0x90] sm:$0xff]
          %v1463 = vld [vmem:[#allocation6 + $0x98] sm:$0xff]
          %v1464 = vld [vmem:[#allocation6 + $0xa0] sm:$0xff]
          %v1465 = vld [vmem:[#allocation6 + $0xa8] sm:$0xff]
          %v1466 = vld [vmem:[#allocation6 + $0xb0] sm:$0xff]
          %v1467 = vld [vmem:[#allocation6 + $0xb8] sm:$0xff]
          %v1468 = vld [vmem:[#allocation6 + $0xc0] sm:$0xff]
          %v1469 = vld [vmem:[#allocation6 + $0xc8] sm:$0xff]
          %v1470 = vld [vmem:[#allocation6 + $0xd0] sm:$0xff]
          %v1471 = vld [vmem:[#allocation6 + $0xd8] sm:$0xff]
          %v1472 = vld [vmem:[#allocation6 + $0xe0] sm:$0xff]
          %v1473 = vld [vmem:[#allocation6 + $0xe8] sm:$0xff]
          %v1474 = vld [vmem:[#allocation6 + $0xf0] sm:$0xff]
          %v1475 = vld [vmem:[#allocation6 + $0xf8] sm:$0xff]
          %v1476 = vld [vmem:[#allocation6 + $0x100] sm:$0xff]
          %v1477 = vld [vmem:[#allocation6 + $0x108] sm:$0xff]
          %v1478 = vld [vmem:[#allocation6 + $0x110] sm:$0xff]
          %v1479 = vld [vmem:[#allocation6 + $0x118] sm:$0xff]
          %v1480 = vld [vmem:[#allocation6 + $0x120] sm:$0xff]
          %v1481 = vld [vmem:[#allocation6 + $0x128] sm:$0xff]
          %v1482 = vld [vmem:[#allocation6 + $0x130] sm:$0xff]
          %v1483 = vld [vmem:[#allocation6 + $0x138] sm:$0xff]
          %v1484 = vld [vmem:[#allocation6 + $0x140] sm:$0xff]
          %v1485 = vld [vmem:[#allocation6 + $0x148] sm:$0xff]
          %v1486 = vld [vmem:[#allocation6 + $0x150] sm:$0xff]
          %v1487 = vld [vmem:[#allocation6 + $0x158] sm:$0xff]
          %v1488 = vld [vmem:[#allocation6 + $0x160] sm:$0xff]
          %v1489 = vld [vmem:[#allocation6 + $0x168] sm:$0xff]
          %v1490 = vld [vmem:[#allocation6 + $0x170] sm:$0xff]
          %v1491 = vld [vmem:[#allocation6 + $0x178] sm:$0xff]
          %v1492 = vld [vmem:[#allocation6 + $0x180] sm:$0xff]
          %v1493 = vld [vmem:[#allocation6 + $0x188] sm:$0xff]
          %v1494 = vld [vmem:[#allocation6 + $0x190] sm:$0xff]
          %v1495 = vld [vmem:[#allocation6 + $0x198] sm:$0xff]
          %v1496 = vld [vmem:[#allocation6 + $0x1a0] sm:$0xff]
          %v1497 = vld [vmem:[#allocation6 + $0x1a8] sm:$0xff]
          %v1498 = vld [vmem:[#allocation6 + $0x1b0] sm:$0xff]
          %v1499 = vld [vmem:[#allocation6 + $0x1b8] sm:$0xff]
          %v1500 = vld [vmem:[#allocation6 + $0x1c0] sm:$0xff]
          %v1501 = vld [vmem:[#allocation6 + $0x1c8] sm:$0xff]
          %v1502 = vld [vmem:[#allocation6 + $0x1d0] sm:$0xff]
          %v1503 = vld [vmem:[#allocation6 + $0x1d8] sm:$0xff]
          %v1504 = vld [vmem:[#allocation6 + $0x1e0] sm:$0xff]
          %v1505 = vld [vmem:[#allocation6 + $0x1e8] sm:$0xff]
          %v1506 = vld [vmem:[#allocation6 + $0x1f0] sm:$0xff]
          %v1507 = vld [vmem:[#allocation6 + $0x1f8] sm:$0xff]
          %v1508 = vld [vmem:[#allocation6 + $0x200] sm:$0xff]
          %v1509 = vld [vmem:[#allocation6 + $0x208] sm:$0xff]
          %v1510 = vld [vmem:[#allocation6 + $0x210] sm:$0xff]
          %v1511 = vld [vmem:[#allocation6 + $0x218] sm:$0xff]
          %v1512 = vld [vmem:[#allocation6 + $0x220] sm:$0xff]
          %v1513 = vld [vmem:[#allocation6 + $0x228] sm:$0xff]
          %v1514 = vld [vmem:[#allocation6 + $0x230] sm:$0xff]
          %v1515 = vld [vmem:[#allocation6 + $0x238] sm:$0xff]
          %v1516 = vld [vmem:[#allocation6 + $0x240] sm:$0xff]
          %v1517 = vld [vmem:[#allocation6 + $0x248] sm:$0xff]
          %v1518 = vld [vmem:[#allocation6 + $0x250] sm:$0xff]
          %v1519 = vld [vmem:[#allocation6 + $0x258] sm:$0xff]
          %v1520 = vld [vmem:[#allocation6 + $0x260] sm:$0xff]
          %v1521 = vld [vmem:[#allocation6 + $0x268] sm:$0xff]
          %v1522 = vld [vmem:[#allocation6 + $0x270] sm:$0xff]
          %v1523 = vld [vmem:[#allocation6 + $0x278] sm:$0xff]
          %v1524 = vld [vmem:[#allocation6 + $0x280] sm:$0xff]
          %v1525 = vld [vmem:[#allocation6 + $0x288] sm:$0xff]
          %v1526 = vld [vmem:[#allocation6 + $0x290] sm:$0xff]
          %v1527 = vld [vmem:[#allocation6 + $0x298] sm:$0xff]
          %v1528 = vld [vmem:[#allocation6 + $0x2a0] sm:$0xff]
          %v1529 = vld [vmem:[#allocation6 + $0x2a8] sm:$0xff]
          %v1530 = vld [vmem:[#allocation6 + $0x2b0] sm:$0xff]
          %v1531 = vld [vmem:[#allocation6 + $0x2b8] sm:$0xff]
          %v1532 = vld [vmem:[#allocation6 + $0x2c0] sm:$0xff]
          %v1533 = vld [vmem:[#allocation6 + $0x2c8] sm:$0xff]
          %v1534 = vld [vmem:[#allocation6 + $0x2d0] sm:$0xff]
          %v1535 = vld [vmem:[#allocation6 + $0x2d8] sm:$0xff]
          %v1536 = vld [vmem:[#allocation6 + $0x2e0] sm:$0xff]
          %v1537 = vld [vmem:[#allocation6 + $0x2e8] sm:$0xff]
          %v1538 = vld [vmem:[#allocation6 + $0x2f0] sm:$0xff]
          %v1539 = vld [vmem:[#allocation6 + $0x2f8] sm:$0xff]
          %v1540 = vld [vmem:[#allocation6 + $0x300] sm:$0xff]
          %v1541 = vld [vmem:[#allocation6 + $0x308] sm:$0xff]
          %v1542 = vld [vmem:[#allocation6 + $0x310] sm:$0xff]
          %v1543 = vld [vmem:[#allocation6 + $0x318] sm:$0xff]
          %v1544 = vld [vmem:[#allocation6 + $0x320] sm:$0xff]
          %v1545 = vld [vmem:[#allocation6 + $0x328] sm:$0xff]
          %v1546 = vld [vmem:[#allocation6 + $0x330] sm:$0xff]
          %v1547 = vld [vmem:[#allocation6 + $0x338] sm:$0xff]
          %v1548 = vld [vmem:[#allocation6 + $0x340] sm:$0xff]
          %v1549 = vld [vmem:[#allocation6 + $0x348] sm:$0xff]
          %v1550 = vld [vmem:[#allocation6 + $0x350] sm:$0xff]
          %v1551 = vld [vmem:[#allocation6 + $0x358] sm:$0xff]
          %v1552 = vld [vmem:[#allocation6 + $0x360] sm:$0xff]
          %v1553 = vld [vmem:[#allocation6 + $0x368] sm:$0xff]
          %v1554 = vld [vmem:[#allocation6 + $0x370] sm:$0xff]
          %v1555 = vld [vmem:[#allocation6 + $0x378] sm:$0xff]
          %v1556 = vld [vmem:[#allocation6 + $0x380] sm:$0xff]
          %v1557 = vld [vmem:[#allocation6 + $0x388] sm:$0xff]
          %v1558 = vld [vmem:[#allocation6 + $0x390] sm:$0xff]
          %v1559 = vld [vmem:[#allocation6 + $0x398] sm:$0xff]
          %v1560 = vld [vmem:[#allocation6 + $0x3a0] sm:$0xff]
          %v1561 = vld [vmem:[#allocation6 + $0x3a8] sm:$0xff]
          %v1562 = vld [vmem:[#allocation6 + $0x3b0] sm:$0xff]
          %v1563 = vld [vmem:[#allocation6 + $0x3b8] sm:$0xff]
          %v1564 = vld [vmem:[#allocation6 + $0x3c0] sm:$0xff]
          %v1565 = vld [vmem:[#allocation6 + $0x3c8] sm:$0xff]
          %v1566 = vld [vmem:[#allocation6 + $0x3d0] sm:$0xff]
          %v1567 = vld [vmem:[#allocation6 + $0x3d8] sm:$0xff]
          %v1568 = vld [vmem:[#allocation6 + $0x3e0] sm:$0xff]
          %v1569 = vld [vmem:[#allocation6 + $0x3e8] sm:$0xff]
          %v1570 = vld [vmem:[#allocation6 + $0x3f0] sm:$0xff]
          %v1571 = vld [vmem:[#allocation6 + $0x3f8] sm:$0xff]
          %v1572 = vld [vmem:[#allocation6 + $0x400] sm:$0xff]
          %v1573 = vld [vmem:[#allocation6 + $0x408] sm:$0xff]
          %v1574 = vld [vmem:[#allocation6 + $0x410] sm:$0xff]
          %v1575 = vld [vmem:[#allocation6 + $0x418] sm:$0xff]
          %v1576 = vld [vmem:[#allocation6 + $0x420] sm:$0xff]
          %v1577 = vld [vmem:[#allocation6 + $0x428] sm:$0xff]
          %v1578 = vld [vmem:[#allocation6 + $0x430] sm:$0xff]
          %v1579 = vld [vmem:[#allocation6 + $0x438] sm:$0xff]
          %v1580 = vld [vmem:[#allocation6 + $0x440] sm:$0xff]
          %v1581 = vld [vmem:[#allocation6 + $0x448] sm:$0xff]
          %v1582 = vld [vmem:[#allocation6 + $0x450] sm:$0xff]
          %v1583 = vld [vmem:[#allocation6 + $0x458] sm:$0xff]
          %v1584 = vld [vmem:[#allocation6 + $0x460] sm:$0xff]
          %v1585 = vld [vmem:[#allocation6 + $0x468] sm:$0xff]
          %v1586 = vld [vmem:[#allocation6 + $0x470] sm:$0xff]
          %v1587 = vld [vmem:[#allocation6 + $0x478] sm:$0xff]
          %v1588 = vld [vmem:[#allocation6 + $0x480] sm:$0xff]
          %v1589 = vld [vmem:[#allocation6 + $0x488] sm:$0xff]
          %v1590 = vld [vmem:[#allocation6 + $0x490] sm:$0xff]
          %v1591 = vld [vmem:[#allocation6 + $0x498] sm:$0xff]
          %v1592 = vld [vmem:[#allocation6 + $0x4a0] sm:$0xff]
          %v1593 = vld [vmem:[#allocation6 + $0x4a8] sm:$0xff]
          %v1594 = vld [vmem:[#allocation6 + $0x4b0] sm:$0xff]
          %v1595 = vld [vmem:[#allocation6 + $0x4b8] sm:$0xff]
          %v1596 = vld [vmem:[#allocation6 + $0x4c0] sm:$0xff]
          %v1597 = vld [vmem:[#allocation6 + $0x4c8] sm:$0xff]
          %v1598 = vld [vmem:[#allocation6 + $0x4d0] sm:$0xff]
          %v1599 = vld [vmem:[#allocation6 + $0x4d8] sm:$0xff]
          %v1600 = vld [vmem:[#allocation6 + $0x4e0] sm:$0xff]
          %v1601 = vld [vmem:[#allocation6 + $0x4e8] sm:$0xff]
          %v1602 = vld [vmem:[#allocation6 + $0x4f0] sm:$0xff]
          %v1603 = vld [vmem:[#allocation6 + $0x4f8] sm:$0xff]
          %v1604 = vld [vmem:[#allocation6 + $0x500] sm:$0xff]
          %v1605 = vld [vmem:[#allocation6 + $0x508] sm:$0xff]
          %v1606 = vld [vmem:[#allocation6 + $0x510] sm:$0xff]
          %v1607 = vld [vmem:[#allocation6 + $0x518] sm:$0xff]
          %v1608 = vld [vmem:[#allocation6 + $0x520] sm:$0xff]
          %v1609 = vld [vmem:[#allocation6 + $0x528] sm:$0xff]
          %v1610 = vld [vmem:[#allocation6 + $0x530] sm:$0xff]
          %v1611 = vld [vmem:[#allocation6 + $0x538] sm:$0xff]
          %v1612 = vld [vmem:[#allocation6 + $0x540] sm:$0xff]
          %v1613 = vld [vmem:[#allocation6 + $0x548] sm:$0xff]
          %v1614 = vld [vmem:[#allocation6 + $0x550] sm:$0xff]
          %v1615 = vld [vmem:[#allocation6 + $0x558] sm:$0xff]
          %v1616 = vld [vmem:[#allocation6 + $0x560] sm:$0xff]
          %v1617 = vld [vmem:[#allocation6 + $0x568] sm:$0xff]
          %v1618 = vld [vmem:[#allocation6 + $0x570] sm:$0xff]
          %v1619 = vld [vmem:[#allocation6 + $0x578] sm:$0xff]
          %v1620 = vld [vmem:[#allocation6 + $0x580] sm:$0xff]
          %v1621 = vld [vmem:[#allocation6 + $0x588] sm:$0xff]
          %v1622 = vld [vmem:[#allocation6 + $0x590] sm:$0xff]
          %v1623 = vld [vmem:[#allocation6 + $0x598] sm:$0xff]
          %v1624 = vld [vmem:[#allocation6 + $0x5a0] sm:$0xff]
          %v1625 = vld [vmem:[#allocation6 + $0x5a8] sm:$0xff]
          %v1626 = vld [vmem:[#allocation6 + $0x5b0] sm:$0xff]
          %v1627 = vld [vmem:[#allocation6 + $0x5b8] sm:$0xff]
          %v1628 = vld [vmem:[#allocation6 + $0x5c0] sm:$0xff]
          %v1629 = vld [vmem:[#allocation6 + $0x5c8] sm:$0xff]
          %v1630 = vld [vmem:[#allocation6 + $0x5d0] sm:$0xff]
          %v1631 = vld [vmem:[#allocation6 + $0x5d8] sm:$0xff]
          %v1632 = vld [vmem:[#allocation6 + $0x5e0] sm:$0xff]
          %v1633 = vld [vmem:[#allocation6 + $0x5e8] sm:$0xff]
          %v1634 = vld [vmem:[#allocation6 + $0x5f0] sm:$0xff]
          %v1635 = vld [vmem:[#allocation6 + $0x5f8] sm:$0xff]
          %v1636 = vld [vmem:[#allocation6 + $0x600] sm:$0xff]
          %v1637 = vld [vmem:[#allocation6 + $0x608] sm:$0xff]
          %v1638 = vld [vmem:[#allocation6 + $0x610] sm:$0xff]
          %v1639 = vld [vmem:[#allocation6 + $0x618] sm:$0xff]
          %v1640 = vld [vmem:[#allocation6 + $0x620] sm:$0xff]
          %v1641 = vld [vmem:[#allocation6 + $0x628] sm:$0xff]
          %v1642 = vld [vmem:[#allocation6 + $0x630] sm:$0xff]
          %v1643 = vld [vmem:[#allocation6 + $0x638] sm:$0xff]
          %v1644 = vld [vmem:[#allocation6 + $0x640] sm:$0xff]
          %v1645 = vld [vmem:[#allocation6 + $0x648] sm:$0xff]
          %v1646 = vld [vmem:[#allocation6 + $0x650] sm:$0xff]
          %v1647 = vld [vmem:[#allocation6 + $0x658] sm:$0xff]
          %v1648 = vld [vmem:[#allocation6 + $0x660] sm:$0xff]
          %v1649 = vld [vmem:[#allocation6 + $0x668] sm:$0xff]
          %v1650 = vld [vmem:[#allocation6 + $0x670] sm:$0xff]
          %v1651 = vld [vmem:[#allocation6 + $0x678] sm:$0xff]
          %v1652 = vld [vmem:[#allocation6 + $0x680] sm:$0xff]
          %v1653 = vld [vmem:[#allocation6 + $0x688] sm:$0xff]
          %v1654 = vld [vmem:[#allocation6 + $0x690] sm:$0xff]
          %v1655 = vld [vmem:[#allocation6 + $0x698] sm:$0xff]
          %v1656 = vld [vmem:[#allocation6 + $0x6a0] sm:$0xff]
          %v1657 = vld [vmem:[#allocation6 + $0x6a8] sm:$0xff]
          %v1658 = vld [vmem:[#allocation6 + $0x6b0] sm:$0xff]
          %v1659 = vld [vmem:[#allocation6 + $0x6b8] sm:$0xff]
          %v1660 = vld [vmem:[#allocation6 + $0x6c0] sm:$0xff]
          %v1661 = vld [vmem:[#allocation6 + $0x6c8] sm:$0xff]
          %v1662 = vld [vmem:[#allocation6 + $0x6d0] sm:$0xff]
          %v1663 = vld [vmem:[#allocation6 + $0x6d8] sm:$0xff]
          %v1664 = vld [vmem:[#allocation6 + $0x6e0] sm:$0xff]
          %v1665 = vld [vmem:[#allocation6 + $0x6e8] sm:$0xff]
          %v1666 = vld [vmem:[#allocation6 + $0x6f0] sm:$0xff]
          %v1667 = vld [vmem:[#allocation6 + $0x6f8] sm:$0xff]
          %v1668 = vld [vmem:[#allocation6 + $0x700] sm:$0xff]
          %v1669 = vld [vmem:[#allocation6 + $0x708] sm:$0xff]
          %v1670 = vld [vmem:[#allocation6 + $0x710] sm:$0xff]
          %v1671 = vld [vmem:[#allocation6 + $0x718] sm:$0xff]
          %v1672 = vld [vmem:[#allocation6 + $0x720] sm:$0xff]
          %v1673 = vld [vmem:[#allocation6 + $0x728] sm:$0xff]
          %v1674 = vld [vmem:[#allocation6 + $0x730] sm:$0xff]
          %v1675 = vld [vmem:[#allocation6 + $0x738] sm:$0xff]
          %v1676 = vld [vmem:[#allocation6 + $0x740] sm:$0xff]
          %v1677 = vld [vmem:[#allocation6 + $0x748] sm:$0xff]
          %v1678 = vld [vmem:[#allocation6 + $0x750] sm:$0xff]
          %v1679 = vld [vmem:[#allocation6 + $0x758] sm:$0xff]
          %v1680 = vld [vmem:[#allocation6 + $0x760] sm:$0xff]
          %v1681 = vld [vmem:[#allocation6 + $0x768] sm:$0xff]
          %v1682 = vld [vmem:[#allocation6 + $0x770] sm:$0xff]
          %v1683 = vld [vmem:[#allocation6 + $0x778] sm:$0xff]
          %v1684 = vld [vmem:[#allocation6 + $0x780] sm:$0xff]
          %v1685 = vld [vmem:[#allocation6 + $0x788] sm:$0xff]
          %v1686 = vld [vmem:[#allocation6 + $0x790] sm:$0xff]
          %v1687 = vld [vmem:[#allocation6 + $0x798] sm:$0xff]
          %v1688 = vld [vmem:[#allocation6 + $0x7a0] sm:$0xff]
          %v1689 = vld [vmem:[#allocation6 + $0x7a8] sm:$0xff]
          %v1690 = vld [vmem:[#allocation6 + $0x7b0] sm:$0xff]
          %v1691 = vld [vmem:[#allocation6 + $0x7b8] sm:$0xff]
          %v1692 = vld [vmem:[#allocation6 + $0x7c0] sm:$0xff]
          %v1693 = vld [vmem:[#allocation6 + $0x7c8] sm:$0xff]
          %v1694 = vld [vmem:[#allocation6 + $0x7d0] sm:$0xff]
          %v1695 = vld [vmem:[#allocation6 + $0x7d8] sm:$0xff]
          %v1696 = vld [vmem:[#allocation6 + $0x7e0] sm:$0xff]
          %v1697 = vld [vmem:[#allocation6 + $0x7e8] sm:$0xff]
          %v1698 = vld [vmem:[#allocation6 + $0x7f0] sm:$0xff]
          %v1699 = vld [vmem:[#allocation6 + $0x7f8] sm:$0xff]
          %v1700 = vld [vmem:[%s8] sm:$0xf]
          %v1702 = vlaneseq
          %v1703 = vshrl.u32 %v1702, 7
          %v1704 = vsub.s32 0, %v1703
          %v1705 = vrot.slane %v1700, %v1704
          %v1706 = vlaneseq
          %v1707 = vshrl.u32 %v1706, 7
          %v1708 = vsub.s32 1, %v1707
          %v1709 = vrot.slane %v1700, %v1708
          %v1710 = vlaneseq
          %v1711 = vshrl.u32 %v1710, 7
          %v1712 = vsub.s32 2, %v1711
          %v1713 = vrot.slane %v1700, %v1712
          %v1714 = vlaneseq
          %v1715 = vshrl.u32 %v1714, 7
          %v1716 = vsub.s32 3, %v1715
          %v1717 = vrot.slane %v1700, %v1716
          %v1978 = vunpack.c.l.b16 %v1444
          %v1979 = vunpack.c.h.b16 %v1444
          %v1980 = vunpack.c.l.b16 %v1445
          %v1981 = vunpack.c.h.b16 %v1445
          %v1982 = vunpack.c.l.b16 %v1446
          %v1983 = vunpack.c.h.b16 %v1446
          %v1984 = vunpack.c.l.b16 %v1447
          %v1985 = vunpack.c.h.b16 %v1447
          %v1986 = vunpack.c.l.b16 %v1448
          %v1987 = vunpack.c.h.b16 %v1448
          %v1988 = vunpack.c.l.b16 %v1449
          %v1989 = vunpack.c.h.b16 %v1449
          %v1990 = vunpack.c.l.b16 %v1450
          %v1991 = vunpack.c.h.b16 %v1450
          %v1992 = vunpack.c.l.b16 %v1451
          %v1993 = vunpack.c.h.b16 %v1451
          %v1994 = vunpack.c.l.b16 %v1452
          %v1995 = vunpack.c.h.b16 %v1452
          %v1996 = vunpack.c.l.b16 %v1453
          %v1997 = vunpack.c.h.b16 %v1453
          %v1998 = vunpack.c.l.b16 %v1454
          %v1999 = vunpack.c.h.b16 %v1454
          %v2000 = vunpack.c.l.b16 %v1455
          %v2001 = vunpack.c.h.b16 %v1455
          %v2002 = vunpack.c.l.b16 %v1456
          %v2003 = vunpack.c.h.b16 %v1456
          %v2004 = vunpack.c.l.b16 %v1457
          %v2005 = vunpack.c.h.b16 %v1457
          %v2006 = vunpack.c.l.b16 %v1458
          %v2007 = vunpack.c.h.b16 %v1458
          %v2008 = vunpack.c.l.b16 %v1459
          %v2009 = vunpack.c.h.b16 %v1459
          %v2010 = vunpack.c.l.b16 %v1460
          %v2011 = vunpack.c.h.b16 %v1460
          %v2012 = vunpack.c.l.b16 %v1461
          %v2013 = vunpack.c.h.b16 %v1461
          %v2014 = vunpack.c.l.b16 %v1462
          %v2015 = vunpack.c.h.b16 %v1462
          %v2016 = vunpack.c.l.b16 %v1463
          %v2017 = vunpack.c.h.b16 %v1463
          %v2018 = vunpack.c.l.b16 %v1464
          %v2019 = vunpack.c.h.b16 %v1464
          %v2020 = vunpack.c.l.b16 %v1465
          %v2021 = vunpack.c.h.b16 %v1465
          %v2022 = vunpack.c.l.b16 %v1466
          %v2023 = vunpack.c.h.b16 %v1466
          %v2024 = vunpack.c.l.b16 %v1467
          %v2025 = vunpack.c.h.b16 %v1467
          %v2026 = vunpack.c.l.b16 %v1468
          %v2027 = vunpack.c.h.b16 %v1468
          %v2028 = vunpack.c.l.b16 %v1469
          %v2029 = vunpack.c.h.b16 %v1469
          %v2030 = vunpack.c.l.b16 %v1470
          %v2031 = vunpack.c.h.b16 %v1470
          %v2032 = vunpack.c.l.b16 %v1471
          %v2033 = vunpack.c.h.b16 %v1471
          %v2034 = vunpack.c.l.b16 %v1472
          %v2035 = vunpack.c.h.b16 %v1472
          %v2036 = vunpack.c.l.b16 %v1473
          %v2037 = vunpack.c.h.b16 %v1473
          %v2038 = vunpack.c.l.b16 %v1474
          %v2039 = vunpack.c.h.b16 %v1474
          %v2040 = vunpack.c.l.b16 %v1475
          %v2041 = vunpack.c.h.b16 %v1475
          %v2042 = vunpack.c.l.b16 %v1476
          %v2043 = vunpack.c.h.b16 %v1476
          %v2044 = vunpack.c.l.b16 %v1477
          %v2045 = vunpack.c.h.b16 %v1477
          %v2046 = vunpack.c.l.b16 %v1478
          %v2047 = vunpack.c.h.b16 %v1478
          %v2048 = vunpack.c.l.b16 %v1479
          %v2049 = vunpack.c.h.b16 %v1479
          %v2050 = vunpack.c.l.b16 %v1480
          %v2051 = vunpack.c.h.b16 %v1480
          %v2052 = vunpack.c.l.b16 %v1481
          %v2053 = vunpack.c.h.b16 %v1481
          %v2054 = vunpack.c.l.b16 %v1482
          %v2055 = vunpack.c.h.b16 %v1482
          %v2056 = vunpack.c.l.b16 %v1483
          %v2057 = vunpack.c.h.b16 %v1483
          %v2058 = vunpack.c.l.b16 %v1484
          %v2059 = vunpack.c.h.b16 %v1484
          %v2060 = vunpack.c.l.b16 %v1485
          %v2061 = vunpack.c.h.b16 %v1485
          %v2062 = vunpack.c.l.b16 %v1486
          %v2063 = vunpack.c.h.b16 %v1486
          %v2064 = vunpack.c.l.b16 %v1487
          %v2065 = vunpack.c.h.b16 %v1487
          %v2066 = vunpack.c.l.b16 %v1488
          %v2067 = vunpack.c.h.b16 %v1488
          %v2068 = vunpack.c.l.b16 %v1489
          %v2069 = vunpack.c.h.b16 %v1489
          %v2070 = vunpack.c.l.b16 %v1490
          %v2071 = vunpack.c.h.b16 %v1490
          %v2072 = vunpack.c.l.b16 %v1491
          %v2073 = vunpack.c.h.b16 %v1491
          %v2074 = vunpack.c.l.b16 %v1492
          %v2075 = vunpack.c.h.b16 %v1492
          %v2076 = vunpack.c.l.b16 %v1493
          %v2077 = vunpack.c.h.b16 %v1493
          %v2078 = vunpack.c.l.b16 %v1494
          %v2079 = vunpack.c.h.b16 %v1494
          %v2080 = vunpack.c.l.b16 %v1495
          %v2081 = vunpack.c.h.b16 %v1495
          %v2082 = vunpack.c.l.b16 %v1496
          %v2083 = vunpack.c.h.b16 %v1496
          %v2084 = vunpack.c.l.b16 %v1497
          %v2085 = vunpack.c.h.b16 %v1497
          %v2086 = vunpack.c.l.b16 %v1498
          %v2087 = vunpack.c.h.b16 %v1498
          %v2088 = vunpack.c.l.b16 %v1499
          %v2089 = vunpack.c.h.b16 %v1499
          %v2090 = vunpack.c.l.b16 %v1500
          %v2091 = vunpack.c.h.b16 %v1500
          %v2092 = vunpack.c.l.b16 %v1501
          %v2093 = vunpack.c.h.b16 %v1501
          %v2094 = vunpack.c.l.b16 %v1502
          %v2095 = vunpack.c.h.b16 %v1502
          %v2096 = vunpack.c.l.b16 %v1503
          %v2097 = vunpack.c.h.b16 %v1503
          %v2098 = vunpack.c.l.b16 %v1504
          %v2099 = vunpack.c.h.b16 %v1504
          %v2100 = vunpack.c.l.b16 %v1505
          %v2101 = vunpack.c.h.b16 %v1505
          %v2102 = vunpack.c.l.b16 %v1506
          %v2103 = vunpack.c.h.b16 %v1506
          %v2104 = vunpack.c.l.b16 %v1507
          %v2105 = vunpack.c.h.b16 %v1507
          %v2106 = vunpack.c.l.b16 %v1508
          %v2107 = vunpack.c.h.b16 %v1508
          %v2108 = vunpack.c.l.b16 %v1509
          %v2109 = vunpack.c.h.b16 %v1509
          %v2110 = vunpack.c.l.b16 %v1510
          %v2111 = vunpack.c.h.b16 %v1510
          %v2112 = vunpack.c.l.b16 %v1511
          %v2113 = vunpack.c.h.b16 %v1511
          %v2114 = vunpack.c.l.b16 %v1512
          %v2115 = vunpack.c.h.b16 %v1512
          %v2116 = vunpack.c.l.b16 %v1513
          %v2117 = vunpack.c.h.b16 %v1513
          %v2118 = vunpack.c.l.b16 %v1514
          %v2119 = vunpack.c.h.b16 %v1514
          %v2120 = vunpack.c.l.b16 %v1515
          %v2121 = vunpack.c.h.b16 %v1515
          %v2122 = vunpack.c.l.b16 %v1516
          %v2123 = vunpack.c.h.b16 %v1516
          %v2124 = vunpack.c.l.b16 %v1517
          %v2125 = vunpack.c.h.b16 %v1517
          %v2126 = vunpack.c.l.b16 %v1518
          %v2127 = vunpack.c.h.b16 %v1518
          %v2128 = vunpack.c.l.b16 %v1519
          %v2129 = vunpack.c.h.b16 %v1519
          %v2130 = vunpack.c.l.b16 %v1520
          %v2131 = vunpack.c.h.b16 %v1520
          %v2132 = vunpack.c.l.b16 %v1521
          %v2133 = vunpack.c.h.b16 %v1521
          %v2134 = vunpack.c.l.b16 %v1522
          %v2135 = vunpack.c.h.b16 %v1522
          %v2136 = vunpack.c.l.b16 %v1523
          %v2137 = vunpack.c.h.b16 %v1523
          %v2138 = vunpack.c.l.b16 %v1524
          %v2139 = vunpack.c.h.b16 %v1524
          %v2140 = vunpack.c.l.b16 %v1525
          %v2141 = vunpack.c.h.b16 %v1525
          %v2142 = vunpack.c.l.b16 %v1526
          %v2143 = vunpack.c.h.b16 %v1526
          %v2144 = vunpack.c.l.b16 %v1527
          %v2145 = vunpack.c.h.b16 %v1527
          %v2146 = vunpack.c.l.b16 %v1528
          %v2147 = vunpack.c.h.b16 %v1528
          %v2148 = vunpack.c.l.b16 %v1529
          %v2149 = vunpack.c.h.b16 %v1529
          %v2150 = vunpack.c.l.b16 %v1530
          %v2151 = vunpack.c.h.b16 %v1530
          %v2152 = vunpack.c.l.b16 %v1531
          %v2153 = vunpack.c.h.b16 %v1531
          %v2154 = vunpack.c.l.b16 %v1532
          %v2155 = vunpack.c.h.b16 %v1532
          %v2156 = vunpack.c.l.b16 %v1533
          %v2157 = vunpack.c.h.b16 %v1533
          %v2158 = vunpack.c.l.b16 %v1534
          %v2159 = vunpack.c.h.b16 %v1534
          %v2160 = vunpack.c.l.b16 %v1535
          %v2161 = vunpack.c.h.b16 %v1535
          %v2162 = vunpack.c.l.b16 %v1536
          %v2163 = vunpack.c.h.b16 %v1536
          %v2164 = vunpack.c.l.b16 %v1537
          %v2165 = vunpack.c.h.b16 %v1537
          %v2166 = vunpack.c.l.b16 %v1538
          %v2167 = vunpack.c.h.b16 %v1538
          %v2168 = vunpack.c.l.b16 %v1539
          %v2169 = vunpack.c.h.b16 %v1539
          %v2170 = vunpack.c.l.b16 %v1540
          %v2171 = vunpack.c.h.b16 %v1540
          %v2172 = vunpack.c.l.b16 %v1541
          %v2173 = vunpack.c.h.b16 %v1541
          %v2174 = vunpack.c.l.b16 %v1542
          %v2175 = vunpack.c.h.b16 %v1542
          %v2176 = vunpack.c.l.b16 %v1543
          %v2177 = vunpack.c.h.b16 %v1543
          %v2178 = vunpack.c.l.b16 %v1544
          %v2179 = vunpack.c.h.b16 %v1544
          %v2180 = vunpack.c.l.b16 %v1545
          %v2181 = vunpack.c.h.b16 %v1545
          %v2182 = vunpack.c.l.b16 %v1546
          %v2183 = vunpack.c.h.b16 %v1546
          %v2184 = vunpack.c.l.b16 %v1547
          %v2185 = vunpack.c.h.b16 %v1547
          %v2186 = vunpack.c.l.b16 %v1548
          %v2187 = vunpack.c.h.b16 %v1548
          %v2188 = vunpack.c.l.b16 %v1549
          %v2189 = vunpack.c.h.b16 %v1549
          %v2190 = vunpack.c.l.b16 %v1550
          %v2191 = vunpack.c.h.b16 %v1550
          %v2192 = vunpack.c.l.b16 %v1551
          %v2193 = vunpack.c.h.b16 %v1551
          %v2194 = vunpack.c.l.b16 %v1552
          %v2195 = vunpack.c.h.b16 %v1552
          %v2196 = vunpack.c.l.b16 %v1553
          %v2197 = vunpack.c.h.b16 %v1553
          %v2198 = vunpack.c.l.b16 %v1554
          %v2199 = vunpack.c.h.b16 %v1554
          %v2200 = vunpack.c.l.b16 %v1555
          %v2201 = vunpack.c.h.b16 %v1555
          %v2202 = vunpack.c.l.b16 %v1556
          %v2203 = vunpack.c.h.b16 %v1556
          %v2204 = vunpack.c.l.b16 %v1557
          %v2205 = vunpack.c.h.b16 %v1557
          %v2206 = vunpack.c.l.b16 %v1558
          %v2207 = vunpack.c.h.b16 %v1558
          %v2208 = vunpack.c.l.b16 %v1559
          %v2209 = vunpack.c.h.b16 %v1559
          %v2210 = vunpack.c.l.b16 %v1560
          %v2211 = vunpack.c.h.b16 %v1560
          %v2212 = vunpack.c.l.b16 %v1561
          %v2213 = vunpack.c.h.b16 %v1561
          %v2214 = vunpack.c.l.b16 %v1562
          %v2215 = vunpack.c.h.b16 %v1562
          %v2216 = vunpack.c.l.b16 %v1563
          %v2217 = vunpack.c.h.b16 %v1563
          %v2218 = vunpack.c.l.b16 %v1564
          %v2219 = vunpack.c.h.b16 %v1564
          %v2220 = vunpack.c.l.b16 %v1565
          %v2221 = vunpack.c.h.b16 %v1565
          %v2222 = vunpack.c.l.b16 %v1566
          %v2223 = vunpack.c.h.b16 %v1566
          %v2224 = vunpack.c.l.b16 %v1567
          %v2225 = vunpack.c.h.b16 %v1567
          %v2226 = vunpack.c.l.b16 %v1568
          %v2227 = vunpack.c.h.b16 %v1568
          %v2228 = vunpack.c.l.b16 %v1569
          %v2229 = vunpack.c.h.b16 %v1569
          %v2230 = vunpack.c.l.b16 %v1570
          %v2231 = vunpack.c.h.b16 %v1570
          %v2232 = vunpack.c.l.b16 %v1571
          %v2233 = vunpack.c.h.b16 %v1571
          %v2234 = vunpack.c.l.b16 %v1572
          %v2235 = vunpack.c.h.b16 %v1572
          %v2236 = vunpack.c.l.b16 %v1573
          %v2237 = vunpack.c.h.b16 %v1573
          %v2238 = vunpack.c.l.b16 %v1574
          %v2239 = vunpack.c.h.b16 %v1574
          %v2240 = vunpack.c.l.b16 %v1575
          %v2241 = vunpack.c.h.b16 %v1575
          %v2242 = vunpack.c.l.b16 %v1576
          %v2243 = vunpack.c.h.b16 %v1576
          %v2244 = vunpack.c.l.b16 %v1577
          %v2245 = vunpack.c.h.b16 %v1577
          %v2246 = vunpack.c.l.b16 %v1578
          %v2247 = vunpack.c.h.b16 %v1578
          %v2248 = vunpack.c.l.b16 %v1579
          %v2249 = vunpack.c.h.b16 %v1579
          %v2250 = vunpack.c.l.b16 %v1580
          %v2251 = vunpack.c.h.b16 %v1580
          %v2252 = vunpack.c.l.b16 %v1581
          %v2253 = vunpack.c.h.b16 %v1581
          %v2254 = vunpack.c.l.b16 %v1582
          %v2255 = vunpack.c.h.b16 %v1582
          %v2256 = vunpack.c.l.b16 %v1583
          %v2257 = vunpack.c.h.b16 %v1583
          %v2258 = vunpack.c.l.b16 %v1584
          %v2259 = vunpack.c.h.b16 %v1584
          %v2260 = vunpack.c.l.b16 %v1585
          %v2261 = vunpack.c.h.b16 %v1585
          %v2262 = vunpack.c.l.b16 %v1586
          %v2263 = vunpack.c.h.b16 %v1586
          %v2264 = vunpack.c.l.b16 %v1587
          %v2265 = vunpack.c.h.b16 %v1587
          %v2266 = vunpack.c.l.b16 %v1588
          %v2267 = vunpack.c.h.b16 %v1588
          %v2268 = vunpack.c.l.b16 %v1589
          %v2269 = vunpack.c.h.b16 %v1589
          %v2270 = vunpack.c.l.b16 %v1590
          %v2271 = vunpack.c.h.b16 %v1590
          %v2272 = vunpack.c.l.b16 %v1591
          %v2273 = vunpack.c.h.b16 %v1591
          %v2274 = vunpack.c.l.b16 %v1592
          %v2275 = vunpack.c.h.b16 %v1592
          %v2276 = vunpack.c.l.b16 %v1593
          %v2277 = vunpack.c.h.b16 %v1593
          %v2278 = vunpack.c.l.b16 %v1594
          %v2279 = vunpack.c.h.b16 %v1594
          %v2280 = vunpack.c.l.b16 %v1595
          %v2281 = vunpack.c.h.b16 %v1595
          %v2282 = vunpack.c.l.b16 %v1596
          %v2283 = vunpack.c.h.b16 %v1596
          %v2284 = vunpack.c.l.b16 %v1597
          %v2285 = vunpack.c.h.b16 %v1597
          %v2286 = vunpack.c.l.b16 %v1598
          %v2287 = vunpack.c.h.b16 %v1598
          %v2288 = vunpack.c.l.b16 %v1599
          %v2289 = vunpack.c.h.b16 %v1599
          %v2290 = vunpack.c.l.b16 %v1600
          %v2291 = vunpack.c.h.b16 %v1600
          %v2292 = vunpack.c.l.b16 %v1601
          %v2293 = vunpack.c.h.b16 %v1601
          %v2294 = vunpack.c.l.b16 %v1602
          %v2295 = vunpack.c.h.b16 %v1602
          %v2296 = vunpack.c.l.b16 %v1603
          %v2297 = vunpack.c.h.b16 %v1603
          %v2298 = vunpack.c.l.b16 %v1604
          %v2299 = vunpack.c.h.b16 %v1604
          %v2300 = vunpack.c.l.b16 %v1605
          %v2301 = vunpack.c.h.b16 %v1605
          %v2302 = vunpack.c.l.b16 %v1606
          %v2303 = vunpack.c.h.b16 %v1606
          %v2304 = vunpack.c.l.b16 %v1607
          %v2305 = vunpack.c.h.b16 %v1607
          %v2306 = vunpack.c.l.b16 %v1608
          %v2307 = vunpack.c.h.b16 %v1608
          %v2308 = vunpack.c.l.b16 %v1609
          %v2309 = vunpack.c.h.b16 %v1609
          %v2310 = vunpack.c.l.b16 %v1610
          %v2311 = vunpack.c.h.b16 %v1610
          %v2312 = vunpack.c.l.b16 %v1611
          %v2313 = vunpack.c.h.b16 %v1611
          %v2314 = vunpack.c.l.b16 %v1612
          %v2315 = vunpack.c.h.b16 %v1612
          %v2316 = vunpack.c.l.b16 %v1613
          %v2317 = vunpack.c.h.b16 %v1613
          %v2318 = vunpack.c.l.b16 %v1614
          %v2319 = vunpack.c.h.b16 %v1614
          %v2320 = vunpack.c.l.b16 %v1615
          %v2321 = vunpack.c.h.b16 %v1615
          %v2322 = vunpack.c.l.b16 %v1616
          %v2323 = vunpack.c.h.b16 %v1616
          %v2324 = vunpack.c.l.b16 %v1617
          %v2325 = vunpack.c.h.b16 %v1617
          %v2326 = vunpack.c.l.b16 %v1618
          %v2327 = vunpack.c.h.b16 %v1618
          %v2328 = vunpack.c.l.b16 %v1619
          %v2329 = vunpack.c.h.b16 %v1619
          %v2330 = vunpack.c.l.b16 %v1620
          %v2331 = vunpack.c.h.b16 %v1620
          %v2332 = vunpack.c.l.b16 %v1621
          %v2333 = vunpack.c.h.b16 %v1621
          %v2334 = vunpack.c.l.b16 %v1622
          %v2335 = vunpack.c.h.b16 %v1622
          %v2336 = vunpack.c.l.b16 %v1623
          %v2337 = vunpack.c.h.b16 %v1623
          %v2338 = vunpack.c.l.b16 %v1624
          %v2339 = vunpack.c.h.b16 %v1624
          %v2340 = vunpack.c.l.b16 %v1625
          %v2341 = vunpack.c.h.b16 %v1625
          %v2342 = vunpack.c.l.b16 %v1626
          %v2343 = vunpack.c.h.b16 %v1626
          %v2344 = vunpack.c.l.b16 %v1627
          %v2345 = vunpack.c.h.b16 %v1627
          %v2346 = vunpack.c.l.b16 %v1628
          %v2347 = vunpack.c.h.b16 %v1628
          %v2348 = vunpack.c.l.b16 %v1629
          %v2349 = vunpack.c.h.b16 %v1629
          %v2350 = vunpack.c.l.b16 %v1630
          %v2351 = vunpack.c.h.b16 %v1630
          %v2352 = vunpack.c.l.b16 %v1631
          %v2353 = vunpack.c.h.b16 %v1631
          %v2354 = vunpack.c.l.b16 %v1632
          %v2355 = vunpack.c.h.b16 %v1632
          %v2356 = vunpack.c.l.b16 %v1633
          %v2357 = vunpack.c.h.b16 %v1633
          %v2358 = vunpack.c.l.b16 %v1634
          %v2359 = vunpack.c.h.b16 %v1634
          %v2360 = vunpack.c.l.b16 %v1635
          %v2361 = vunpack.c.h.b16 %v1635
          %v2362 = vunpack.c.l.b16 %v1636
          %v2363 = vunpack.c.h.b16 %v1636
          %v2364 = vunpack.c.l.b16 %v1637
          %v2365 = vunpack.c.h.b16 %v1637
          %v2366 = vunpack.c.l.b16 %v1638
          %v2367 = vunpack.c.h.b16 %v1638
          %v2368 = vunpack.c.l.b16 %v1639
          %v2369 = vunpack.c.h.b16 %v1639
          %v2370 = vunpack.c.l.b16 %v1640
          %v2371 = vunpack.c.h.b16 %v1640
          %v2372 = vunpack.c.l.b16 %v1641
          %v2373 = vunpack.c.h.b16 %v1641
          %v2374 = vunpack.c.l.b16 %v1642
          %v2375 = vunpack.c.h.b16 %v1642
          %v2376 = vunpack.c.l.b16 %v1643
          %v2377 = vunpack.c.h.b16 %v1643
          %v2378 = vunpack.c.l.b16 %v1644
          %v2379 = vunpack.c.h.b16 %v1644
          %v2380 = vunpack.c.l.b16 %v1645
          %v2381 = vunpack.c.h.b16 %v1645
          %v2382 = vunpack.c.l.b16 %v1646
          %v2383 = vunpack.c.h.b16 %v1646
          %v2384 = vunpack.c.l.b16 %v1647
          %v2385 = vunpack.c.h.b16 %v1647
          %v2386 = vunpack.c.l.b16 %v1648
          %v2387 = vunpack.c.h.b16 %v1648
          %v2388 = vunpack.c.l.b16 %v1649
          %v2389 = vunpack.c.h.b16 %v1649
          %v2390 = vunpack.c.l.b16 %v1650
          %v2391 = vunpack.c.h.b16 %v1650
          %v2392 = vunpack.c.l.b16 %v1651
          %v2393 = vunpack.c.h.b16 %v1651
          %v2394 = vunpack.c.l.b16 %v1652
          %v2395 = vunpack.c.h.b16 %v1652
          %v2396 = vunpack.c.l.b16 %v1653
          %v2397 = vunpack.c.h.b16 %v1653
          %v2398 = vunpack.c.l.b16 %v1654
          %v2399 = vunpack.c.h.b16 %v1654
          %v2400 = vunpack.c.l.b16 %v1655
          %v2401 = vunpack.c.h.b16 %v1655
          %v2402 = vunpack.c.l.b16 %v1656
          %v2403 = vunpack.c.h.b16 %v1656
          %v2404 = vunpack.c.l.b16 %v1657
          %v2405 = vunpack.c.h.b16 %v1657
          %v2406 = vunpack.c.l.b16 %v1658
          %v2407 = vunpack.c.h.b16 %v1658
          %v2408 = vunpack.c.l.b16 %v1659
          %v2409 = vunpack.c.h.b16 %v1659
          %v2410 = vunpack.c.l.b16 %v1660
          %v2411 = vunpack.c.h.b16 %v1660
          %v2412 = vunpack.c.l.b16 %v1661
          %v2413 = vunpack.c.h.b16 %v1661
          %v2414 = vunpack.c.l.b16 %v1662
          %v2415 = vunpack.c.h.b16 %v1662
          %v2416 = vunpack.c.l.b16 %v1663
          %v2417 = vunpack.c.h.b16 %v1663
          %v2418 = vunpack.c.l.b16 %v1664
          %v2419 = vunpack.c.h.b16 %v1664
          %v2420 = vunpack.c.l.b16 %v1665
          %v2421 = vunpack.c.h.b16 %v1665
          %v2422 = vunpack.c.l.b16 %v1666
          %v2423 = vunpack.c.h.b16 %v1666
          %v2424 = vunpack.c.l.b16 %v1667
          %v2425 = vunpack.c.h.b16 %v1667
          %v2426 = vunpack.c.l.b16 %v1668
          %v2427 = vunpack.c.h.b16 %v1668
          %v2428 = vunpack.c.l.b16 %v1669
          %v2429 = vunpack.c.h.b16 %v1669
          %v2430 = vunpack.c.l.b16 %v1670
          %v2431 = vunpack.c.h.b16 %v1670
          %v2432 = vunpack.c.l.b16 %v1671
          %v2433 = vunpack.c.h.b16 %v1671
          %v2434 = vunpack.c.l.b16 %v1672
          %v2435 = vunpack.c.h.b16 %v1672
          %v2436 = vunpack.c.l.b16 %v1673
          %v2437 = vunpack.c.h.b16 %v1673
          %v2438 = vunpack.c.l.b16 %v1674
          %v2439 = vunpack.c.h.b16 %v1674
          %v2440 = vunpack.c.l.b16 %v1675
          %v2441 = vunpack.c.h.b16 %v1675
          %v2442 = vunpack.c.l.b16 %v1676
          %v2443 = vunpack.c.h.b16 %v1676
          %v2444 = vunpack.c.l.b16 %v1677
          %v2445 = vunpack.c.h.b16 %v1677
          %v2446 = vunpack.c.l.b16 %v1678
          %v2447 = vunpack.c.h.b16 %v1678
          %v2448 = vunpack.c.l.b16 %v1679
          %v2449 = vunpack.c.h.b16 %v1679
          %v2450 = vunpack.c.l.b16 %v1680
          %v2451 = vunpack.c.h.b16 %v1680
          %v2452 = vunpack.c.l.b16 %v1681
          %v2453 = vunpack.c.h.b16 %v1681
          %v2454 = vunpack.c.l.b16 %v1682
          %v2455 = vunpack.c.h.b16 %v1682
          %v2456 = vunpack.c.l.b16 %v1683
          %v2457 = vunpack.c.h.b16 %v1683
          %v2458 = vunpack.c.l.b16 %v1684
          %v2459 = vunpack.c.h.b16 %v1684
          %v2460 = vunpack.c.l.b16 %v1685
          %v2461 = vunpack.c.h.b16 %v1685
          %v2462 = vunpack.c.l.b16 %v1686
          %v2463 = vunpack.c.h.b16 %v1686
          %v2464 = vunpack.c.l.b16 %v1687
          %v2465 = vunpack.c.h.b16 %v1687
          %v2466 = vunpack.c.l.b16 %v1688
          %v2467 = vunpack.c.h.b16 %v1688
          %v2468 = vunpack.c.l.b16 %v1689
          %v2469 = vunpack.c.h.b16 %v1689
          %v2470 = vunpack.c.l.b16 %v1690
          %v2471 = vunpack.c.h.b16 %v1690
          %v2472 = vunpack.c.l.b16 %v1691
          %v2473 = vunpack.c.h.b16 %v1691
          %v2474 = vunpack.c.l.b16 %v1692
          %v2475 = vunpack.c.h.b16 %v1692
          %v2476 = vunpack.c.l.b16 %v1693
          %v2477 = vunpack.c.h.b16 %v1693
          %v2478 = vunpack.c.l.b16 %v1694
          %v2479 = vunpack.c.h.b16 %v1694
          %v2480 = vunpack.c.l.b16 %v1695
          %v2481 = vunpack.c.h.b16 %v1695
          %v2482 = vunpack.c.l.b16 %v1696
          %v2483 = vunpack.c.h.b16 %v1696
          %v2484 = vunpack.c.l.b16 %v1697
          %v2485 = vunpack.c.h.b16 %v1697
          %v2486 = vunpack.c.l.b16 %v1698
          %v2487 = vunpack.c.h.b16 %v1698
          %v2488 = vunpack.c.l.b16 %v1699
          %v2489 = vunpack.c.h.b16 %v1699
          %v2490 = vpack.c.b16 %v1982, %v1978
          %v2491 = vpack.c.b16 %v1983, %v1979
          %v2492 = vpack.c.b16 %v1984, %v1980
          %v2493 = vpack.c.b16 %v1985, %v1981
          %v2494 = vpack.c.b16 %v1990, %v1986
          %v2495 = vpack.c.b16 %v1991, %v1987
          %v2496 = vpack.c.b16 %v1992, %v1988
          %v2497 = vpack.c.b16 %v1993, %v1989
          %v2498 = vpack.c.b16 %v1998, %v1994
          %v2499 = vpack.c.b16 %v1999, %v1995
          %v2500 = vpack.c.b16 %v2000, %v1996
          %v2501 = vpack.c.b16 %v2001, %v1997
          %v2502 = vpack.c.b16 %v2006, %v2002
          %v2503 = vpack.c.b16 %v2007, %v2003
          %v2504 = vpack.c.b16 %v2008, %v2004
          %v2505 = vpack.c.b16 %v2009, %v2005
          %v2506 = vpack.c.b16 %v2014, %v2010
          %v2507 = vpack.c.b16 %v2015, %v2011
          %v2508 = vpack.c.b16 %v2016, %v2012
          %v2509 = vpack.c.b16 %v2017, %v2013
          %v2510 = vpack.c.b16 %v2022, %v2018
          %v2511 = vpack.c.b16 %v2023, %v2019
          %v2512 = vpack.c.b16 %v2024, %v2020
          %v2513 = vpack.c.b16 %v2025, %v2021
          %v2514 = vpack.c.b16 %v2030, %v2026
          %v2515 = vpack.c.b16 %v2031, %v2027
          %v2516 = vpack.c.b16 %v2032, %v2028
          %v2517 = vpack.c.b16 %v2033, %v2029
          %v2518 = vpack.c.b16 %v2038, %v2034
          %v2519 = vpack.c.b16 %v2039, %v2035
          %v2520 = vpack.c.b16 %v2040, %v2036
          %v2521 = vpack.c.b16 %v2041, %v2037
          %v2522 = vpack.c.b16 %v2046, %v2042
          %v2523 = vpack.c.b16 %v2047, %v2043
          %v2524 = vpack.c.b16 %v2048, %v2044
          %v2525 = vpack.c.b16 %v2049, %v2045
          %v2526 = vpack.c.b16 %v2054, %v2050
          %v2527 = vpack.c.b16 %v2055, %v2051
          %v2528 = vpack.c.b16 %v2056, %v2052
          %v2529 = vpack.c.b16 %v2057, %v2053
          %v2530 = vpack.c.b16 %v2062, %v2058
          %v2531 = vpack.c.b16 %v2063, %v2059
          %v2532 = vpack.c.b16 %v2064, %v2060
          %v2533 = vpack.c.b16 %v2065, %v2061
          %v2534 = vpack.c.b16 %v2070, %v2066
          %v2535 = vpack.c.b16 %v2071, %v2067
          %v2536 = vpack.c.b16 %v2072, %v2068
          %v2537 = vpack.c.b16 %v2073, %v2069
          %v2538 = vpack.c.b16 %v2078, %v2074
          %v2539 = vpack.c.b16 %v2079, %v2075
          %v2540 = vpack.c.b16 %v2080, %v2076
          %v2541 = vpack.c.b16 %v2081, %v2077
          %v2542 = vpack.c.b16 %v2086, %v2082
          %v2543 = vpack.c.b16 %v2087, %v2083
          %v2544 = vpack.c.b16 %v2088, %v2084
          %v2545 = vpack.c.b16 %v2089, %v2085
          %v2546 = vpack.c.b16 %v2094, %v2090
          %v2547 = vpack.c.b16 %v2095, %v2091
          %v2548 = vpack.c.b16 %v2096, %v2092
          %v2549 = vpack.c.b16 %v2097, %v2093
          %v2550 = vpack.c.b16 %v2102, %v2098
          %v2551 = vpack.c.b16 %v2103, %v2099
          %v2552 = vpack.c.b16 %v2104, %v2100
          %v2553 = vpack.c.b16 %v2105, %v2101
          %v2554 = vpack.c.b16 %v2110, %v2106
          %v2555 = vpack.c.b16 %v2111, %v2107
          %v2556 = vpack.c.b16 %v2112, %v2108
          %v2557 = vpack.c.b16 %v2113, %v2109
          %v2558 = vpack.c.b16 %v2118, %v2114
          %v2559 = vpack.c.b16 %v2119, %v2115
          %v2560 = vpack.c.b16 %v2120, %v2116
          %v2561 = vpack.c.b16 %v2121, %v2117
          %v2562 = vpack.c.b16 %v2126, %v2122
          %v2563 = vpack.c.b16 %v2127, %v2123
          %v2564 = vpack.c.b16 %v2128, %v2124
          %v2565 = vpack.c.b16 %v2129, %v2125
          %v2566 = vpack.c.b16 %v2134, %v2130
          %v2567 = vpack.c.b16 %v2135, %v2131
          %v2568 = vpack.c.b16 %v2136, %v2132
          %v2569 = vpack.c.b16 %v2137, %v2133
          %v2570 = vpack.c.b16 %v2142, %v2138
          %v2571 = vpack.c.b16 %v2143, %v2139
          %v2572 = vpack.c.b16 %v2144, %v2140
          %v2573 = vpack.c.b16 %v2145, %v2141
          %v2574 = vpack.c.b16 %v2150, %v2146
          %v2575 = vpack.c.b16 %v2151, %v2147
          %v2576 = vpack.c.b16 %v2152, %v2148
          %v2577 = vpack.c.b16 %v2153, %v2149
          %v2578 = vpack.c.b16 %v2158, %v2154
          %v2579 = vpack.c.b16 %v2159, %v2155
          %v2580 = vpack.c.b16 %v2160, %v2156
          %v2581 = vpack.c.b16 %v2161, %v2157
          %v2582 = vpack.c.b16 %v2166, %v2162
          %v2583 = vpack.c.b16 %v2167, %v2163
          %v2584 = vpack.c.b16 %v2168, %v2164
          %v2585 = vpack.c.b16 %v2169, %v2165
          %v2586 = vpack.c.b16 %v2174, %v2170
          %v2587 = vpack.c.b16 %v2175, %v2171
          %v2588 = vpack.c.b16 %v2176, %v2172
          %v2589 = vpack.c.b16 %v2177, %v2173
          %v2590 = vpack.c.b16 %v2182, %v2178
          %v2591 = vpack.c.b16 %v2183, %v2179
          %v2592 = vpack.c.b16 %v2184, %v2180
          %v2593 = vpack.c.b16 %v2185, %v2181
          %v2594 = vpack.c.b16 %v2190, %v2186
          %v2595 = vpack.c.b16 %v2191, %v2187
          %v2596 = vpack.c.b16 %v2192, %v2188
          %v2597 = vpack.c.b16 %v2193, %v2189
          %v2598 = vpack.c.b16 %v2198, %v2194
          %v2599 = vpack.c.b16 %v2199, %v2195
          %v2600 = vpack.c.b16 %v2200, %v2196
          %v2601 = vpack.c.b16 %v2201, %v2197
          %v2602 = vpack.c.b16 %v2206, %v2202
          %v2603 = vpack.c.b16 %v2207, %v2203
          %v2604 = vpack.c.b16 %v2208, %v2204
          %v2605 = vpack.c.b16 %v2209, %v2205
          %v2606 = vpack.c.b16 %v2214, %v2210
          %v2607 = vpack.c.b16 %v2215, %v2211
          %v2608 = vpack.c.b16 %v2216, %v2212
          %v2609 = vpack.c.b16 %v2217, %v2213
          %v2610 = vpack.c.b16 %v2222, %v2218
          %v2611 = vpack.c.b16 %v2223, %v2219
          %v2612 = vpack.c.b16 %v2224, %v2220
          %v2613 = vpack.c.b16 %v2225, %v2221
          %v2614 = vpack.c.b16 %v2230, %v2226
          %v2615 = vpack.c.b16 %v2231, %v2227
          %v2616 = vpack.c.b16 %v2232, %v2228
          %v2617 = vpack.c.b16 %v2233, %v2229
          %v2618 = vpack.c.b16 %v2238, %v2234
          %v2619 = vpack.c.b16 %v2239, %v2235
          %v2620 = vpack.c.b16 %v2240, %v2236
          %v2621 = vpack.c.b16 %v2241, %v2237
          %v2622 = vpack.c.b16 %v2246, %v2242
          %v2623 = vpack.c.b16 %v2247, %v2243
          %v2624 = vpack.c.b16 %v2248, %v2244
          %v2625 = vpack.c.b16 %v2249, %v2245
          %v2626 = vpack.c.b16 %v2254, %v2250
          %v2627 = vpack.c.b16 %v2255, %v2251
          %v2628 = vpack.c.b16 %v2256, %v2252
          %v2629 = vpack.c.b16 %v2257, %v2253
          %v2630 = vpack.c.b16 %v2262, %v2258
          %v2631 = vpack.c.b16 %v2263, %v2259
          %v2632 = vpack.c.b16 %v2264, %v2260
          %v2633 = vpack.c.b16 %v2265, %v2261
          %v2634 = vpack.c.b16 %v2270, %v2266
          %v2635 = vpack.c.b16 %v2271, %v2267
          %v2636 = vpack.c.b16 %v2272, %v2268
          %v2637 = vpack.c.b16 %v2273, %v2269
          %v2638 = vpack.c.b16 %v2278, %v2274
          %v2639 = vpack.c.b16 %v2279, %v2275
          %v2640 = vpack.c.b16 %v2280, %v2276
          %v2641 = vpack.c.b16 %v2281, %v2277
          %v2642 = vpack.c.b16 %v2286, %v2282
          %v2643 = vpack.c.b16 %v2287, %v2283
          %v2644 = vpack.c.b16 %v2288, %v2284
          %v2645 = vpack.c.b16 %v2289, %v2285
          %v2646 = vpack.c.b16 %v2294, %v2290
          %v2647 = vpack.c.b16 %v2295, %v2291
          %v2648 = vpack.c.b16 %v2296, %v2292
          %v2649 = vpack.c.b16 %v2297, %v2293
          %v2650 = vpack.c.b16 %v2302, %v2298
          %v2651 = vpack.c.b16 %v2303, %v2299
          %v2652 = vpack.c.b16 %v2304, %v2300
          %v2653 = vpack.c.b16 %v2305, %v2301
          %v2654 = vpack.c.b16 %v2310, %v2306
          %v2655 = vpack.c.b16 %v2311, %v2307
          %v2656 = vpack.c.b16 %v2312, %v2308
          %v2657 = vpack.c.b16 %v2313, %v2309
          %v2658 = vpack.c.b16 %v2318, %v2314
          %v2659 = vpack.c.b16 %v2319, %v2315
          %v2660 = vpack.c.b16 %v2320, %v2316
          %v2661 = vpack.c.b16 %v2321, %v2317
          %v2662 = vpack.c.b16 %v2326, %v2322
          %v2663 = vpack.c.b16 %v2327, %v2323
          %v2664 = vpack.c.b16 %v2328, %v2324
          %v2665 = vpack.c.b16 %v2329, %v2325
          %v2666 = vpack.c.b16 %v2334, %v2330
          %v2667 = vpack.c.b16 %v2335, %v2331
          %v2668 = vpack.c.b16 %v2336, %v2332
          %v2669 = vpack.c.b16 %v2337, %v2333
          %v2670 = vpack.c.b16 %v2342, %v2338
          %v2671 = vpack.c.b16 %v2343, %v2339
          %v2672 = vpack.c.b16 %v2344, %v2340
          %v2673 = vpack.c.b16 %v2345, %v2341
          %v2674 = vpack.c.b16 %v2350, %v2346
          %v2675 = vpack.c.b16 %v2351, %v2347
          %v2676 = vpack.c.b16 %v2352, %v2348
          %v2677 = vpack.c.b16 %v2353, %v2349
          %v2678 = vpack.c.b16 %v2358, %v2354
          %v2679 = vpack.c.b16 %v2359, %v2355
          %v2680 = vpack.c.b16 %v2360, %v2356
          %v2681 = vpack.c.b16 %v2361, %v2357
          %v2682 = vpack.c.b16 %v2366, %v2362
          %v2683 = vpack.c.b16 %v2367, %v2363
          %v2684 = vpack.c.b16 %v2368, %v2364
          %v2685 = vpack.c.b16 %v2369, %v2365
          %v2686 = vpack.c.b16 %v2374, %v2370
          %v2687 = vpack.c.b16 %v2375, %v2371
          %v2688 = vpack.c.b16 %v2376, %v2372
          %v2689 = vpack.c.b16 %v2377, %v2373
          %v2690 = vpack.c.b16 %v2382, %v2378
          %v2691 = vpack.c.b16 %v2383, %v2379
          %v2692 = vpack.c.b16 %v2384, %v2380
          %v2693 = vpack.c.b16 %v2385, %v2381
          %v2694 = vpack.c.b16 %v2390, %v2386
          %v2695 = vpack.c.b16 %v2391, %v2387
          %v2696 = vpack.c.b16 %v2392, %v2388
          %v2697 = vpack.c.b16 %v2393, %v2389
          %v2698 = vpack.c.b16 %v2398, %v2394
          %v2699 = vpack.c.b16 %v2399, %v2395
          %v2700 = vpack.c.b16 %v2400, %v2396
          %v2701 = vpack.c.b16 %v2401, %v2397
          %v2702 = vpack.c.b16 %v2406, %v2402
          %v2703 = vpack.c.b16 %v2407, %v2403
          %v2704 = vpack.c.b16 %v2408, %v2404
          %v2705 = vpack.c.b16 %v2409, %v2405
          %v2706 = vpack.c.b16 %v2414, %v2410
          %v2707 = vpack.c.b16 %v2415, %v2411
          %v2708 = vpack.c.b16 %v2416, %v2412
          %v2709 = vpack.c.b16 %v2417, %v2413
          %v2710 = vpack.c.b16 %v2422, %v2418
          %v2711 = vpack.c.b16 %v2423, %v2419
          %v2712 = vpack.c.b16 %v2424, %v2420
          %v2713 = vpack.c.b16 %v2425, %v2421
          %v2714 = vpack.c.b16 %v2430, %v2426
          %v2715 = vpack.c.b16 %v2431, %v2427
          %v2716 = vpack.c.b16 %v2432, %v2428
          %v2717 = vpack.c.b16 %v2433, %v2429
          %v2718 = vpack.c.b16 %v2438, %v2434
          %v2719 = vpack.c.b16 %v2439, %v2435
          %v2720 = vpack.c.b16 %v2440, %v2436
          %v2721 = vpack.c.b16 %v2441, %v2437
          %v2722 = vpack.c.b16 %v2446, %v2442
          %v2723 = vpack.c.b16 %v2447, %v2443
          %v2724 = vpack.c.b16 %v2448, %v2444
          %v2725 = vpack.c.b16 %v2449, %v2445
          %v2726 = vpack.c.b16 %v2454, %v2450
          %v2727 = vpack.c.b16 %v2455, %v2451
          %v2728 = vpack.c.b16 %v2456, %v2452
          %v2729 = vpack.c.b16 %v2457, %v2453
          %v2730 = vpack.c.b16 %v2462, %v2458
          %v2731 = vpack.c.b16 %v2463, %v2459
          %v2732 = vpack.c.b16 %v2464, %v2460
          %v2733 = vpack.c.b16 %v2465, %v2461
          %v2734 = vpack.c.b16 %v2470, %v2466
          %v2735 = vpack.c.b16 %v2471, %v2467
          %v2736 = vpack.c.b16 %v2472, %v2468
          %v2737 = vpack.c.b16 %v2473, %v2469
          %v2738 = vpack.c.b16 %v2478, %v2474
          %v2739 = vpack.c.b16 %v2479, %v2475
          %v2740 = vpack.c.b16 %v2480, %v2476
          %v2741 = vpack.c.b16 %v2481, %v2477
          %v2742 = vpack.c.b16 %v2486, %v2482
          %v2743 = vpack.c.b16 %v2487, %v2483
          %v2744 = vpack.c.b16 %v2488, %v2484
          %v2745 = vpack.c.b16 %v2489, %v2485
          %3002 = vmatprep.subr.bf16.mxu0 %v2491
          %3003 = vmatpush1.bf16.msra.mxu0 %v2490
          %3004 = vmatprep.subr.bf16.mxu0 %v2495
          %3005 = vmatpush1.bf16.msra.mxu0 %v2494
          %3006 = vmatprep.subr.bf16.mxu0 %v2499
          %3007 = vmatpush1.bf16.msra.mxu0 %v2498
          %3008 = vmatprep.subr.bf16.mxu0 %v2503
          %3009 = vmatpush1.bf16.msra.mxu0 %v2502
          %3010 = vmatprep.subr.bf16.mxu0 %v2507
          %3011 = vmatpush1.bf16.msra.mxu0 %v2506
          %3012 = vmatprep.subr.bf16.mxu0 %v2511
          %3013 = vmatpush1.bf16.msra.mxu0 %v2510
          %3014 = vmatprep.subr.bf16.mxu0 %v2515
          %3015 = vmatpush1.bf16.msra.mxu0 %v2514
          %3016 = vmatprep.subr.bf16.mxu0 %v2519
          %3017 = vmatpush1.bf16.msra.mxu0 %v2518
          %3018 = vmatprep.subr.bf16.mxu0 %v2523
          %3019 = vmatpush1.bf16.msra.mxu0 %v2522
          %3020 = vmatprep.subr.bf16.mxu0 %v2527
          %3021 = vmatpush1.bf16.msra.mxu0 %v2526
          %3022 = vmatprep.subr.bf16.mxu0 %v2531
          %3023 = vmatpush1.bf16.msra.mxu0 %v2530
          %3024 = vmatprep.subr.bf16.mxu0 %v2535
          %3025 = vmatpush1.bf16.msra.mxu0 %v2534
          %3026 = vmatprep.subr.bf16.mxu0 %v2539
          %3027 = vmatpush1.bf16.msra.mxu0 %v2538
          %3028 = vmatprep.subr.bf16.mxu0 %v2543
          %3029 = vmatpush1.bf16.msra.mxu0 %v2542
          %3030 = vmatprep.subr.bf16.mxu0 %v2547
          %3031 = vmatpush1.bf16.msra.mxu0 %v2546
          %3032 = vmatprep.subr.bf16.mxu0 %v2551
          %3033 = vmatpush1.bf16.msra.mxu0 %v2550
          %3034 = vmatprep.mubr.bf16.mxu0 %v1437
          %3035 = vmatmul.mubr.bf16.gmra.mrb[0].mxu0 %v1436
          %v3036 = vpop.f32.mrb[0].mxu0
          %v3037 = vadd.f32 %v1705, %v3036
          %v3038 = vpop.f32.mrb[0].mxu0
          %v3039 = vadd.f32 %v1709, %v3038
          %v3040 = vpop.f32.mrb[0].mxu0
          %v3041 = vpop.f32.mrb[0].mxu0
          %3042 = vdwg.mxu0
          %3043 = vmatprep.subr.bf16.mxu0 %v2555
          %3044 = vmatpush1.bf16.msra.mxu0 %v2554
          %3045 = vmatprep.subr.bf16.mxu0 %v2559
          %3046 = vmatpush1.bf16.msra.mxu0 %v2558
          %3047 = vmatprep.subr.bf16.mxu0 %v2563
          %3048 = vmatpush1.bf16.msra.mxu0 %v2562
          %3049 = vmatprep.subr.bf16.mxu0 %v2567
          %3050 = vmatpush1.bf16.msra.mxu0 %v2566
          %3051 = vmatprep.subr.bf16.mxu0 %v2571
          %3052 = vmatpush1.bf16.msra.mxu0 %v2570
          %3053 = vmatprep.subr.bf16.mxu0 %v2575
          %3054 = vmatpush1.bf16.msra.mxu0 %v2574
          %3055 = vmatprep.subr.bf16.mxu0 %v2579
          %3056 = vmatpush1.bf16.msra.mxu0 %v2578
          %3057 = vmatprep.subr.bf16.mxu0 %v2583
          %3058 = vmatpush1.bf16.msra.mxu0 %v2582
          %3059 = vmatprep.subr.bf16.mxu0 %v2587
          %3060 = vmatpush1.bf16.msra.mxu0 %v2586
          %3061 = vmatprep.subr.bf16.mxu0 %v2591
          %3062 = vmatpush1.bf16.msra.mxu0 %v2590
          %3063 = vmatprep.subr.bf16.mxu0 %v2595
          %3064 = vmatpush1.bf16.msra.mxu0 %v2594
          %3065 = vmatprep.subr.bf16.mxu0 %v2599
          %3066 = vmatpush1.bf16.msra.mxu0 %v2598
          %3067 = vmatprep.subr.bf16.mxu0 %v2603
          %3068 = vmatpush1.bf16.msra.mxu0 %v2602
          %3069 = vmatprep.subr.bf16.mxu0 %v2607
          %3070 = vmatpush1.bf16.msra.mxu0 %v2606
          %3071 = vmatprep.subr.bf16.mxu0 %v2611
          %3072 = vmatpush1.bf16.msra.mxu0 %v2610
          %3073 = vmatprep.subr.bf16.mxu0 %v2615
          %3074 = vmatpush1.bf16.msra.mxu0 %v2614
          %3075 = vmatprep.mubr.bf16.mxu0 %v1439
          %3076 = vmatmul.mubr.bf16.gmra.mrb[0].mxu0 %v1438
          %v3077 = vpop.f32.mrb[0].mxu0
          %v3078 = vadd.f32 %v3037, %v3077
          %v3079 = vpop.f32.mrb[0].mxu0
          %v3080 = vadd.f32 %v3039, %v3079
          %v3081 = vpop.f32.mrb[0].mxu0
          %v3082 = vpop.f32.mrb[0].mxu0
          %3083 = vdwg.mxu0
          %3084 = vmatprep.subr.bf16.mxu0 %v2619
          %3085 = vmatpush1.bf16.msra.mxu0 %v2618
          %3086 = vmatprep.subr.bf16.mxu0 %v2623
          %3087 = vmatpush1.bf16.msra.mxu0 %v2622
          %3088 = vmatprep.subr.bf16.mxu0 %v2627
          %3089 = vmatpush1.bf16.msra.mxu0 %v2626
          %3090 = vmatprep.subr.bf16.mxu0 %v2631
          %3091 = vmatpush1.bf16.msra.mxu0 %v2630
          %3092 = vmatprep.subr.bf16.mxu0 %v2635
          %3093 = vmatpush1.bf16.msra.mxu0 %v2634
          %3094 = vmatprep.subr.bf16.mxu0 %v2639
          %3095 = vmatpush1.bf16.msra.mxu0 %v2638
          %3096 = vmatprep.subr.bf16.mxu0 %v2643
          %3097 = vmatpush1.bf16.msra.mxu0 %v2642
          %3098 = vmatprep.subr.bf16.mxu0 %v2647
          %3099 = vmatpush1.bf16.msra.mxu0 %v2646
          %3100 = vmatprep.subr.bf16.mxu0 %v2651
          %3101 = vmatpush1.bf16.msra.mxu0 %v2650
          %3102 = vmatprep.subr.bf16.mxu0 %v2655
          %3103 = vmatpush1.bf16.msra.mxu0 %v2654
          %3104 = vmatprep.subr.bf16.mxu0 %v2659
          %3105 = vmatpush1.bf16.msra.mxu0 %v2658
          %3106 = vmatprep.subr.bf16.mxu0 %v2663
          %3107 = vmatpush1.bf16.msra.mxu0 %v2662
          %3108 = vmatprep.subr.bf16.mxu0 %v2667
          %3109 = vmatpush1.bf16.msra.mxu0 %v2666
          %3110 = vmatprep.subr.bf16.mxu0 %v2671
          %3111 = vmatpush1.bf16.msra.mxu0 %v2670
          %3112 = vmatprep.subr.bf16.mxu0 %v2675
          %3113 = vmatpush1.bf16.msra.mxu0 %v2674
          %3114 = vmatprep.subr.bf16.mxu0 %v2679
          %3115 = vmatpush1.bf16.msra.mxu0 %v2678
          %3116 = vmatprep.mubr.bf16.mxu0 %v1441
          %3117 = vmatmul.mubr.bf16.gmra.mrb[0].mxu0 %v1440
          %v3118 = vpop.f32.mrb[0].mxu0
          %v3119 = vadd.f32 %v3078, %v3118
          %v3120 = vpop.f32.mrb[0].mxu0
          %v3121 = vadd.f32 %v3080, %v3120
          %v3122 = vpop.f32.mrb[0].mxu0
          %v3123 = vpop.f32.mrb[0].mxu0
          %3124 = vdwg.mxu0
          %3125 = vmatprep.subr.bf16.mxu0 %v2683
          %3126 = vmatpush1.bf16.msra.mxu0 %v2682
          %3127 = vmatprep.subr.bf16.mxu0 %v2687
          %3128 = vmatpush1.bf16.msra.mxu0 %v2686
          %3129 = vmatprep.subr.bf16.mxu0 %v2691
          %3130 = vmatpush1.bf16.msra.mxu0 %v2690
          %3131 = vmatprep.subr.bf16.mxu0 %v2695
          %3132 = vmatpush1.bf16.msra.mxu0 %v2694
          %3133 = vmatprep.subr.bf16.mxu0 %v2699
          %3134 = vmatpush1.bf16.msra.mxu0 %v2698
          %3135 = vmatprep.subr.bf16.mxu0 %v2703
          %3136 = vmatpush1.bf16.msra.mxu0 %v2702
          %3137 = vmatprep.subr.bf16.mxu0 %v2707
          %3138 = vmatpush1.bf16.msra.mxu0 %v2706
          %3139 = vmatprep.subr.bf16.mxu0 %v2711
          %3140 = vmatpush1.bf16.msra.mxu0 %v2710
          %3141 = vmatprep.subr.bf16.mxu0 %v2715
          %3142 = vmatpush1.bf16.msra.mxu0 %v2714
          %3143 = vmatprep.subr.bf16.mxu0 %v2719
          %3144 = vmatpush1.bf16.msra.mxu0 %v2718
          %3145 = vmatprep.subr.bf16.mxu0 %v2723
          %3146 = vmatpush1.bf16.msra.mxu0 %v2722
          %3147 = vmatprep.subr.bf16.mxu0 %v2727
          %3148 = vmatpush1.bf16.msra.mxu0 %v2726
          %3149 = vmatprep.subr.bf16.mxu0 %v2731
          %3150 = vmatpush1.bf16.msra.mxu0 %v2730
          %3151 = vmatprep.subr.bf16.mxu0 %v2735
          %3152 = vmatpush1.bf16.msra.mxu0 %v2734
          %3153 = vmatprep.subr.bf16.mxu0 %v2739
          %3154 = vmatpush1.bf16.msra.mxu0 %v2738
          %3155 = vmatprep.subr.bf16.mxu0 %v2743
          %3156 = vmatpush1.bf16.msra.mxu0 %v2742
          %3157 = vmatprep.mubr.bf16.mxu0 %v1443
          %3158 = vmatmul.mubr.bf16.gmra.mrb[0].mxu0 %v1442
          %v3159 = vpop.f32.mrb[0].mxu0
          %v3160 = vadd.f32 %v3119, %v3159
          %v3161 = vpop.f32.mrb[0].mxu0
          %v3162 = vadd.f32 %v3121, %v3161
          %v3163 = vpop.f32.mrb[0].mxu0
          %v3164 = vpop.f32.mrb[0].mxu0
          %3165 = vdwg.mxu0
          %3166 = vmatprep.subr.bf16.mxu0 %v2493
          %3167 = vmatpush1.bf16.msra.mxu0 %v2492
          %3168 = vmatprep.subr.bf16.mxu0 %v2497
          %3169 = vmatpush1.bf16.msra.mxu0 %v2496
          %3170 = vmatprep.subr.bf16.mxu0 %v2501
          %3171 = vmatpush1.bf16.msra.mxu0 %v2500
          %3172 = vmatprep.subr.bf16.mxu0 %v2505
          %3173 = vmatpush1.bf16.msra.mxu0 %v2504
          %3174 = vmatprep.subr.bf16.mxu0 %v2509
          %3175 = vmatpush1.bf16.msra.mxu0 %v2508
          %3176 = vmatprep.subr.bf16.mxu0 %v2513
          %3177 = vmatpush1.bf16.msra.mxu0 %v2512
          %3178 = vmatprep.subr.bf16.mxu0 %v2517
          %3179 = vmatpush1.bf16.msra.mxu0 %v2516
          %3180 = vmatprep.subr.bf16.mxu0 %v2521
          %3181 = vmatpush1.bf16.msra.mxu0 %v2520
          %3182 = vmatprep.subr.bf16.mxu0 %v2525
          %3183 = vmatpush1.bf16.msra.mxu0 %v2524
          %3184 = vmatprep.subr.bf16.mxu0 %v2529
          %3185 = vmatpush1.bf16.msra.mxu0 %v2528
          %3186 = vmatprep.subr.bf16.mxu0 %v2533
          %3187 = vmatpush1.bf16.msra.mxu0 %v2532
          %3188 = vmatprep.subr.bf16.mxu0 %v2537
          %3189 = vmatpush1.bf16.msra.mxu0 %v2536
          %3190 = vmatprep.subr.bf16.mxu0 %v2541
          %3191 = vmatpush1.bf16.msra.mxu0 %v2540
          %3192 = vmatprep.subr.bf16.mxu0 %v2545
          %3193 = vmatpush1.bf16.msra.mxu0 %v2544
          %3194 = vmatprep.subr.bf16.mxu0 %v2549
          %3195 = vmatpush1.bf16.msra.mxu0 %v2548
          %3196 = vmatprep.subr.bf16.mxu0 %v2553
          %3197 = vmatpush1.bf16.msra.mxu0 %v2552
          %3198 = vmatprep.mubr.bf16.mxu0 %v1437
          %3199 = vmatmul.mubr.bf16.gmra.mrb[0].mxu0 %v1436
          %v3200 = vpop.f32.mrb[0].mxu0
          %v3201 = vadd.f32 %v1713, %v3200
          %v3202 = vpop.f32.mrb[0].mxu0
          %v3203 = vadd.f32 %v1717, %v3202
          %v3204 = vpop.f32.mrb[0].mxu0
          %v3205 = vpop.f32.mrb[0].mxu0
          %3206 = vdwg.mxu0
          %3207 = vmatprep.subr.bf16.mxu0 %v2557
          %3208 = vmatpush1.bf16.msra.mxu0 %v2556
          %3209 = vmatprep.subr.bf16.mxu0 %v2561
          %3210 = vmatpush1.bf16.msra.mxu0 %v2560
          %3211 = vmatprep.subr.bf16.mxu0 %v2565
          %3212 = vmatpush1.bf16.msra.mxu0 %v2564
          %3213 = vmatprep.subr.bf16.mxu0 %v2569
          %3214 = vmatpush1.bf16.msra.mxu0 %v2568
          %3215 = vmatprep.subr.bf16.mxu0 %v2573
          %3216 = vmatpush1.bf16.msra.mxu0 %v2572
          %3217 = vmatprep.subr.bf16.mxu0 %v2577
          %3218 = vmatpush1.bf16.msra.mxu0 %v2576
          %3219 = vmatprep.subr.bf16.mxu0 %v2581
          %3220 = vmatpush1.bf16.msra.mxu0 %v2580
          %3221 = vmatprep.subr.bf16.mxu0 %v2585
          %3222 = vmatpush1.bf16.msra.mxu0 %v2584
          %3223 = vmatprep.subr.bf16.mxu0 %v2589
          %3224 = vmatpush1.bf16.msra.mxu0 %v2588
          %3225 = vmatprep.subr.bf16.mxu0 %v2593
          %3226 = vmatpush1.bf16.msra.mxu0 %v2592
          %3227 = vmatprep.subr.bf16.mxu0 %v2597
          %3228 = vmatpush1.bf16.msra.mxu0 %v2596
          %3229 = vmatprep.subr.bf16.mxu0 %v2601
          %3230 = vmatpush1.bf16.msra.mxu0 %v2600
          %3231 = vmatprep.subr.bf16.mxu0 %v2605
          %3232 = vmatpush1.bf16.msra.mxu0 %v2604
          %3233 = vmatprep.subr.bf16.mxu0 %v2609
          %3234 = vmatpush1.bf16.msra.mxu0 %v2608
          %3235 = vmatprep.subr.bf16.mxu0 %v2613
          %3236 = vmatpush1.bf16.msra.mxu0 %v2612
          %3237 = vmatprep.subr.bf16.mxu0 %v2617
          %3238 = vmatpush1.bf16.msra.mxu0 %v2616
          %3239 = vmatprep.mubr.bf16.mxu0 %v1439
          %3240 = vmatmul.mubr.bf16.gmra.mrb[0].mxu0 %v1438
          %v3241 = vpop.f32.mrb[0].mxu0
          %v3242 = vadd.f32 %v3201, %v3241
          %v3243 = vpop.f32.mrb[0].mxu0
          %v3244 = vadd.f32 %v3203, %v3243
          %v3245 = vpop.f32.mrb[0].mxu0
          %v3246 = vpop.f32.mrb[0].mxu0
          %3247 = vdwg.mxu0
          %3248 = vmatprep.subr.bf16.mxu0 %v2621
          %3249 = vmatpush1.bf16.msra.mxu0 %v2620
          %3250 = vmatprep.subr.bf16.mxu0 %v2625
          %3251 = vmatpush1.bf16.msra.mxu0 %v2624
          %3252 = vmatprep.subr.bf16.mxu0 %v2629
          %3253 = vmatpush1.bf16.msra.mxu0 %v2628
          %3254 = vmatprep.subr.bf16.mxu0 %v2633
          %3255 = vmatpush1.bf16.msra.mxu0 %v2632
          %3256 = vmatprep.subr.bf16.mxu0 %v2637
          %3257 = vmatpush1.bf16.msra.mxu0 %v2636
          %3258 = vmatprep.subr.bf16.mxu0 %v2641
          %3259 = vmatpush1.bf16.msra.mxu0 %v2640
          %3260 = vmatprep.subr.bf16.mxu0 %v2645
          %3261 = vmatpush1.bf16.msra.mxu0 %v2644
          %3262 = vmatprep.subr.bf16.mxu0 %v2649
          %3263 = vmatpush1.bf16.msra.mxu0 %v2648
          %3264 = vmatprep.subr.bf16.mxu0 %v2653
          %3265 = vmatpush1.bf16.msra.mxu0 %v2652
          %3266 = vmatprep.subr.bf16.mxu0 %v2657
          %3267 = vmatpush1.bf16.msra.mxu0 %v2656
          %3268 = vmatprep.subr.bf16.mxu0 %v2661
          %3269 = vmatpush1.bf16.msra.mxu0 %v2660
          %3270 = vmatprep.subr.bf16.mxu0 %v2665
          %3271 = vmatpush1.bf16.msra.mxu0 %v2664
          %3272 = vmatprep.subr.bf16.mxu0 %v2669
          %3273 = vmatpush1.bf16.msra.mxu0 %v2668
          %3274 = vmatprep.subr.bf16.mxu0 %v2673
          %3275 = vmatpush1.bf16.msra.mxu0 %v2672
          %3276 = vmatprep.subr.bf16.mxu0 %v2677
          %3277 = vmatpush1.bf16.msra.mxu0 %v2676
          %3278 = vmatprep.subr.bf16.mxu0 %v2681
          %3279 = vmatpush1.bf16.msra.mxu0 %v2680
          %3280 = vmatprep.mubr.bf16.mxu0 %v1441
          %3281 = vmatmul.mubr.bf16.gmra.mrb[0].mxu0 %v1440
          %v3282 = vpop.f32.mrb[0].mxu0
          %v3283 = vadd.f32 %v3242, %v3282
          %v3284 = vpop.f32.mrb[0].mxu0
          %v3285 = vadd.f32 %v3244, %v3284
          %v3286 = vpop.f32.mrb[0].mxu0
          %v3287 = vpop.f32.mrb[0].mxu0
          %3288 = vdwg.mxu0
          %3289 = vmatprep.subr.bf16.mxu0 %v2685
          %3290 = vmatpush1.bf16.msra.mxu0 %v2684
          %3291 = vmatprep.subr.bf16.mxu0 %v2689
          %3292 = vmatpush1.bf16.msra.mxu0 %v2688
          %3293 = vmatprep.subr.bf16.mxu0 %v2693
          %3294 = vmatpush1.bf16.msra.mxu0 %v2692
          %3295 = vmatprep.subr.bf16.mxu0 %v2697
          %3296 = vmatpush1.bf16.msra.mxu0 %v2696
          %3297 = vmatprep.subr.bf16.mxu0 %v2701
          %3298 = vmatpush1.bf16.msra.mxu0 %v2700
          %3299 = vmatprep.subr.bf16.mxu0 %v2705
          %3300 = vmatpush1.bf16.msra.mxu0 %v2704
          %3301 = vmatprep.subr.bf16.mxu0 %v2709
          %3302 = vmatpush1.bf16.msra.mxu0 %v2708
          %3303 = vmatprep.subr.bf16.mxu0 %v2713
          %3304 = vmatpush1.bf16.msra.mxu0 %v2712
          %3305 = vmatprep.subr.bf16.mxu0 %v2717
          %3306 = vmatpush1.bf16.msra.mxu0 %v2716
          %3307 = vmatprep.subr.bf16.mxu0 %v2721
          %3308 = vmatpush1.bf16.msra.mxu0 %v2720
          %3309 = vmatprep.subr.bf16.mxu0 %v2725
          %3310 = vmatpush1.bf16.msra.mxu0 %v2724
          %3311 = vmatprep.subr.bf16.mxu0 %v2729
          %3312 = vmatpush1.bf16.msra.mxu0 %v2728
          %3313 = vmatprep.subr.bf16.mxu0 %v2733
          %3314 = vmatpush1.bf16.msra.mxu0 %v2732
          %3315 = vmatprep.subr.bf16.mxu0 %v2737
          %3316 = vmatpush1.bf16.msra.mxu0 %v2736
          %3317 = vmatprep.subr.bf16.mxu0 %v2741
          %3318 = vmatpush1.bf16.msra.mxu0 %v2740
          %3319 = vmatprep.subr.bf16.mxu0 %v2745
          %3320 = vmatpush1.bf16.msra.mxu0 %v2744
          %3321 = vmatprep.mubr.bf16.mxu0 %v1443
          %3322 = vmatmul.mubr.bf16.gmra.mrb[0].mxu0 %v1442
          %v3323 = vpop.f32.mrb[0].mxu0
          %v3324 = vadd.f32 %v3283, %v3323
          %v3325 = vpop.f32.mrb[0].mxu0
          %v3326 = vadd.f32 %v3285, %v3325
          %v3327 = vpop.f32.mrb[0].mxu0
          %v3328 = vpop.f32.mrb[0].mxu0
          %3329 = vdwg.mxu0
          %v3330 = vmax.f32 %v3160, 0.0
          %v3331 = vmax.f32 %v3162, 0.0
          %v3332 = vmax.f32 %v3324, 0.0
          %v3333 = vmax.f32 %v3326, 0.0
          %v3334 = vpack.c.bf16 %v3330, %v3330
          %v3335 = vpack.c.bf16 %v3331, %v3331
          %v3336 = vpack.c.bf16 %v3332, %v3332
          %v3337 = vpack.c.bf16 %v3333, %v3333
          %v3338 = vld [vmem:[#allocation8] sm:$0xff]
          %v3339 = vld [vmem:[#allocation8 + $0x8] sm:$0xff]
          %v3340 = vld [vmem:[#allocation8 + $0x10] sm:$0xff]
          %v3341 = vld [vmem:[#allocation8 + $0x18] sm:$0xff]
          %v3342 = vld [vmem:[#allocation8 + $0x20] sm:$0xff]
          %v3343 = vld [vmem:[#allocation8 + $0x28] sm:$0xff]
          %v3344 = vld [vmem:[#allocation8 + $0x30] sm:$0xff]
          %v3345 = vld [vmem:[#allocation8 + $0x38] sm:$0xff]
          %v3346 = vld [vmem:[#allocation8 + $0x40] sm:$0xff]
          %v3347 = vld [vmem:[#allocation8 + $0x48] sm:$0xff]
          %v3348 = vld [vmem:[#allocation8 + $0x50] sm:$0xff]
          %v3349 = vld [vmem:[#allocation8 + $0x58] sm:$0xff]
          %v3350 = vld [vmem:[#allocation8 + $0x60] sm:$0xff]
          %v3351 = vld [vmem:[#allocation8 + $0x68] sm:$0xff]
          %v3352 = vld [vmem:[#allocation8 + $0x70] sm:$0xff]
          %v3353 = vld [vmem:[#allocation8 + $0x78] sm:$0xff]
          %v3354 = vld [vmem:[#allocation8 + $0x80] sm:$0xff]
          %v3355 = vld [vmem:[#allocation8 + $0x88] sm:$0xff]
          %v3356 = vld [vmem:[#allocation8 + $0x90] sm:$0xff]
          %v3357 = vld [vmem:[#allocation8 + $0x98] sm:$0xff]
          %v3358 = vld [vmem:[#allocation8 + $0xa0] sm:$0xff]
          %v3359 = vld [vmem:[#allocation8 + $0xa8] sm:$0xff]
          %v3360 = vld [vmem:[#allocation8 + $0xb0] sm:$0xff]
          %v3361 = vld [vmem:[#allocation8 + $0xb8] sm:$0xff]
          %v3362 = vld [vmem:[#allocation8 + $0xc0] sm:$0xff]
          %v3363 = vld [vmem:[#allocation8 + $0xc8] sm:$0xff]
          %v3364 = vld [vmem:[#allocation8 + $0xd0] sm:$0xff]
          %v3365 = vld [vmem:[#allocation8 + $0xd8] sm:$0xff]
          %v3366 = vld [vmem:[#allocation8 + $0xe0] sm:$0xff]
          %v3367 = vld [vmem:[#allocation8 + $0xe8] sm:$0xff]
          %v3368 = vld [vmem:[#allocation8 + $0xf0] sm:$0xff]
          %v3369 = vld [vmem:[#allocation8 + $0xf8] sm:$0xff]
          %v3370 = vld [vmem:[#allocation8 + $0x100] sm:$0xff]
          %v3371 = vld [vmem:[#allocation8 + $0x108] sm:$0xff]
          %v3372 = vld [vmem:[#allocation8 + $0x110] sm:$0xff]
          %v3373 = vld [vmem:[#allocation8 + $0x118] sm:$0xff]
          %v3374 = vld [vmem:[#allocation8 + $0x120] sm:$0xff]
          %v3375 = vld [vmem:[#allocation8 + $0x128] sm:$0xff]
          %v3376 = vld [vmem:[#allocation8 + $0x130] sm:$0xff]
          %v3377 = vld [vmem:[#allocation8 + $0x138] sm:$0xff]
          %v3378 = vld [vmem:[#allocation8 + $0x140] sm:$0xff]
          %v3379 = vld [vmem:[#allocation8 + $0x148] sm:$0xff]
          %v3380 = vld [vmem:[#allocation8 + $0x150] sm:$0xff]
          %v3381 = vld [vmem:[#allocation8 + $0x158] sm:$0xff]
          %v3382 = vld [vmem:[#allocation8 + $0x160] sm:$0xff]
          %v3383 = vld [vmem:[#allocation8 + $0x168] sm:$0xff]
          %v3384 = vld [vmem:[#allocation8 + $0x170] sm:$0xff]
          %v3385 = vld [vmem:[#allocation8 + $0x178] sm:$0xff]
          %v3386 = vld [vmem:[#allocation8 + $0x180] sm:$0xff]
          %v3387 = vld [vmem:[#allocation8 + $0x188] sm:$0xff]
          %v3388 = vld [vmem:[#allocation8 + $0x190] sm:$0xff]
          %v3389 = vld [vmem:[#allocation8 + $0x198] sm:$0xff]
          %v3390 = vld [vmem:[#allocation8 + $0x1a0] sm:$0xff]
          %v3391 = vld [vmem:[#allocation8 + $0x1a8] sm:$0xff]
          %v3392 = vld [vmem:[#allocation8 + $0x1b0] sm:$0xff]
          %v3393 = vld [vmem:[#allocation8 + $0x1b8] sm:$0xff]
          %v3394 = vld [vmem:[#allocation8 + $0x1c0] sm:$0xff]
          %v3395 = vld [vmem:[#allocation8 + $0x1c8] sm:$0xff]
          %v3396 = vld [vmem:[#allocation8 + $0x1d0] sm:$0xff]
          %v3397 = vld [vmem:[#allocation8 + $0x1d8] sm:$0xff]
          %v3398 = vld [vmem:[#allocation8 + $0x1e0] sm:$0xff]
          %v3399 = vld [vmem:[#allocation8 + $0x1e8] sm:$0xff]
          %v3400 = vld [vmem:[#allocation8 + $0x1f0] sm:$0xff]
          %v3401 = vld [vmem:[#allocation8 + $0x1f8] sm:$0xff]
          %v3402 = vld [vmem:[%s10] sm:$0x3]
          %v3404 = vlaneseq
          %v3405 = vshrl.u32 %v3404, 7
          %v3406 = vsub.s32 0, %v3405
          %v3407 = vrot.slane %v3402, %v3406
          %v3408 = vlaneseq
          %v3409 = vshrl.u32 %v3408, 7
          %v3410 = vsub.s32 1, %v3409
          %v3411 = vrot.slane %v3402, %v3410
          %v3478 = vunpack.c.l.b16 %v3338
          %v3479 = vunpack.c.h.b16 %v3338
          %v3480 = vunpack.c.l.b16 %v3339
          %v3481 = vunpack.c.h.b16 %v3339
          %v3482 = vunpack.c.l.b16 %v3340
          %v3483 = vunpack.c.h.b16 %v3340
          %v3484 = vunpack.c.l.b16 %v3341
          %v3485 = vunpack.c.h.b16 %v3341
          %v3486 = vunpack.c.l.b16 %v3342
          %v3487 = vunpack.c.h.b16 %v3342
          %v3488 = vunpack.c.l.b16 %v3343
          %v3489 = vunpack.c.h.b16 %v3343
          %v3490 = vunpack.c.l.b16 %v3344
          %v3491 = vunpack.c.h.b16 %v3344
          %v3492 = vunpack.c.l.b16 %v3345
          %v3493 = vunpack.c.h.b16 %v3345
          %v3494 = vunpack.c.l.b16 %v3346
          %v3495 = vunpack.c.h.b16 %v3346
          %v3496 = vunpack.c.l.b16 %v3347
          %v3497 = vunpack.c.h.b16 %v3347
          %v3498 = vunpack.c.l.b16 %v3348
          %v3499 = vunpack.c.h.b16 %v3348
          %v3500 = vunpack.c.l.b16 %v3349
          %v3501 = vunpack.c.h.b16 %v3349
          %v3502 = vunpack.c.l.b16 %v3350
          %v3503 = vunpack.c.h.b16 %v3350
          %v3504 = vunpack.c.l.b16 %v3351
          %v3505 = vunpack.c.h.b16 %v3351
          %v3506 = vunpack.c.l.b16 %v3352
          %v3507 = vunpack.c.h.b16 %v3352
          %v3508 = vunpack.c.l.b16 %v3353
          %v3509 = vunpack.c.h.b16 %v3353
          %v3510 = vunpack.c.l.b16 %v3354
          %v3511 = vunpack.c.h.b16 %v3354
          %v3512 = vunpack.c.l.b16 %v3355
          %v3513 = vunpack.c.h.b16 %v3355
          %v3514 = vunpack.c.l.b16 %v3356
          %v3515 = vunpack.c.h.b16 %v3356
          %v3516 = vunpack.c.l.b16 %v3357
          %v3517 = vunpack.c.h.b16 %v3357
          %v3518 = vunpack.c.l.b16 %v3358
          %v3519 = vunpack.c.h.b16 %v3358
          %v3520 = vunpack.c.l.b16 %v3359
          %v3521 = vunpack.c.h.b16 %v3359
          %v3522 = vunpack.c.l.b16 %v3360
          %v3523 = vunpack.c.h.b16 %v3360
          %v3524 = vunpack.c.l.b16 %v3361
          %v3525 = vunpack.c.h.b16 %v3361
          %v3526 = vunpack.c.l.b16 %v3362
          %v3527 = vunpack.c.h.b16 %v3362
          %v3528 = vunpack.c.l.b16 %v3363
          %v3529 = vunpack.c.h.b16 %v3363
          %v3530 = vunpack.c.l.b16 %v3364
          %v3531 = vunpack.c.h.b16 %v3364
          %v3532 = vunpack.c.l.b16 %v3365
          %v3533 = vunpack.c.h.b16 %v3365
          %v3534 = vunpack.c.l.b16 %v3366
          %v3535 = vunpack.c.h.b16 %v3366
          %v3536 = vunpack.c.l.b16 %v3367
          %v3537 = vunpack.c.h.b16 %v3367
          %v3538 = vunpack.c.l.b16 %v3368
          %v3539 = vunpack.c.h.b16 %v3368
          %v3540 = vunpack.c.l.b16 %v3369
          %v3541 = vunpack.c.h.b16 %v3369
          %v3542 = vunpack.c.l.b16 %v3370
          %v3543 = vunpack.c.h.b16 %v3370
          %v3544 = vunpack.c.l.b16 %v3371
          %v3545 = vunpack.c.h.b16 %v3371
          %v3546 = vunpack.c.l.b16 %v3372
          %v3547 = vunpack.c.h.b16 %v3372
          %v3548 = vunpack.c.l.b16 %v3373
          %v3549 = vunpack.c.h.b16 %v3373
          %v3550 = vunpack.c.l.b16 %v3374
          %v3551 = vunpack.c.h.b16 %v3374
          %v3552 = vunpack.c.l.b16 %v3375
          %v3553 = vunpack.c.h.b16 %v3375
          %v3554 = vunpack.c.l.b16 %v3376
          %v3555 = vunpack.c.h.b16 %v3376
          %v3556 = vunpack.c.l.b16 %v3377
          %v3557 = vunpack.c.h.b16 %v3377
          %v3558 = vunpack.c.l.b16 %v3378
          %v3559 = vunpack.c.h.b16 %v3378
          %v3560 = vunpack.c.l.b16 %v3379
          %v3561 = vunpack.c.h.b16 %v3379
          %v3562 = vunpack.c.l.b16 %v3380
          %v3563 = vunpack.c.h.b16 %v3380
          %v3564 = vunpack.c.l.b16 %v3381
          %v3565 = vunpack.c.h.b16 %v3381
          %v3566 = vunpack.c.l.b16 %v3382
          %v3567 = vunpack.c.h.b16 %v3382
          %v3568 = vunpack.c.l.b16 %v3383
          %v3569 = vunpack.c.h.b16 %v3383
          %v3570 = vunpack.c.l.b16 %v3384
          %v3571 = vunpack.c.h.b16 %v3384
          %v3572 = vunpack.c.l.b16 %v3385
          %v3573 = vunpack.c.h.b16 %v3385
          %v3574 = vunpack.c.l.b16 %v3386
          %v3575 = vunpack.c.h.b16 %v3386
          %v3576 = vunpack.c.l.b16 %v3387
          %v3577 = vunpack.c.h.b16 %v3387
          %v3578 = vunpack.c.l.b16 %v3388
          %v3579 = vunpack.c.h.b16 %v3388
          %v3580 = vunpack.c.l.b16 %v3389
          %v3581 = vunpack.c.h.b16 %v3389
          %v3582 = vunpack.c.l.b16 %v3390
          %v3583 = vunpack.c.h.b16 %v3390
          %v3584 = vunpack.c.l.b16 %v3391
          %v3585 = vunpack.c.h.b16 %v3391
          %v3586 = vunpack.c.l.b16 %v3392
          %v3587 = vunpack.c.h.b16 %v3392
          %v3588 = vunpack.c.l.b16 %v3393
          %v3589 = vunpack.c.h.b16 %v3393
          %v3590 = vunpack.c.l.b16 %v3394
          %v3591 = vunpack.c.h.b16 %v3394
          %v3592 = vunpack.c.l.b16 %v3395
          %v3593 = vunpack.c.h.b16 %v3395
          %v3594 = vunpack.c.l.b16 %v3396
          %v3595 = vunpack.c.h.b16 %v3396
          %v3596 = vunpack.c.l.b16 %v3397
          %v3597 = vunpack.c.h.b16 %v3397
          %v3598 = vunpack.c.l.b16 %v3398
          %v3599 = vunpack.c.h.b16 %v3398
          %v3600 = vunpack.c.l.b16 %v3399
          %v3601 = vunpack.c.h.b16 %v3399
          %v3602 = vunpack.c.l.b16 %v3400
          %v3603 = vunpack.c.h.b16 %v3400
          %v3604 = vunpack.c.l.b16 %v3401
          %v3605 = vunpack.c.h.b16 %v3401
          %v3606 = vpack.c.b16 %v3480, %v3478
          %v3607 = vpack.c.b16 %v3481, %v3479
          %v3608 = vpack.c.b16 %v3484, %v3482
          %v3609 = vpack.c.b16 %v3485, %v3483
          %v3610 = vpack.c.b16 %v3488, %v3486
          %v3611 = vpack.c.b16 %v3489, %v3487
          %v3612 = vpack.c.b16 %v3492, %v3490
          %v3613 = vpack.c.b16 %v3493, %v3491
          %v3614 = vpack.c.b16 %v3496, %v3494
          %v3615 = vpack.c.b16 %v3497, %v3495
          %v3616 = vpack.c.b16 %v3500, %v3498
          %v3617 = vpack.c.b16 %v3501, %v3499
          %v3618 = vpack.c.b16 %v3504, %v3502
          %v3619 = vpack.c.b16 %v3505, %v3503
          %v3620 = vpack.c.b16 %v3508, %v3506
          %v3621 = vpack.c.b16 %v3509, %v3507
          %v3622 = vpack.c.b16 %v3512, %v3510
          %v3623 = vpack.c.b16 %v3513, %v3511
          %v3624 = vpack.c.b16 %v3516, %v3514
          %v3625 = vpack.c.b16 %v3517, %v3515
          %v3626 = vpack.c.b16 %v3520, %v3518
          %v3627 = vpack.c.b16 %v3521, %v3519
          %v3628 = vpack.c.b16 %v3524, %v3522
          %v3629 = vpack.c.b16 %v3525, %v3523
          %v3630 = vpack.c.b16 %v3528, %v3526
          %v3631 = vpack.c.b16 %v3529, %v3527
          %v3632 = vpack.c.b16 %v3532, %v3530
          %v3633 = vpack.c.b16 %v3533, %v3531
          %v3634 = vpack.c.b16 %v3536, %v3534
          %v3635 = vpack.c.b16 %v3537, %v3535
          %v3636 = vpack.c.b16 %v3540, %v3538
          %v3637 = vpack.c.b16 %v3541, %v3539
          %v3638 = vpack.c.b16 %v3544, %v3542
          %v3639 = vpack.c.b16 %v3545, %v3543
          %v3640 = vpack.c.b16 %v3548, %v3546
          %v3641 = vpack.c.b16 %v3549, %v3547
          %v3642 = vpack.c.b16 %v3552, %v3550
          %v3643 = vpack.c.b16 %v3553, %v3551
          %v3644 = vpack.c.b16 %v3556, %v3554
          %v3645 = vpack.c.b16 %v3557, %v3555
          %v3646 = vpack.c.b16 %v3560, %v3558
          %v3647 = vpack.c.b16 %v3561, %v3559
          %v3648 = vpack.c.b16 %v3564, %v3562
          %v3649 = vpack.c.b16 %v3565, %v3563
          %v3650 = vpack.c.b16 %v3568, %v3566
          %v3651 = vpack.c.b16 %v3569, %v3567
          %v3652 = vpack.c.b16 %v3572, %v3570
          %v3653 = vpack.c.b16 %v3573, %v3571
          %v3654 = vpack.c.b16 %v3576, %v3574
          %v3655 = vpack.c.b16 %v3577, %v3575
          %v3656 = vpack.c.b16 %v3580, %v3578
          %v3657 = vpack.c.b16 %v3581, %v3579
          %v3658 = vpack.c.b16 %v3584, %v3582
          %v3659 = vpack.c.b16 %v3585, %v3583
          %v3660 = vpack.c.b16 %v3588, %v3586
          %v3661 = vpack.c.b16 %v3589, %v3587
          %v3662 = vpack.c.b16 %v3592, %v3590
          %v3663 = vpack.c.b16 %v3593, %v3591
          %v3664 = vpack.c.b16 %v3596, %v3594
          %v3665 = vpack.c.b16 %v3597, %v3595
          %v3666 = vpack.c.b16 %v3600, %v3598
          %v3667 = vpack.c.b16 %v3601, %v3599
          %v3668 = vpack.c.b16 %v3604, %v3602
          %v3669 = vpack.c.b16 %v3605, %v3603
          %3734 = vmatprep.subr.bf16.mxu0 %v3607
          %3735 = vmatpush1.bf16.msra.mxu0 %v3606
          %3736 = vmatprep.subr.bf16.mxu0 %v3609
          %3737 = vmatpush1.bf16.msra.mxu0 %v3608
          %3738 = vmatprep.subr.bf16.mxu0 %v3611
          %3739 = vmatpush1.bf16.msra.mxu0 %v3610
          %3740 = vmatprep.subr.bf16.mxu0 %v3613
          %3741 = vmatpush1.bf16.msra.mxu0 %v3612
          %3742 = vmatprep.subr.bf16.mxu0 %v3615
          %3743 = vmatpush1.bf16.msra.mxu0 %v3614
          %3744 = vmatprep.subr.bf16.mxu0 %v3617
          %3745 = vmatpush1.bf16.msra.mxu0 %v3616
          %3746 = vmatprep.subr.bf16.mxu0 %v3619
          %3747 = vmatpush1.bf16.msra.mxu0 %v3618
          %3748 = vmatprep.subr.bf16.mxu0 %v3621
          %3749 = vmatpush1.bf16.msra.mxu0 %v3620
          %3750 = vmatprep.subr.bf16.mxu0 %v3623
          %3751 = vmatpush1.bf16.msra.mxu0 %v3622
          %3752 = vmatprep.subr.bf16.mxu0 %v3625
          %3753 = vmatpush1.bf16.msra.mxu0 %v3624
          %3754 = vmatprep.subr.bf16.mxu0 %v3627
          %3755 = vmatpush1.bf16.msra.mxu0 %v3626
          %3756 = vmatprep.subr.bf16.mxu0 %v3629
          %3757 = vmatpush1.bf16.msra.mxu0 %v3628
          %3758 = vmatprep.subr.bf16.mxu0 %v3631
          %3759 = vmatpush1.bf16.msra.mxu0 %v3630
          %3760 = vmatprep.subr.bf16.mxu0 %v3633
          %3761 = vmatpush1.bf16.msra.mxu0 %v3632
          %3762 = vmatprep.subr.bf16.mxu0 %v3635
          %3763 = vmatpush1.bf16.msra.mxu0 %v3634
          %3764 = vmatprep.subr.bf16.mxu0 %v3637
          %3765 = vmatpush1.bf16.msra.mxu0 %v3636
          %3766 = vmatprep.mubr.bf16.mxu0 %v3335
          %3767 = vmatmul.mubr.bf16.gmra.mrb[0].mxu0 %v3334
          %v3768 = vpop.f32.mrb[0].mxu0
          %v3769 = vadd.f32 %v3407, %v3768
          %v3770 = vpop.f32.mrb[0].mxu0
          %v3771 = vadd.f32 %v3411, %v3770
          %v3772 = vpop.f32.mrb[0].mxu0
          %v3773 = vpop.f32.mrb[0].mxu0
          %3774 = vdwg.mxu0
          %3775 = vmatprep.subr.bf16.mxu0 %v3639
          %3776 = vmatpush1.bf16.msra.mxu0 %v3638
          %3777 = vmatprep.subr.bf16.mxu0 %v3641
          %3778 = vmatpush1.bf16.msra.mxu0 %v3640
          %3779 = vmatprep.subr.bf16.mxu0 %v3643
          %3780 = vmatpush1.bf16.msra.mxu0 %v3642
          %3781 = vmatprep.subr.bf16.mxu0 %v3645
          %3782 = vmatpush1.bf16.msra.mxu0 %v3644
          %3783 = vmatprep.subr.bf16.mxu0 %v3647
          %3784 = vmatpush1.bf16.msra.mxu0 %v3646
          %3785 = vmatprep.subr.bf16.mxu0 %v3649
          %3786 = vmatpush1.bf16.msra.mxu0 %v3648
          %3787 = vmatprep.subr.bf16.mxu0 %v3651
          %3788 = vmatpush1.bf16.msra.mxu0 %v3650
          %3789 = vmatprep.subr.bf16.mxu0 %v3653
          %3790 = vmatpush1.bf16.msra.mxu0 %v3652
          %3791 = vmatprep.subr.bf16.mxu0 %v3655
          %3792 = vmatpush1.bf16.msra.mxu0 %v3654
          %3793 = vmatprep.subr.bf16.mxu0 %v3657
          %3794 = vmatpush1.bf16.msra.mxu0 %v3656
          %3795 = vmatprep.subr.bf16.mxu0 %v3659
          %3796 = vmatpush1.bf16.msra.mxu0 %v3658
          %3797 = vmatprep.subr.bf16.mxu0 %v3661
          %3798 = vmatpush1.bf16.msra.mxu0 %v3660
          %3799 = vmatprep.subr.bf16.mxu0 %v3663
          %3800 = vmatpush1.bf16.msra.mxu0 %v3662
          %3801 = vmatprep.subr.bf16.mxu0 %v3665
          %3802 = vmatpush1.bf16.msra.mxu0 %v3664
          %3803 = vmatprep.subr.bf16.mxu0 %v3667
          %3804 = vmatpush1.bf16.msra.mxu0 %v3666
          %3805 = vmatprep.subr.bf16.mxu0 %v3669
          %3806 = vmatpush1.bf16.msra.mxu0 %v3668
          %3807 = vmatprep.mubr.bf16.mxu0 %v3337
          %3808 = vmatmul.mubr.bf16.gmra.mrb[0].mxu0 %v3336
          %v3809 = vpop.f32.mrb[0].mxu0
          %v3810 = vadd.f32 %v3769, %v3809
          %v3811 = vpop.f32.mrb[0].mxu0
          %v3812 = vadd.f32 %v3771, %v3811
          %v3813 = vpop.f32.mrb[0].mxu0
          %v3814 = vpop.f32.mrb[0].mxu0
          %3815 = vdwg.mxu0
          %v3816 = vmax.f32 %v3810, 0.0
          %v3817 = vmax.f32 %v3812, 0.0
          %v3818 = vpack.c.bf16 %v3816, %v3816
          %v3819 = vpack.c.bf16 %v3817, %v3817
          %v3820 = vld [vmem:[#allocation9] sm:$0xf]
          %v3821 = vld [vmem:[#allocation9 + $0x4] sm:$0xf]
          %v3822 = vld [vmem:[#allocation9 + $0x8] sm:$0xf]
          %v3823 = vld [vmem:[#allocation9 + $0xc] sm:$0xf]
          %v3824 = vld [vmem:[#allocation9 + $0x10] sm:$0xf]
          %v3825 = vld [vmem:[#allocation9 + $0x14] sm:$0xf]
          %v3826 = vld [vmem:[#allocation9 + $0x18] sm:$0xf]
          %v3827 = vld [vmem:[#allocation9 + $0x1c] sm:$0xf]
          %v3828 = vld [vmem:[#allocation9 + $0x20] sm:$0xf]
          %v3829 = vld [vmem:[#allocation9 + $0x24] sm:$0xf]
          %v3830 = vld [vmem:[#allocation9 + $0x28] sm:$0xf]
          %v3831 = vld [vmem:[#allocation9 + $0x2c] sm:$0xf]
          %v3832 = vld [vmem:[#allocation9 + $0x30] sm:$0xf]
          %v3833 = vld [vmem:[#allocation9 + $0x34] sm:$0xf]
          %v3834 = vld [vmem:[#allocation9 + $0x38] sm:$0xf]
          %v3835 = vld [vmem:[#allocation9 + $0x3c] sm:$0xf]
          %v3836 = vld [vmem:[#allocation9 + $0x40] sm:$0xf]
          %v3837 = vld [vmem:[#allocation9 + $0x44] sm:$0xf]
          %v3838 = vld [vmem:[#allocation9 + $0x48] sm:$0xf]
          %v3839 = vld [vmem:[#allocation9 + $0x4c] sm:$0xf]
          %v3840 = vld [vmem:[#allocation9 + $0x50] sm:$0xf]
          %v3841 = vld [vmem:[#allocation9 + $0x54] sm:$0xf]
          %v3842 = vld [vmem:[#allocation9 + $0x58] sm:$0xf]
          %v3843 = vld [vmem:[#allocation9 + $0x5c] sm:$0xf]
          %v3844 = vld [vmem:[#allocation9 + $0x60] sm:$0xf]
          %v3845 = vld [vmem:[#allocation9 + $0x64] sm:$0xf]
          %v3846 = vld [vmem:[#allocation9 + $0x68] sm:$0xf]
          %v3847 = vld [vmem:[#allocation9 + $0x6c] sm:$0xf]
          %v3848 = vld [vmem:[#allocation9 + $0x70] sm:$0xf]
          %v3849 = vld [vmem:[#allocation9 + $0x74] sm:$0xf]
          %v3850 = vld [vmem:[#allocation9 + $0x78] sm:$0xf]
          %v3851 = vld [vmem:[#allocation9 + $0x7c] sm:$0xf]
          %v3884 = vunpack.c.l.b16 %v3820
          %v3885 = vunpack.c.l.b16 %v3821
          %v3886 = vunpack.c.l.b16 %v3822
          %v3887 = vunpack.c.l.b16 %v3823
          %v3888 = vunpack.c.l.b16 %v3824
          %v3889 = vunpack.c.l.b16 %v3825
          %v3890 = vunpack.c.l.b16 %v3826
          %v3891 = vunpack.c.l.b16 %v3827
          %v3892 = vunpack.c.l.b16 %v3828
          %v3893 = vunpack.c.l.b16 %v3829
          %v3894 = vunpack.c.l.b16 %v3830
          %v3895 = vunpack.c.l.b16 %v3831
          %v3896 = vunpack.c.l.b16 %v3832
          %v3897 = vunpack.c.l.b16 %v3833
          %v3898 = vunpack.c.l.b16 %v3834
          %v3899 = vunpack.c.l.b16 %v3835
          %v3900 = vunpack.c.l.b16 %v3836
          %v3901 = vunpack.c.l.b16 %v3837
          %v3902 = vunpack.c.l.b16 %v3838
          %v3903 = vunpack.c.l.b16 %v3839
          %v3904 = vunpack.c.l.b16 %v3840
          %v3905 = vunpack.c.l.b16 %v3841
          %v3906 = vunpack.c.l.b16 %v3842
          %v3907 = vunpack.c.l.b16 %v3843
          %v3908 = vunpack.c.l.b16 %v3844
          %v3909 = vunpack.c.l.b16 %v3845
          %v3910 = vunpack.c.l.b16 %v3846
          %v3911 = vunpack.c.l.b16 %v3847
          %v3912 = vunpack.c.l.b16 %v3848
          %v3913 = vunpack.c.l.b16 %v3849
          %v3914 = vunpack.c.l.b16 %v3850
          %v3915 = vunpack.c.l.b16 %v3851
          %v3916 = vpack.c.b16 %v3885, %v3884
          %v3917 = vpack.c.b16 %v3887, %v3886
          %v3918 = vpack.c.b16 %v3889, %v3888
          %v3919 = vpack.c.b16 %v3891, %v3890
          %v3920 = vpack.c.b16 %v3893, %v3892
          %v3921 = vpack.c.b16 %v3895, %v3894
          %v3922 = vpack.c.b16 %v3897, %v3896
          %v3923 = vpack.c.b16 %v3899, %v3898
          %v3924 = vpack.c.b16 %v3901, %v3900
          %v3925 = vpack.c.b16 %v3903, %v3902
          %v3926 = vpack.c.b16 %v3905, %v3904
          %v3927 = vpack.c.b16 %v3907, %v3906
          %v3928 = vpack.c.b16 %v3909, %v3908
          %v3929 = vpack.c.b16 %v3911, %v3910
          %v3930 = vpack.c.b16 %v3913, %v3912
          %v3931 = vpack.c.b16 %v3915, %v3914
          %3948 = vmatprep.subr.bf16.mxu0 0
          %3949 = vmatpush1.bf16.msra.mxu0 %v3916
          %3950 = vmatprep.subr.bf16.mxu0 0
          %3951 = vmatpush1.bf16.msra.mxu0 %v3917
          %3952 = vmatprep.subr.bf16.mxu0 0
          %3953 = vmatpush1.bf16.msra.mxu0 %v3918
          %3954 = vmatprep.subr.bf16.mxu0 0
          %3955 = vmatpush1.bf16.msra.mxu0 %v3919
          %3956 = vmatprep.subr.bf16.mxu0 0
          %3957 = vmatpush1.bf16.msra.mxu0 %v3920
          %3958 = vmatprep.subr.bf16.mxu0 0
          %3959 = vmatpush1.bf16.msra.mxu0 %v3921
          %3960 = vmatprep.subr.bf16.mxu0 0
          %3961 = vmatpush1.bf16.msra.mxu0 %v3922
          %3962 = vmatprep.subr.bf16.mxu0 0
          %3963 = vmatpush1.bf16.msra.mxu0 %v3923
          %3964 = vmatprep.subr.bf16.mxu0 0
          %3965 = vmatpush1.bf16.msra.mxu0 %v3924
          %3966 = vmatprep.subr.bf16.mxu0 0
          %3967 = vmatpush1.bf16.msra.mxu0 %v3925
          %3968 = vmatprep.subr.bf16.mxu0 0
          %3969 = vmatpush1.bf16.msra.mxu0 %v3926
          %3970 = vmatprep.subr.bf16.mxu0 0
          %3971 = vmatpush1.bf16.msra.mxu0 %v3927
          %3972 = vmatprep.subr.bf16.mxu0 0
          %3973 = vmatpush1.bf16.msra.mxu0 %v3928
          %3974 = vmatprep.subr.bf16.mxu0 0
          %3975 = vmatpush1.bf16.msra.mxu0 %v3929
          %3976 = vmatprep.subr.bf16.mxu0 0
          %3977 = vmatpush1.bf16.msra.mxu0 %v3930
          %3978 = vmatprep.subr.bf16.mxu0 0
          %3979 = vmatpush1.bf16.msra.mxu0 %v3931
          %3980 = vmatprep.mubr.bf16.mxu0 %v3819
          %3981 = vmatmul.mubr.bf16.gmra.mrb[0].mxu0 %v3818
          %v3982 = vpop.f32.mrb[0].mxu0
          %v3983 = vadd.f32 0.0, %v3982
          %v3984 = vpop.f32.mrb[0].mxu0
          %v3985 = vpop.f32.mrb[0].mxu0
          %v3986 = vpop.f32.mrb[0].mxu0
          %3987 = vdwg.mxu0
          %v3988 = vld [vmem:[%s12] sm:$0x1]
          %v3989 = vadd.f32 %v3983, %v3988
          %3990 = vst [vmem:[%s514] sm:$0x1] %v3989
        $region96: #{tpu_custom_call.1} parent=71 // pred_fallthru
          _
        %s3991 = sand.u32 %s330, 1
        %s3992 = scalar_lea.sflag [#allocation5], %s3991
        %s3993 = sand.u32 %s330, 1
        %s3994 = scalar_lea.vmem [#allocation11], %s3993
        // Predicated region
        $region97: #{tpu_custom_call.1} parent=71 // pred_check
          %p3995 = pneg %p340
        $region98: #{tpu_custom_call.1} parent=71 // pred_check_branch
          %3997 = sbr.rel (%p3995) target = $region100
        $region99: #{tpu_custom_call.1} parent=71 // pred_region
          %s3999 = ssub.s32 16, 16
          %4000 = vsyncadd %s3992, %s3999
          %s4001 = smul.addr %s34, 16
          %s4002 = scalar_lea.hbm %s13, %s4001
          %s4004 = sshll.u32 %s3994, 4
          %s4005 = int_to_ptr.vmem [resolvable:$true] %s4004
          %4007 = dma.vmem_to_hbm [thread:$0]  %s4005, 16, %s4002, %s3992
        $region100: #{tpu_custom_call.1} parent=71 // pred_fallthru
          _
      $region72: #{tpu_custom_call.1} parent=5 // pred_fallthru
        _
      %p4008 = scmp.le.s32.totalorder 2, %s25
      // Predicated region
      $region101: #{tpu_custom_call.1} parent=5 // pred_check
        %p4009 = pneg %p4008
      $region102: #{tpu_custom_call.1} parent=5 // pred_check_branch
        %4011 = sbr.rel (%p4009) target = $region104
      $region103: #{tpu_custom_call.1} parent=5 // pred_region
        %s4012 = ssub.s32 %s25, 2
        // Predicated region
        $region105: #{tpu_custom_call.1} parent=103 // pred_check
          %p4013 = pneg %p346
        $region106: #{tpu_custom_call.1} parent=103 // pred_check_branch
          %4015 = sbr.rel (%p4013) target = $region108
        $region107: #{tpu_custom_call.1} parent=103 // pred_region
          %s4016 = sand.u32 %s331, 1
          %s4017 = scalar_lea.sflag [#allocation5], %s4016
          %s4018 = sand.u32 %s331, 1
          %s4019 = scalar_lea.vmem [#allocation11], %s4018
          %4020 = dma.done %s4017, 16
        $region108: #{tpu_custom_call.1} parent=103 // pred_fallthru
          _
      $region104: #{tpu_custom_call.1} parent=5 // pred_fallthru
        _
    $region6: #{tpu_custom_call.1} parent=1 // loop_footer
      %s29 = sadd.s32 1, %s25
    $region7: #{tpu_custom_call.1} parent=1 // loop_footer_branch
      %24 = sbr.rel target = $region3
    $region8: #{tpu_custom_call.1} parent=1 // loop_exit
      _
    %4021 = vsyncpa [#allocation4], 1
    %s4022 = scalar_lea.sflag [#allocation4], 1
    %4023 = vsyncpa %s4022, 1
    %4024 = vsyncpa [#allocation7], 1
    %4025 = vsyncpa [#allocation10], 1
    %4026 = vsyncpa [#allocation5], 1
    %s4027 = scalar_lea.sflag [#allocation5], 1
    %4028 = vsyncpa %s4027, 1

</llo_original>
